<compile_context>
chip_gen: v5e
topology: v5e:2x2
jax: 0.10.0
libtpu: 0.0.40
codegen_flags: <defaults>
</compile_context>

<pallas_src>
import functools

import jax
import jax.numpy as jnp
from jax.experimental import pallas as pl
from jax.experimental.pallas import tpu as pltpu


def _leaky(x):
    """leaky_relu(x, 0.2) in f32 (v5e VPU has no bf16 path)."""
    x = x.astype(jnp.float32)
    return jnp.where(x > 0, x, 0.2 * x)


# ----------------------------------------------------------------------------
# single fused kernel: bottleneck(+shortcut) -> conv_0 -> conv_1(+residual)
#                      -> conv_bottle_out, one image per grid step
# ----------------------------------------------------------------------------
def _fused_resblock_kernel(x_ref, wcat_ref, bcat_ref, w0_ref, b0_ref,
                           w1_ref, b1_ref, wo_ref, bo_ref, o_ref,
                           hpad_ref, dpad_ref, *,
                           H, W, fin, fhid, fout, learned_shortcut):
    HW = H * W

    # Zero padding lives in VMEM scratch (no jnp.pad HBM round trip).  The
    # interior is fully overwritten below; zeroing the whole (tiny) scratch
    # each step keeps it correct under megacore grid sharding.
    hpad_ref[...] = jnp.zeros_like(hpad_ref)
    dpad_ref[...] = jnp.zeros_like(dpad_ref)

    # ---- conv_bottle 1x1 (+ algebraically fused conv_s shortcut): one GEMM --
    # x block is NCHW-flat (Cin_big, H*W); transpose in-VMEM (XLU) so the rest
    # of the block runs channels-last.  Cast to bf16 in-kernel.
    a = jnp.transpose(x_ref[0])                              # (HW, Cin_big) f32
    ab = a.astype(jnp.bfloat16)
    hx = jnp.dot(ab, wcat_ref[...],
                 preferred_element_type=jnp.float32) + bcat_ref[...]
    if learned_shortcut:
        h = hx[:, :fin]                                      # bottleneck output
        xs = hx[:, fin:fin + fout]                           # shortcut = h @ Ws
    else:
        h = hx
        xs = hx

    # ---- conv_0: 3x3 'same' on leaky(h): single K=9*fin dot over a slab -----
    hpad_ref[1:H + 1, 1:W + 1, :] = _leaky(h).reshape(H, W, fin)
    hp = hpad_ref[...]
    slab0 = jnp.concatenate(
        [hp[di:di + H, dj:dj + W, :].reshape(HW, fin)
         for di in range(3) for dj in range(3)],
        axis=1).astype(jnp.bfloat16)                         # (HW, 9*fin)
    dx = jnp.dot(slab0, w0_ref[...],
                 preferred_element_type=jnp.float32) + b0_ref[...]

    # ---- conv_1: 3x3 'same' on leaky(dx); residual x_s + 0.1*dx fused -------
    dpad_ref[1:H + 1, 1:W + 1, :] = _leaky(dx).reshape(H, W, fhid)
    dp = dpad_ref[...]
    slab1 = jnp.concatenate(
        [dp[di:di + H, dj:dj + W, :].reshape(HW, fhid)
         for di in range(3) for dj in range(3)],
        axis=1).astype(jnp.bfloat16)                         # (HW, 9*fhid)
    dx1 = jnp.dot(slab1, w1_ref[...],
                  preferred_element_type=jnp.float32) + b1_ref[...]
    out = xs + 0.1 * dx1                                     # f32 residual

    # ---- conv_bottle_out 1x1 on leaky(out): lane-dense (HW, fout*k) ---------
    a2 = _leaky(out).astype(jnp.bfloat16)
    y = jnp.dot(a2, wo_ref[...],
                preferred_element_type=jnp.float32) + bo_ref[...]
    o_ref[0] = jnp.transpose(y).astype(o_ref.dtype)          # back to NCHW-flat


# ----------------------------------------------------------------------------
# forward pass (matches task_ResnetBlock.forward), NCHW in / NCHW out
# ----------------------------------------------------------------------------
def task_resnet_block_forward(x_nchw, blocks, task_id):
    p = blocks[task_id]                    # concrete Python index (nn.ModuleList)
    n, cin_big, H, W = x_nchw.shape
    fin = p["conv_bottle"]["w"].shape[1]
    fhid = p["conv_0"]["w"].shape[-1]
    fout = p["conv_1"]["w"].shape[-1]
    cout_big = p["conv_bottle_out"]["w"].shape[1]
    learned = p["conv_s"] is not None

    # Trace-time weight prep (tiny tensors): fold the 1x1 shortcut into the
    # bottleneck GEMM via the concatenated weight [Wb | Wb @ Ws].
    wb, bb = p["conv_bottle"]["w"], p["conv_bottle"]["b"]
    if learned:
        ws = p["conv_s"]["w"]
        w_cat = jnp.concatenate([wb, wb @ ws], axis=1)       # (fin*k, fin+fout)
        b_cat = jnp.concatenate([bb, bb @ ws])               # (fin+fout,)
    else:
        w_cat, b_cat = wb, bb

    w0 = p["conv_0"]["w"].reshape(9 * fin, fhid)             # tap-major (3*di+dj)
    w1 = p["conv_1"]["w"].reshape(9 * fhid, fout)
    wo = p["conv_bottle_out"]["w"]

    x_flat = x_nchw.reshape(n, cin_big, H * W)               # free reshape

    kernel = functools.partial(
        _fused_resblock_kernel, H=H, W=W, fin=fin, fhid=fhid, fout=fout,
        learned_shortcut=learned)

    out = pl.pallas_call(
        kernel,
        out_shape=jax.ShapeDtypeStruct((n, cout_big, H * W), jnp.float32),
        grid=(n,),
        in_specs=[
            pl.BlockSpec((1, cin_big, H * W), lambda i: (i, 0, 0)),
            pl.BlockSpec(w_cat.shape, lambda i: (0, 0)),
            pl.BlockSpec((1, b_cat.shape[0]), lambda i: (0, 0)),
            pl.BlockSpec(w0.shape, lambda i: (0, 0)),
            pl.BlockSpec((1, fhid), lambda i: (0, 0)),
            pl.BlockSpec(w1.shape, lambda i: (0, 0)),
            pl.BlockSpec((1, fout), lambda i: (0, 0)),
            pl.BlockSpec(wo.shape, lambda i: (0, 0)),
            pl.BlockSpec((1, cout_big), lambda i: (0, 0)),
        ],
        out_specs=pl.BlockSpec((1, cout_big, H * W), lambda i: (i, 0, 0)),
        scratch_shapes=[pltpu.VMEM((H + 2, W + 2, fin), jnp.float32),
                        pltpu.VMEM((H + 2, W + 2, fhid), jnp.float32)],
        compiler_params=pltpu.CompilerParams(
            dimension_semantics=("parallel",)),
    )(x_flat,
      w_cat.astype(jnp.bfloat16),
      b_cat.reshape(1, -1).astype(jnp.float32),
      w0.astype(jnp.bfloat16),
      p["conv_0"]["b"].reshape(1, -1).astype(jnp.float32),
      w1.astype(jnp.bfloat16),
      p["conv_1"]["b"].reshape(1, -1).astype(jnp.float32),
      wo.astype(jnp.bfloat16),
      p["conv_bottle_out"]["b"].reshape(1, -1).astype(jnp.float32))
    return out.reshape(n, cout_big, H, W)


# ----------------------------------------------------------------------------
# parameter init (deterministic, synthetic); 1x1 weights as (cin, cout),
# 3x3 weights as (kh, kw, cin, cout)
# ----------------------------------------------------------------------------
def _init_conv1x1(key, cin, cout, use_bias=True):
    kw_, kb_ = jax.random.split(key)
    w = jax.random.normal(kw_, (cin, cout), jnp.float32) / jnp.sqrt(float(cin))
    b = (jax.random.normal(kb_, (cout,), jnp.float32) * 0.01
         if use_bias else jnp.zeros((cout,), jnp.float32))
    return {"w": w, "b": b}


def _init_conv3x3(key, cin, cout):
    kw_, kb_ = jax.random.split(key)
    w = jax.random.normal(kw_, (3, 3, cin, cout), jnp.float32) / jnp.sqrt(9.0 * cin)
    b = jax.random.normal(kb_, (cout,), jnp.float32) * 0.01
    return {"w": w, "b": b}


def init_task_resnet_block(key, fin, fout, *, n_task=7, k=16, fhidden=None):
    if fhidden is None:
        fhidden = min(fin, fout)
    learned_shortcut = fin != fout
    blocks = []
    for tkey in jax.random.split(key, n_task):
        kb, k0, k1, ks, ko = jax.random.split(tkey, 5)
        blocks.append({
            "conv_bottle": _init_conv1x1(kb, fin * k, fin),
            "conv_0": _init_conv3x3(k0, fin, fhidden),
            "conv_1": _init_conv3x3(k1, fhidden, fout),
            "conv_s": (_init_conv1x1(ks, fin, fout, use_bias=False)
                       if learned_shortcut else None),
            "conv_bottle_out": _init_conv1x1(ko, fout, fout * k),
        })
    return blocks


# ----------------------------------------------------------------------------
if __name__ == "__main__":
    # Small but structurally faithful config: fin != fout -> learned shortcut.
    fin, fout, k, n_task = 8, 16, 16, 7
    batch, size = 2, 16
    task_id = 3

    key = jax.random.PRNGKey(0)
    kp, kx = jax.random.split(key)
    blocks = init_task_resnet_block(kp, fin, fout, n_task=n_task, k=k)
    x = jax.random.normal(kx, (batch, fin * k, size, size), jnp.float32)

    fwd = jax.jit(lambda xx, pp: task_resnet_block_forward(xx, pp, task_id))
    out = fwd(x, blocks)
    jax.block_until_ready(out)
    assert out.shape == (batch, fout * k, size, size), out.shape
    print("KERNEL_OK")
</pallas_src>

<mosaic_0001>
module attributes {stable_mosaic.version = 11 : i64} {
  func.func @_fused_resblock_kernel(%arg0: i32, %arg1: memref<1x128x256xf32, #tpu.memory_space<vmem>>, %arg2: memref<128x24xbf16, #tpu.memory_space<vmem>>, %arg3: memref<1x24xf32, #tpu.memory_space<vmem>>, %arg4: memref<72x8xbf16, #tpu.memory_space<vmem>>, %arg5: memref<1x8xf32, #tpu.memory_space<vmem>>, %arg6: memref<72x16xbf16, #tpu.memory_space<vmem>>, %arg7: memref<1x16xf32, #tpu.memory_space<vmem>>, %arg8: memref<16x256xbf16, #tpu.memory_space<vmem>>, %arg9: memref<1x256xf32, #tpu.memory_space<vmem>>, %arg10: memref<1x256x256xf32, #tpu.memory_space<vmem>>, %arg11: memref<18x18x8xf32, #tpu.memory_space<vmem>>, %arg12: memref<18x18x8xf32, #tpu.memory_space<vmem>>) attributes {dimension_semantics = [#tpu.dimension_semantics<parallel>], iteration_bounds = array<i64: 2>, scalar_prefetch = 0 : i64, scratch_operands = 2 : i64, tpu.core_type = #tpu.core_type<tc>, window_params = [{transform_indices = @transform_0, window_bounds = array<i64: 1, 128, 256>}, {pipeline_mode = #tpu.pipeline_mode<synchronous>, transform_indices = @transform_1, window_bounds = array<i64: 128, 24>}, {pipeline_mode = #tpu.pipeline_mode<synchronous>, transform_indices = @transform_2, window_bounds = array<i64: 1, 24>}, {pipeline_mode = #tpu.pipeline_mode<synchronous>, transform_indices = @transform_3, window_bounds = array<i64: 72, 8>}, {pipeline_mode = #tpu.pipeline_mode<synchronous>, transform_indices = @transform_4, window_bounds = array<i64: 1, 8>}, {pipeline_mode = #tpu.pipeline_mode<synchronous>, transform_indices = @transform_5, window_bounds = array<i64: 72, 16>}, {pipeline_mode = #tpu.pipeline_mode<synchronous>, transform_indices = @transform_6, window_bounds = array<i64: 1, 16>}, {pipeline_mode = #tpu.pipeline_mode<synchronous>, transform_indices = @transform_7, window_bounds = array<i64: 16, 256>}, {pipeline_mode = #tpu.pipeline_mode<synchronous>, transform_indices = @transform_8, window_bounds = array<i64: 1, 256>}, {transform_indices = @transform_9, window_bounds = array<i64: 1, 256, 256>}]} {
    %cst = arith.constant 0.000000e+00 : f32
    %0 = vector.broadcast %cst : f32 to vector<18x18x8xf32>
    %c0 = arith.constant 0 : index
    %c0_0 = arith.constant 0 : index
    %c0_1 = arith.constant 0 : index
    %1 = vector.load %arg11[%c0, %c0_0, %c0_1] : memref<18x18x8xf32, #tpu.memory_space<vmem>>, vector<18x18x8xf32>
    tpu.vector_store %arg11[%c0, %c0_0, %c0_1], %0 {strides = array<i32>} : memref<18x18x8xf32, #tpu.memory_space<vmem>>, vector<18x18x8xf32>,
    %cst_2 = arith.constant 0.000000e+00 : f32
    %2 = vector.broadcast %cst_2 : f32 to vector<18x18x8xf32>
    %c0_3 = arith.constant 0 : index
    %c0_4 = arith.constant 0 : index
    %c0_5 = arith.constant 0 : index
    %3 = vector.load %arg12[%c0_3, %c0_4, %c0_5] : memref<18x18x8xf32, #tpu.memory_space<vmem>>, vector<18x18x8xf32>
    tpu.vector_store %arg12[%c0_3, %c0_4, %c0_5], %2 {strides = array<i32>} : memref<18x18x8xf32, #tpu.memory_space<vmem>>, vector<18x18x8xf32>,
    %c0_6 = arith.constant 0 : index
    %c0_7 = arith.constant 0 : index
    %c0_8 = arith.constant 0 : index
    %4 = vector.load %arg1[%c0_6, %c0_7, %c0_8] : memref<1x128x256xf32, #tpu.memory_space<vmem>>, vector<1x128x256xf32>
    %5 = vector.shape_cast %4 : vector<1x128x256xf32> to vector<128x256xf32>
    %6 = tpu.transpose %5, [1, 0] : vector<128x256xf32> -> vector<256x128xf32>
    %7 = arith.truncf %6 : vector<256x128xf32> to vector<256x128xbf16>
    %c0_9 = arith.constant 0 : index
    %c0_10 = arith.constant 0 : index
    %8 = vector.load %arg2[%c0_9, %c0_10] : memref<128x24xbf16, #tpu.memory_space<vmem>>, vector<128x24xbf16>
    %cst_11 = arith.constant dense<0.000000e+00> : vector<256x24xf32>
    %9 = tpu.matmul %7, %8, %cst_11 {dimension_numbers = #tpu.dot_dimension_numbers<[1], [0], [0], [1], [0, 0, 1, 1], [], []>} : vector<256x128xbf16>, vector<128x24xbf16>, vector<256x24xf32> -> vector<256x24xf32>
    %c0_12 = arith.constant 0 : index
    %c0_13 = arith.constant 0 : index
    %10 = vector.load %arg3[%c0_12, %c0_13] : memref<1x24xf32, #tpu.memory_space<vmem>>, vector<1x24xf32>
    %11 = vector.broadcast %10 : vector<1x24xf32> to vector<256x24xf32>
    %12 = arith.addf %9, %11 : vector<256x24xf32>
    %13 = vector.extract_strided_slice %12 {offsets = [0, 0], sizes = [256, 8], strides = [1, 1]} : vector<256x24xf32> to vector<256x8xf32>
    %14 = vector.extract_strided_slice %12 {offsets = [0, 8], sizes = [256, 16], strides = [1, 1]} : vector<256x24xf32> to vector<256x16xf32>
    %cst_14 = arith.constant 0.000000e+00 : f32
    %15 = vector.broadcast %cst_14 : f32 to vector<256x8xf32>
    %16 = arith.cmpf ogt, %13, %15 : vector<256x8xf32>
    %cst_15 = arith.constant 2.000000e-01 : f32
    %17 = vector.broadcast %cst_15 : f32 to vector<256x8xf32>
    %18 = arith.mulf %17, %13 : vector<256x8xf32>
    %19 = arith.select %16, %13, %18 : vector<256x8xi1>, vector<256x8xf32>
    %20 = vector.shape_cast %19 : vector<256x8xf32> to vector<16x16x8xf32>
    %c1 = arith.constant 1 : index
    %c1_16 = arith.constant 1 : index
    %c0_17 = arith.constant 0 : index
    %21 = vector.load %arg11[%c1, %c1_16, %c0_17] : memref<18x18x8xf32, #tpu.memory_space<vmem>>, vector<16x16x8xf32>
    tpu.vector_store %arg11[%c1, %c1_16, %c0_17], %20 {strides = array<i32>} : memref<18x18x8xf32, #tpu.memory_space<vmem>>, vector<16x16x8xf32>,
    %c0_18 = arith.constant 0 : index
    %c0_19 = arith.constant 0 : index
    %c0_20 = arith.constant 0 : index
    %22 = vector.load %arg11[%c0_18, %c0_19, %c0_20] : memref<18x18x8xf32, #tpu.memory_space<vmem>>, vector<18x18x8xf32>
    %23 = vector.extract_strided_slice %22 {offsets = [0, 0, 0], sizes = [16, 16, 8], strides = [1, 1, 1]} : vector<18x18x8xf32> to vector<16x16x8xf32>
    %24 = vector.shape_cast %23 : vector<16x16x8xf32> to vector<256x8xf32>
    %25 = vector.extract_strided_slice %22 {offsets = [0, 1, 0], sizes = [16, 16, 8], strides = [1, 1, 1]} : vector<18x18x8xf32> to vector<16x16x8xf32>
    %26 = vector.shape_cast %25 : vector<16x16x8xf32> to vector<256x8xf32>
    %27 = vector.extract_strided_slice %22 {offsets = [0, 2, 0], sizes = [16, 16, 8], strides = [1, 1, 1]} : vector<18x18x8xf32> to vector<16x16x8xf32>
    %28 = vector.shape_cast %27 : vector<16x16x8xf32> to vector<256x8xf32>
    %29 = vector.extract_strided_slice %22 {offsets = [1, 0, 0], sizes = [16, 16, 8], strides = [1, 1, 1]} : vector<18x18x8xf32> to vector<16x16x8xf32>
    %30 = vector.shape_cast %29 : vector<16x16x8xf32> to vector<256x8xf32>
    %31 = vector.extract_strided_slice %22 {offsets = [1, 1, 0], sizes = [16, 16, 8], strides = [1, 1, 1]} : vector<18x18x8xf32> to vector<16x16x8xf32>
    %32 = vector.shape_cast %31 : vector<16x16x8xf32> to vector<256x8xf32>
    %33 = vector.extract_strided_slice %22 {offsets = [1, 2, 0], sizes = [16, 16, 8], strides = [1, 1, 1]} : vector<18x18x8xf32> to vector<16x16x8xf32>
    %34 = vector.shape_cast %33 : vector<16x16x8xf32> to vector<256x8xf32>
    %35 = vector.extract_strided_slice %22 {offsets = [2, 0, 0], sizes = [16, 16, 8], strides = [1, 1, 1]} : vector<18x18x8xf32> to vector<16x16x8xf32>
    %36 = vector.shape_cast %35 : vector<16x16x8xf32> to vector<256x8xf32>
    %37 = vector.extract_strided_slice %22 {offsets = [2, 1, 0], sizes = [16, 16, 8], strides = [1, 1, 1]} : vector<18x18x8xf32> to vector<16x16x8xf32>
    %38 = vector.shape_cast %37 : vector<16x16x8xf32> to vector<256x8xf32>
    %39 = vector.extract_strided_slice %22 {offsets = [2, 2, 0], sizes = [16, 16, 8], strides = [1, 1, 1]} : vector<18x18x8xf32> to vector<16x16x8xf32>
    %40 = vector.shape_cast %39 : vector<16x16x8xf32> to vector<256x8xf32>
    %41 = tpu.concatenate %24, %26, %28, %30, %32, %34, %36, %38, %40 in 1 : vector<256x8xf32>, vector<256x8xf32>, vector<256x8xf32>, vector<256x8xf32>, vector<256x8xf32>, vector<256x8xf32>, vector<256x8xf32>, vector<256x8xf32>, vector<256x8xf32> -> vector<256x72xf32>
    %42 = arith.truncf %41 : vector<256x72xf32> to vector<256x72xbf16>
    %c0_21 = arith.constant 0 : index
    %c0_22 = arith.constant 0 : index
    %43 = vector.load %arg4[%c0_21, %c0_22] : memref<72x8xbf16, #tpu.memory_space<vmem>>, vector<72x8xbf16>
    %cst_23 = arith.constant dense<0.000000e+00> : vector<256x8xf32>
    %44 = tpu.matmul %42, %43, %cst_23 {dimension_numbers = #tpu.dot_dimension_numbers<[1], [0], [0], [1], [0, 0, 1, 1], [], []>} : vector<256x72xbf16>, vector<72x8xbf16>, vector<256x8xf32> -> vector<256x8xf32>
    %c0_24 = arith.constant 0 : index
    %c0_25 = arith.constant 0 : index
    %45 = vector.load %arg5[%c0_24, %c0_25] : memref<1x8xf32, #tpu.memory_space<vmem>>, vector<1x8xf32>
    %46 = vector.broadcast %45 : vector<1x8xf32> to vector<256x8xf32>
    %47 = arith.addf %44, %46 : vector<256x8xf32>
    %cst_26 = arith.constant 0.000000e+00 : f32
    %48 = vector.broadcast %cst_26 : f32 to vector<256x8xf32>
    %49 = arith.cmpf ogt, %47, %48 : vector<256x8xf32>
    %cst_27 = arith.constant 2.000000e-01 : f32
    %50 = vector.broadcast %cst_27 : f32 to vector<256x8xf32>
    %51 = arith.mulf %50, %47 : vector<256x8xf32>
    %52 = arith.select %49, %47, %51 : vector<256x8xi1>, vector<256x8xf32>
    %53 = vector.shape_cast %52 : vector<256x8xf32> to vector<16x16x8xf32>
    %c1_28 = arith.constant 1 : index
    %c1_29 = arith.constant 1 : index
    %c0_30 = arith.constant 0 : index
    %54 = vector.load %arg12[%c1_28, %c1_29, %c0_30] : memref<18x18x8xf32, #tpu.memory_space<vmem>>, vector<16x16x8xf32>
    tpu.vector_store %arg12[%c1_28, %c1_29, %c0_30], %53 {strides = array<i32>} : memref<18x18x8xf32, #tpu.memory_space<vmem>>, vector<16x16x8xf32>,
    %c0_31 = arith.constant 0 : index
    %c0_32 = arith.constant 0 : index
    %c0_33 = arith.constant 0 : index
    %55 = vector.load %arg12[%c0_31, %c0_32, %c0_33] : memref<18x18x8xf32, #tpu.memory_space<vmem>>, vector<18x18x8xf32>
    %56 = vector.extract_strided_slice %55 {offsets = [0, 0, 0], sizes = [16, 16, 8], strides = [1, 1, 1]} : vector<18x18x8xf32> to vector<16x16x8xf32>
    %57 = vector.shape_cast %56 : vector<16x16x8xf32> to vector<256x8xf32>
    %58 = vector.extract_strided_slice %55 {offsets = [0, 1, 0], sizes = [16, 16, 8], strides = [1, 1, 1]} : vector<18x18x8xf32> to vector<16x16x8xf32>
    %59 = vector.shape_cast %58 : vector<16x16x8xf32> to vector<256x8xf32>
    %60 = vector.extract_strided_slice %55 {offsets = [0, 2, 0], sizes = [16, 16, 8], strides = [1, 1, 1]} : vector<18x18x8xf32> to vector<16x16x8xf32>
    %61 = vector.shape_cast %60 : vector<16x16x8xf32> to vector<256x8xf32>
    %62 = vector.extract_strided_slice %55 {offsets = [1, 0, 0], sizes = [16, 16, 8], strides = [1, 1, 1]} : vector<18x18x8xf32> to vector<16x16x8xf32>
    %63 = vector.shape_cast %62 : vector<16x16x8xf32> to vector<256x8xf32>
    %64 = vector.extract_strided_slice %55 {offsets = [1, 1, 0], sizes = [16, 16, 8], strides = [1, 1, 1]} : vector<18x18x8xf32> to vector<16x16x8xf32>
    %65 = vector.shape_cast %64 : vector<16x16x8xf32> to vector<256x8xf32>
    %66 = vector.extract_strided_slice %55 {offsets = [1, 2, 0], sizes = [16, 16, 8], strides = [1, 1, 1]} : vector<18x18x8xf32> to vector<16x16x8xf32>
    %67 = vector.shape_cast %66 : vector<16x16x8xf32> to vector<256x8xf32>
    %68 = vector.extract_strided_slice %55 {offsets = [2, 0, 0], sizes = [16, 16, 8], strides = [1, 1, 1]} : vector<18x18x8xf32> to vector<16x16x8xf32>
    %69 = vector.shape_cast %68 : vector<16x16x8xf32> to vector<256x8xf32>
    %70 = vector.extract_strided_slice %55 {offsets = [2, 1, 0], sizes = [16, 16, 8], strides = [1, 1, 1]} : vector<18x18x8xf32> to vector<16x16x8xf32>
    %71 = vector.shape_cast %70 : vector<16x16x8xf32> to vector<256x8xf32>
    %72 = vector.extract_strided_slice %55 {offsets = [2, 2, 0], sizes = [16, 16, 8], strides = [1, 1, 1]} : vector<18x18x8xf32> to vector<16x16x8xf32>
    %73 = vector.shape_cast %72 : vector<16x16x8xf32> to vector<256x8xf32>
    %74 = tpu.concatenate %57, %59, %61, %63, %65, %67, %69, %71, %73 in 1 : vector<256x8xf32>, vector<256x8xf32>, vector<256x8xf32>, vector<256x8xf32>, vector<256x8xf32>, vector<256x8xf32>, vector<256x8xf32>, vector<256x8xf32>, vector<256x8xf32> -> vector<256x72xf32>
    %75 = arith.truncf %74 : vector<256x72xf32> to vector<256x72xbf16>
    %c0_34 = arith.constant 0 : index
    %c0_35 = arith.constant 0 : index
    %76 = vector.load %arg6[%c0_34, %c0_35] : memref<72x16xbf16, #tpu.memory_space<vmem>>, vector<72x16xbf16>
    %cst_36 = arith.constant dense<0.000000e+00> : vector<256x16xf32>
    %77 = tpu.matmul %75, %76, %cst_36 {dimension_numbers = #tpu.dot_dimension_numbers<[1], [0], [0], [1], [0, 0, 1, 1], [], []>} : vector<256x72xbf16>, vector<72x16xbf16>, vector<256x16xf32> -> vector<256x16xf32>
    %c0_37 = arith.constant 0 : index
    %c0_38 = arith.constant 0 : index
    %78 = vector.load %arg7[%c0_37, %c0_38] : memref<1x16xf32, #tpu.memory_space<vmem>>, vector<1x16xf32>
    %79 = vector.broadcast %78 : vector<1x16xf32> to vector<256x16xf32>
    %80 = arith.addf %77, %79 : vector<256x16xf32>
    %cst_39 = arith.constant 1.000000e-01 : f32
    %81 = vector.broadcast %cst_39 : f32 to vector<256x16xf32>
    %82 = arith.mulf %81, %80 : vector<256x16xf32>
    %83 = arith.addf %14, %82 : vector<256x16xf32>
    %cst_40 = arith.constant 0.000000e+00 : f32
    %84 = vector.broadcast %cst_40 : f32 to vector<256x16xf32>
    %85 = arith.cmpf ogt, %83, %84 : vector<256x16xf32>
    %cst_41 = arith.constant 2.000000e-01 : f32
    %86 = vector.broadcast %cst_41 : f32 to vector<256x16xf32>
    %87 = arith.mulf %86, %83 : vector<256x16xf32>
    %88 = arith.select %85, %83, %87 : vector<256x16xi1>, vector<256x16xf32>
    %89 = arith.truncf %88 : vector<256x16xf32> to vector<256x16xbf16>
    %c0_42 = arith.constant 0 : index
    %c0_43 = arith.constant 0 : index
    %90 = vector.load %arg8[%c0_42, %c0_43] : memref<16x256xbf16, #tpu.memory_space<vmem>>, vector<16x256xbf16>
    %cst_44 = arith.constant dense<0.000000e+00> : vector<256x256xf32>
    %91 = tpu.matmul %89, %90, %cst_44 {dimension_numbers = #tpu.dot_dimension_numbers<[1], [0], [0], [1], [0, 0, 1, 1], [], []>} : vector<256x16xbf16>, vector<16x256xbf16>, vector<256x256xf32> -> vector<256x256xf32>
    %c0_45 = arith.constant 0 : index
    %c0_46 = arith.constant 0 : index
    %92 = vector.load %arg9[%c0_45, %c0_46] : memref<1x256xf32, #tpu.memory_space<vmem>>, vector<1x256xf32>
    %93 = vector.broadcast %92 : vector<1x256xf32> to vector<256x256xf32>
    %94 = arith.addf %91, %93 : vector<256x256xf32>
    %95 = tpu.transpose %94, [1, 0] : vector<256x256xf32> -> vector<256x256xf32>
    %c0_47 = arith.constant 0 : index
    %c0_48 = arith.constant 0 : index
    %c0_49 = arith.constant 0 : index
    %96 = vector.load %arg10[%c0_47, %c0_48, %c0_49] : memref<1x256x256xf32, #tpu.memory_space<vmem>>, vector<1x256x256xf32>
    %97 = vector.shape_cast %96 : vector<1x256x256xf32> to vector<256x256xf32>
    %98 = vector.shape_cast %95 : vector<256x256xf32> to vector<1x256x256xf32>
    tpu.vector_store %arg10[%c0_47, %c0_48, %c0_49], %98 {strides = array<i32>} : memref<1x256x256xf32, #tpu.memory_space<vmem>>, vector<1x256x256xf32>,
    return
  }
  func.func @transform_0(%arg0: i32) -> (i32, i32, i32) {
    %c0_i32 = arith.constant 0 : i32
    %c0_i32_0 = arith.constant 0 : i32
    %c0_i32_1 = arith.constant 0 : i32
    return %arg0, %c0_i32, %c0_i32_0 : i32, i32, i32
  }
  func.func @transform_1(%arg0: i32) -> (i32, i32) {
    %c0_i32 = arith.constant 0 : i32
    %c0_i32_0 = arith.constant 0 : i32
    %c0_i32_1 = arith.constant 0 : i32
    return %c0_i32, %c0_i32_0 : i32, i32
  }
  func.func @transform_2(%arg0: i32) -> (i32, i32) {
    %c0_i32 = arith.constant 0 : i32
    %c0_i32_0 = arith.constant 0 : i32
    %c0_i32_1 = arith.constant 0 : i32
    return %c0_i32, %c0_i32_0 : i32, i32
  }
  func.func @transform_3(%arg0: i32) -> (i32, i32) {
    %c0_i32 = arith.constant 0 : i32
    %c0_i32_0 = arith.constant 0 : i32
    %c0_i32_1 = arith.constant 0 : i32
    return %c0_i32, %c0_i32_0 : i32, i32
  }
  func.func @transform_4(%arg0: i32) -> (i32, i32) {
    %c0_i32 = arith.constant 0 : i32
    %c0_i32_0 = arith.constant 0 : i32
    %c0_i32_1 = arith.constant 0 : i32
    return %c0_i32, %c0_i32_0 : i32, i32
  }
  func.func @transform_5(%arg0: i32) -> (i32, i32) {
    %c0_i32 = arith.constant 0 : i32
    %c0_i32_0 = arith.constant 0 : i32
    %c0_i32_1 = arith.constant 0 : i32
    return %c0_i32, %c0_i32_0 : i32, i32
  }
  func.func @transform_6(%arg0: i32) -> (i32, i32) {
    %c0_i32 = arith.constant 0 : i32
    %c0_i32_0 = arith.constant 0 : i32
    %c0_i32_1 = arith.constant 0 : i32
    return %c0_i32, %c0_i32_0 : i32, i32
  }
  func.func @transform_7(%arg0: i32) -> (i32, i32) {
    %c0_i32 = arith.constant 0 : i32
    %c0_i32_0 = arith.constant 0 : i32
    %c0_i32_1 = arith.constant 0 : i32
    return %c0_i32, %c0_i32_0 : i32, i32
  }
  func.func @transform_8(%arg0: i32) -> (i32, i32) {
    %c0_i32 = arith.constant 0 : i32
    %c0_i32_0 = arith.constant 0 : i32
    %c0_i32_1 = arith.constant 0 : i32
    return %c0_i32, %c0_i32_0 : i32, i32
  }
  func.func @transform_9(%arg0: i32) -> (i32, i32, i32) {
    %c0_i32 = arith.constant 0 : i32
    %c0_i32_0 = arith.constant 0 : i32
    %c0_i32_1 = arith.constant 0 : i32
    return %arg0, %c0_i32, %c0_i32_0 : i32, i32, i32
  }
}

</mosaic_0001>

<llo_original>
// kernel: _lambda_.1
$region0: #{_lambda_.1}
  #allocation0 [shape = 'u32[]', space=smem, size = 0x4, offset = 0x4, fixed_abs, tag = 'smem constant byte address 0x4 - core index']
  #allocation1 [shape = 'u32[72,128]{1,0:T(1,128)}', space=vmem, size = 0x9000, scoped, tag = 'internal scratch']
  #allocation2 [shape = 'f32[18,18,8]{2,1,0:T(8,128)}', space=vmem, size = 0x36000, scoped, tag = 'scratch operand']
  #allocation3 [shape = 'f32[18,18,8]{2,1,0:T(8,128)}', space=vmem, size = 0x36000, scoped, tag = 'scratch operand']
  %s0 = inlined_call_operand.vmem [shape: f32[2,128,256], index: 0, kind: input, shape index: {}]
  %s1 = inlined_call_operand.vmem [shape: bf16[128,24], index: 1, kind: input, shape index: {}]
  %s2 = inlined_call_operand.vmem [shape: f32[1,24], index: 2, kind: input, shape index: {}]
  %s3 = inlined_call_operand.vmem [shape: bf16[72,8], index: 3, kind: input, shape index: {}]
  %s4 = inlined_call_operand.vmem [shape: f32[1,8], index: 4, kind: input, shape index: {}]
  %s5 = inlined_call_operand.vmem [shape: bf16[72,16], index: 5, kind: input, shape index: {}]
  %s6 = inlined_call_operand.vmem [shape: f32[1,16], index: 6, kind: input, shape index: {}]
  %s7 = inlined_call_operand.vmem [shape: bf16[16,256], index: 7, kind: input, shape index: {}]
  %s8 = inlined_call_operand.vmem [shape: f32[1,256], index: 8, kind: input, shape index: {}]
  %s9 = inlined_call_operand.vmem [shape: f32[2,256,256], index: 9, kind: output, shape index: {}]
  %s10 = sld [smem:[#allocation0]]
  $region69: #{_lambda_.1} parent=0
    _
  %s12 = ssub.s32 1, %s10
  %s13 = scalar_select 0, %s12, %s10
  loop: start=0, step=1, limit=4
  $region2: #{_lambda_.1} parent=0 // loop_pre_header
    _
  $region3: #{_lambda_.1} parent=0 // loop_header
    %s15 = sphi 0, %s19
    %p16 = scmp.ge.s32.totalorder %s15, 4
    %s25 = sphi 0, %s27
    %s28 = sphi 0, %s25
    %s29 = sphi 0, %s28
    %s45 = sphi 0, %s29
    %s49 = sphi 0, %s49
    %s51 = sphi 0, %s49
    %s52 = sphi 0, %s51
    %s66 = sphi 0, %s52
    %s70 = sphi 0, %s70
    %s72 = sphi 0, %s70
    %s73 = sphi 0, %s72
    %s87 = sphi 0, %s73
    %s91 = sphi 0, %s91
    %s93 = sphi 0, %s91
    %s94 = sphi 0, %s93
    %s108 = sphi 0, %s94
    %s112 = sphi 0, %s112
    %s114 = sphi 0, %s112
    %s115 = sphi 0, %s114
    %s129 = sphi 0, %s115
    %s133 = sphi 0, %s133
    %s135 = sphi 0, %s133
    %s136 = sphi 0, %s135
    %s150 = sphi 0, %s136
    %s154 = sphi 0, %s154
    %s156 = sphi 0, %s154
    %s157 = sphi 0, %s156
    %s171 = sphi 0, %s157
    %s175 = sphi 0, %s175
    %s177 = sphi 0, %s175
    %s178 = sphi 0, %s177
    %s192 = sphi 0, %s178
    %s196 = sphi 0, %s196
    %s198 = sphi 0, %s196
    %s199 = sphi 0, %s198
    %s213 = sphi 0, %s199
    %s219 = sphi 0, %s221
    %s222 = sphi 0, %s219
    %s223 = sphi 0, %s222
    %s239 = sphi 0, %s223
  $region4: #{_lambda_.1} parent=0 // loop_header_branch
    %18 = sbr.rel (%p16) target = $region8
  $region5: #{_lambda_.1} parent=0 // loop_body
    %s20 = ssub.s32 %s15, 1
    %s21 = ssub.s32 %s15, 2
    %s22 = sadd.s32 %s15, 1
    %s23 = ssub.s32 %s15, %s22
    %p24 = scmp.eq.s32.totalorder %s23, 0
    %s26 = sadd.s32 %s25, 1
    %s27 = scalar_select %p24, %s25, %s26
    %p30 = pneg %p24
    %p31 = scmp.eq.s32.totalorder %s15, 1
    %p32 = por %p30, %p31
    %p33 = scmp.ne.s32.totalorder %s25, %s28
    %p34 = scmp.eq.s32.totalorder %s15, 0
    %p35 = por %p33, %p34
    %p36 = scmp.ne.s32.totalorder %s25, %s28
    %p37 = scmp.eq.s32.totalorder %s20, 1
    %p38 = por %p36, %p37
    %p39 = scmp.ne.s32.totalorder %s28, %s29
    %p40 = scmp.eq.s32.totalorder %s20, 0
    %p41 = por %p39, %p40
    %p42 = scmp.ne.s32.totalorder %s28, %s29
    %p43 = scmp.eq.s32.totalorder %s21, 1
    %p44 = por %p42, %p43
    %p46 = scmp.ne.s32.totalorder %s29, %s45
    %p47 = scmp.eq.s32.totalorder %s21, 0
    %p48 = por %p46, %p47
    %s50 = sadd.s32 %s49, 1
    %p53 = scmp.eq.s32.totalorder %s15, 1
    %p54 = scmp.ne.s32.totalorder %s49, %s51
    %p55 = scmp.eq.s32.totalorder %s15, 0
    %p56 = por %p54, %p55
    %p57 = scmp.ne.s32.totalorder %s49, %s51
    %p58 = scmp.eq.s32.totalorder %s20, 1
    %p59 = por %p57, %p58
    %p60 = scmp.ne.s32.totalorder %s51, %s52
    %p61 = scmp.eq.s32.totalorder %s20, 0
    %p62 = por %p60, %p61
    %p63 = scmp.ne.s32.totalorder %s51, %s52
    %p64 = scmp.eq.s32.totalorder %s21, 1
    %p65 = por %p63, %p64
    %p67 = scmp.ne.s32.totalorder %s52, %s66
    %p68 = scmp.eq.s32.totalorder %s21, 0
    %p69 = por %p67, %p68
    %s71 = sadd.s32 %s70, 1
    %p74 = scmp.eq.s32.totalorder %s15, 1
    %p75 = scmp.ne.s32.totalorder %s70, %s72
    %p76 = scmp.eq.s32.totalorder %s15, 0
    %p77 = por %p75, %p76
    %p78 = scmp.ne.s32.totalorder %s70, %s72
    %p79 = scmp.eq.s32.totalorder %s20, 1
    %p80 = por %p78, %p79
    %p81 = scmp.ne.s32.totalorder %s72, %s73
    %p82 = scmp.eq.s32.totalorder %s20, 0
    %p83 = por %p81, %p82
    %p84 = scmp.ne.s32.totalorder %s72, %s73
    %p85 = scmp.eq.s32.totalorder %s21, 1
    %p86 = por %p84, %p85
    %p88 = scmp.ne.s32.totalorder %s73, %s87
    %p89 = scmp.eq.s32.totalorder %s21, 0
    %p90 = por %p88, %p89
    %s92 = sadd.s32 %s91, 1
    %p95 = scmp.eq.s32.totalorder %s15, 1
    %p96 = scmp.ne.s32.totalorder %s91, %s93
    %p97 = scmp.eq.s32.totalorder %s15, 0
    %p98 = por %p96, %p97
    %p99 = scmp.ne.s32.totalorder %s91, %s93
    %p100 = scmp.eq.s32.totalorder %s20, 1
    %p101 = por %p99, %p100
    %p102 = scmp.ne.s32.totalorder %s93, %s94
    %p103 = scmp.eq.s32.totalorder %s20, 0
    %p104 = por %p102, %p103
    %p105 = scmp.ne.s32.totalorder %s93, %s94
    %p106 = scmp.eq.s32.totalorder %s21, 1
    %p107 = por %p105, %p106
    %p109 = scmp.ne.s32.totalorder %s94, %s108
    %p110 = scmp.eq.s32.totalorder %s21, 0
    %p111 = por %p109, %p110
    %s113 = sadd.s32 %s112, 1
    %p116 = scmp.eq.s32.totalorder %s15, 1
    %p117 = scmp.ne.s32.totalorder %s112, %s114
    %p118 = scmp.eq.s32.totalorder %s15, 0
    %p119 = por %p117, %p118
    %p120 = scmp.ne.s32.totalorder %s112, %s114
    %p121 = scmp.eq.s32.totalorder %s20, 1
    %p122 = por %p120, %p121
    %p123 = scmp.ne.s32.totalorder %s114, %s115
    %p124 = scmp.eq.s32.totalorder %s20, 0
    %p125 = por %p123, %p124
    %p126 = scmp.ne.s32.totalorder %s114, %s115
    %p127 = scmp.eq.s32.totalorder %s21, 1
    %p128 = por %p126, %p127
    %p130 = scmp.ne.s32.totalorder %s115, %s129
    %p131 = scmp.eq.s32.totalorder %s21, 0
    %p132 = por %p130, %p131
    %s134 = sadd.s32 %s133, 1
    %p137 = scmp.eq.s32.totalorder %s15, 1
    %p138 = scmp.ne.s32.totalorder %s133, %s135
    %p139 = scmp.eq.s32.totalorder %s15, 0
    %p140 = por %p138, %p139
    %p141 = scmp.ne.s32.totalorder %s133, %s135
    %p142 = scmp.eq.s32.totalorder %s20, 1
    %p143 = por %p141, %p142
    %p144 = scmp.ne.s32.totalorder %s135, %s136
    %p145 = scmp.eq.s32.totalorder %s20, 0
    %p146 = por %p144, %p145
    %p147 = scmp.ne.s32.totalorder %s135, %s136
    %p148 = scmp.eq.s32.totalorder %s21, 1
    %p149 = por %p147, %p148
    %p151 = scmp.ne.s32.totalorder %s136, %s150
    %p152 = scmp.eq.s32.totalorder %s21, 0
    %p153 = por %p151, %p152
    %s155 = sadd.s32 %s154, 1
    %p158 = scmp.eq.s32.totalorder %s15, 1
    %p159 = scmp.ne.s32.totalorder %s154, %s156
    %p160 = scmp.eq.s32.totalorder %s15, 0
    %p161 = por %p159, %p160
    %p162 = scmp.ne.s32.totalorder %s154, %s156
    %p163 = scmp.eq.s32.totalorder %s20, 1
    %p164 = por %p162, %p163
    %p165 = scmp.ne.s32.totalorder %s156, %s157
    %p166 = scmp.eq.s32.totalorder %s20, 0
    %p167 = por %p165, %p166
    %p168 = scmp.ne.s32.totalorder %s156, %s157
    %p169 = scmp.eq.s32.totalorder %s21, 1
    %p170 = por %p168, %p169
    %p172 = scmp.ne.s32.totalorder %s157, %s171
    %p173 = scmp.eq.s32.totalorder %s21, 0
    %p174 = por %p172, %p173
    %s176 = sadd.s32 %s175, 1
    %p179 = scmp.eq.s32.totalorder %s15, 1
    %p180 = scmp.ne.s32.totalorder %s175, %s177
    %p181 = scmp.eq.s32.totalorder %s15, 0
    %p182 = por %p180, %p181
    %p183 = scmp.ne.s32.totalorder %s175, %s177
    %p184 = scmp.eq.s32.totalorder %s20, 1
    %p185 = por %p183, %p184
    %p186 = scmp.ne.s32.totalorder %s177, %s178
    %p187 = scmp.eq.s32.totalorder %s20, 0
    %p188 = por %p186, %p187
    %p189 = scmp.ne.s32.totalorder %s177, %s178
    %p190 = scmp.eq.s32.totalorder %s21, 1
    %p191 = por %p189, %p190
    %p193 = scmp.ne.s32.totalorder %s178, %s192
    %p194 = scmp.eq.s32.totalorder %s21, 0
    %p195 = por %p193, %p194
    %s197 = sadd.s32 %s196, 1
    %p200 = scmp.eq.s32.totalorder %s15, 1
    %p201 = scmp.ne.s32.totalorder %s196, %s198
    %p202 = scmp.eq.s32.totalorder %s15, 0
    %p203 = por %p201, %p202
    %p204 = scmp.ne.s32.totalorder %s196, %s198
    %p205 = scmp.eq.s32.totalorder %s20, 1
    %p206 = por %p204, %p205
    %p207 = scmp.ne.s32.totalorder %s198, %s199
    %p208 = scmp.eq.s32.totalorder %s20, 0
    %p209 = por %p207, %p208
    %p210 = scmp.ne.s32.totalorder %s198, %s199
    %p211 = scmp.eq.s32.totalorder %s21, 1
    %p212 = por %p210, %p211
    %p214 = scmp.ne.s32.totalorder %s199, %s213
    %p215 = scmp.eq.s32.totalorder %s21, 0
    %p216 = por %p214, %p215
    %s217 = ssub.s32 %s15, %s22
    %p218 = scmp.eq.s32.totalorder %s217, 0
    %s220 = sadd.s32 %s219, 1
    %s221 = scalar_select %p218, %s219, %s220
    %p224 = pneg %p218
    %p225 = scmp.eq.s32.totalorder %s15, 1
    %p226 = por %p224, %p225
    %p227 = scmp.ne.s32.totalorder %s219, %s222
    %p228 = scmp.eq.s32.totalorder %s15, 0
    %p229 = por %p227, %p228
    %p230 = scmp.ne.s32.totalorder %s219, %s222
    %p231 = scmp.eq.s32.totalorder %s20, 1
    %p232 = por %p230, %p231
    %p233 = scmp.ne.s32.totalorder %s222, %s223
    %p234 = scmp.eq.s32.totalorder %s20, 0
    %p235 = por %p233, %p234
    %p236 = scmp.ne.s32.totalorder %s222, %s223
    %p237 = scmp.eq.s32.totalorder %s21, 1
    %p238 = por %p236, %p237
    %p240 = scmp.ne.s32.totalorder %s223, %s239
    %p241 = scmp.eq.s32.totalorder %s21, 0
    %p242 = por %p240, %p241
    %p243 = scmp.le.s32.totalorder 1, %s15
    %p244 = scmp.lt.s32.totalorder %s15, 3
    %p245 = pnand %p243, %p244
    %p246 = pneg %p245
    // Predicated region
    $region9: #{_lambda_.1} parent=5 // pred_check
      _
    $region10: #{_lambda_.1} parent=5 // pred_check_branch
      %248 = sbr.rel (%p245) target = $region12
    $region11: #{_lambda_.1} parent=5 // pred_region
      %s249 = ssub.s32 %s15, 1
      // Predicated region
      $region13: #{_lambda_.1} parent=11 // pred_check
        %p250 = pneg %p62
      $region14: #{_lambda_.1} parent=11 // pred_check_branch
        %252 = sbr.rel (%p250) target = $region16
      $region15: #{_lambda_.1} parent=11 // pred_region
        _
      $region16: #{_lambda_.1} parent=11 // pred_fallthru
        _
      // Predicated region
      $region17: #{_lambda_.1} parent=11 // pred_check
        %p253 = pneg %p83
      $region18: #{_lambda_.1} parent=11 // pred_check_branch
        %255 = sbr.rel (%p253) target = $region20
      $region19: #{_lambda_.1} parent=11 // pred_region
        _
      $region20: #{_lambda_.1} parent=11 // pred_fallthru
        _
      // Predicated region
      $region21: #{_lambda_.1} parent=11 // pred_check
        %p256 = pneg %p104
      $region22: #{_lambda_.1} parent=11 // pred_check_branch
        %258 = sbr.rel (%p256) target = $region24
      $region23: #{_lambda_.1} parent=11 // pred_region
        _
      $region24: #{_lambda_.1} parent=11 // pred_fallthru
        _
      // Predicated region
      $region25: #{_lambda_.1} parent=11 // pred_check
        %p259 = pneg %p125
      $region26: #{_lambda_.1} parent=11 // pred_check_branch
        %261 = sbr.rel (%p259) target = $region28
      $region27: #{_lambda_.1} parent=11 // pred_region
        _
      $region28: #{_lambda_.1} parent=11 // pred_fallthru
        _
      // Predicated region
      $region29: #{_lambda_.1} parent=11 // pred_check
        %p262 = pneg %p146
      $region30: #{_lambda_.1} parent=11 // pred_check_branch
        %264 = sbr.rel (%p262) target = $region32
      $region31: #{_lambda_.1} parent=11 // pred_region
        _
      $region32: #{_lambda_.1} parent=11 // pred_fallthru
        _
      // Predicated region
      $region33: #{_lambda_.1} parent=11 // pred_check
        %p265 = pneg %p167
      $region34: #{_lambda_.1} parent=11 // pred_check_branch
        %267 = sbr.rel (%p265) target = $region36
      $region35: #{_lambda_.1} parent=11 // pred_region
        _
      $region36: #{_lambda_.1} parent=11 // pred_fallthru
        _
      // Predicated region
      $region37: #{_lambda_.1} parent=11 // pred_check
        %p268 = pneg %p188
      $region38: #{_lambda_.1} parent=11 // pred_check_branch
        %270 = sbr.rel (%p268) target = $region40
      $region39: #{_lambda_.1} parent=11 // pred_region
        _
      $region40: #{_lambda_.1} parent=11 // pred_fallthru
        _
      // Predicated region
      $region41: #{_lambda_.1} parent=11 // pred_check
        %p271 = pneg %p209
      $region42: #{_lambda_.1} parent=11 // pred_check_branch
        %273 = sbr.rel (%p271) target = $region44
      $region43: #{_lambda_.1} parent=11 // pred_region
        _
      $region44: #{_lambda_.1} parent=11 // pred_fallthru
        _
    $region12: #{_lambda_.1} parent=5 // pred_fallthru
      _
    %p274 = scmp.lt.s32.totalorder %s15, 2
    // Predicated region
    $region45: #{_lambda_.1} parent=5 // pred_check
      %p275 = pneg %p274
    $region46: #{_lambda_.1} parent=5 // pred_check_branch
      %277 = sbr.rel (%p275) target = $region48
    $region47: #{_lambda_.1} parent=5 // pred_region
      // Predicated region
      $region49: #{_lambda_.1} parent=47 // pred_check
        %p278 = pneg %p35
      $region50: #{_lambda_.1} parent=47 // pred_check_branch
        %280 = sbr.rel (%p278) target = $region52
      $region51: #{_lambda_.1} parent=47 // pred_region
        %p281 = scmp.lt.s32.totalorder %s15, 1
        %s282 = scalar_select %p281, %s15, 1
        %s283 = smul.addr %s282, 32
        %s284 = smul.addr %s283, 8
        %s285 = scalar_lea.vmem %s0, %s284
      $region52: #{_lambda_.1} parent=47 // pred_fallthru
        _
    $region48: #{_lambda_.1} parent=5 // pred_fallthru
      _
    %p286 = scmp.le.s32.totalorder 1, %s15
    %p287 = scmp.lt.s32.totalorder %s15, 3
    %p288 = pnand %p286, %p287
    %p289 = pneg %p288
    // Predicated region
    $region53: #{_lambda_.1} parent=5 // pred_check
      _
    $region54: #{_lambda_.1} parent=5 // pred_check_branch
      %291 = sbr.rel (%p288) target = $region56
    $region55: #{_lambda_.1} parent=5 // pred_region
      %s292 = ssub.s32 %s15, 1
      %p293 = scmp.lt.s32.totalorder %s20, 1
      %s294 = scalar_select %p293, %s20, 1
      %s295 = smul.addr %s294, 32
      %s296 = smul.addr %s295, 8
      %s297 = scalar_lea.vmem %s0, %s296
      %p298 = pneg %p41
      %p299 = pneg %p38
      %p300 = pneg %p62
      %p301 = pneg %p59
      %p302 = pneg %p83
      %p303 = pneg %p80
      %p304 = pneg %p104
      %p305 = pneg %p101
      %p306 = pneg %p125
      %p307 = pneg %p122
      %p308 = pneg %p146
      %p309 = pneg %p143
      %p310 = pneg %p167
      %p311 = pneg %p164
      %p312 = pneg %p188
      %p313 = pneg %p185
      %p314 = pneg %p209
      %p315 = pneg %p206
      %p316 = pneg %p235
      %p317 = pneg %p232
      %p318 = scmp.lt.s32.totalorder %s20, 1
      %s319 = scalar_select %p318, %s20, 1
      %s320 = smul.addr %s319, 64
      %s321 = smul.addr %s320, 8
      %s322 = scalar_lea.vmem %s9, %s321
      %p323 = scmp.lt.s32.totalorder %s20, 1
      %s324 = scalar_select %p323, %s20, 1
      %s325 = smul.addr %s324, 32
      %s326 = smul.addr %s325, 8
      %s327 = scalar_lea.vmem %s0, %s326
      %p328 = scmp.lt.s32.totalorder %s20, 1
      %s329 = scalar_select %p328, %s20, 1
      %s330 = smul.addr %s329, 64
      %s331 = smul.addr %s330, 8
      %s332 = scalar_lea.vmem %s9, %s331
      %vm334 = vcmask 64512
      %335 = vst.msk [vmem:[#allocation2] sm:$0xff] %vm334, 0.0
      %336 = vst.msk [vmem:[#allocation2 + $0x8] sm:$0xff] %vm334, 0.0
      %vm337 = vcmask 58368
      %338 = vst.msk [vmem:[#allocation2 + $0x10] sm:$0x3] %vm337, 0.0
      %339 = vst.msk [vmem:[#allocation2 + $0x18] sm:$0xff] %vm334, 0.0
      %340 = vst.msk [vmem:[#allocation2 + $0x20] sm:$0xff] %vm334, 0.0
      %341 = vst.msk [vmem:[#allocation2 + $0x28] sm:$0x3] %vm337, 0.0
      %342 = vst.msk [vmem:[#allocation2 + $0x30] sm:$0xff] %vm334, 0.0
      %343 = vst.msk [vmem:[#allocation2 + $0x38] sm:$0xff] %vm334, 0.0
      %344 = vst.msk [vmem:[#allocation2 + $0x40] sm:$0x3] %vm337, 0.0
      %345 = vst.msk [vmem:[#allocation2 + $0x48] sm:$0xff] %vm334, 0.0
      %346 = vst.msk [vmem:[#allocation2 + $0x50] sm:$0xff] %vm334, 0.0
      %347 = vst.msk [vmem:[#allocation2 + $0x58] sm:$0x3] %vm337, 0.0
      %348 = vst.msk [vmem:[#allocation2 + $0x60] sm:$0xff] %vm334, 0.0
      %349 = vst.msk [vmem:[#allocation2 + $0x68] sm:$0xff] %vm334, 0.0
      %350 = vst.msk [vmem:[#allocation2 + $0x70] sm:$0x3] %vm337, 0.0
      %351 = vst.msk [vmem:[#allocation2 + $0x78] sm:$0xff] %vm334, 0.0
      %352 = vst.msk [vmem:[#allocation2 + $0x80] sm:$0xff] %vm334, 0.0
      %353 = vst.msk [vmem:[#allocation2 + $0x88] sm:$0x3] %vm337, 0.0
      %354 = vst.msk [vmem:[#allocation2 + $0x90] sm:$0xff] %vm334, 0.0
      %355 = vst.msk [vmem:[#allocation2 + $0x98] sm:$0xff] %vm334, 0.0
      %356 = vst.msk [vmem:[#allocation2 + $0xa0] sm:$0x3] %vm337, 0.0
      %357 = vst.msk [vmem:[#allocation2 + $0xa8] sm:$0xff] %vm334, 0.0
      %358 = vst.msk [vmem:[#allocation2 + $0xb0] sm:$0xff] %vm334, 0.0
      %359 = vst.msk [vmem:[#allocation2 + $0xb8] sm:$0x3] %vm337, 0.0
      %360 = vst.msk [vmem:[#allocation2 + $0xc0] sm:$0xff] %vm334, 0.0
      %361 = vst.msk [vmem:[#allocation2 + $0xc8] sm:$0xff] %vm334, 0.0
      %362 = vst.msk [vmem:[#allocation2 + $0xd0] sm:$0x3] %vm337, 0.0
      %363 = vst.msk [vmem:[#allocation2 + $0xd8] sm:$0xff] %vm334, 0.0
      %364 = vst.msk [vmem:[#allocation2 + $0xe0] sm:$0xff] %vm334, 0.0
      %365 = vst.msk [vmem:[#allocation2 + $0xe8] sm:$0x3] %vm337, 0.0
      %366 = vst.msk [vmem:[#allocation2 + $0xf0] sm:$0xff] %vm334, 0.0
      %367 = vst.msk [vmem:[#allocation2 + $0xf8] sm:$0xff] %vm334, 0.0
      %368 = vst.msk [vmem:[#allocation2 + $0x100] sm:$0x3] %vm337, 0.0
      %369 = vst.msk [vmem:[#allocation2 + $0x108] sm:$0xff] %vm334, 0.0
      %370 = vst.msk [vmem:[#allocation2 + $0x110] sm:$0xff] %vm334, 0.0
      %371 = vst.msk [vmem:[#allocation2 + $0x118] sm:$0x3] %vm337, 0.0
      %372 = vst.msk [vmem:[#allocation2 + $0x120] sm:$0xff] %vm334, 0.0
      %373 = vst.msk [vmem:[#allocation2 + $0x128] sm:$0xff] %vm334, 0.0
      %374 = vst.msk [vmem:[#allocation2 + $0x130] sm:$0x3] %vm337, 0.0
      %375 = vst.msk [vmem:[#allocation2 + $0x138] sm:$0xff] %vm334, 0.0
      %376 = vst.msk [vmem:[#allocation2 + $0x140] sm:$0xff] %vm334, 0.0
      %377 = vst.msk [vmem:[#allocation2 + $0x148] sm:$0x3] %vm337, 0.0
      %378 = vst.msk [vmem:[#allocation2 + $0x150] sm:$0xff] %vm334, 0.0
      %379 = vst.msk [vmem:[#allocation2 + $0x158] sm:$0xff] %vm334, 0.0
      %380 = vst.msk [vmem:[#allocation2 + $0x160] sm:$0x3] %vm337, 0.0
      %381 = vst.msk [vmem:[#allocation2 + $0x168] sm:$0xff] %vm334, 0.0
      %382 = vst.msk [vmem:[#allocation2 + $0x170] sm:$0xff] %vm334, 0.0
      %383 = vst.msk [vmem:[#allocation2 + $0x178] sm:$0x3] %vm337, 0.0
      %384 = vst.msk [vmem:[#allocation2 + $0x180] sm:$0xff] %vm334, 0.0
      %385 = vst.msk [vmem:[#allocation2 + $0x188] sm:$0xff] %vm334, 0.0
      %386 = vst.msk [vmem:[#allocation2 + $0x190] sm:$0x3] %vm337, 0.0
      %387 = vst.msk [vmem:[#allocation2 + $0x198] sm:$0xff] %vm334, 0.0
      %388 = vst.msk [vmem:[#allocation2 + $0x1a0] sm:$0xff] %vm334, 0.0
      %389 = vst.msk [vmem:[#allocation2 + $0x1a8] sm:$0x3] %vm337, 0.0
      %390 = vst.msk [vmem:[#allocation3] sm:$0xff] %vm334, 0.0
      %391 = vst.msk [vmem:[#allocation3 + $0x8] sm:$0xff] %vm334, 0.0
      %392 = vst.msk [vmem:[#allocation3 + $0x10] sm:$0x3] %vm337, 0.0
      %393 = vst.msk [vmem:[#allocation3 + $0x18] sm:$0xff] %vm334, 0.0
      %394 = vst.msk [vmem:[#allocation3 + $0x20] sm:$0xff] %vm334, 0.0
      %395 = vst.msk [vmem:[#allocation3 + $0x28] sm:$0x3] %vm337, 0.0
      %396 = vst.msk [vmem:[#allocation3 + $0x30] sm:$0xff] %vm334, 0.0
      %397 = vst.msk [vmem:[#allocation3 + $0x38] sm:$0xff] %vm334, 0.0
      %398 = vst.msk [vmem:[#allocation3 + $0x40] sm:$0x3] %vm337, 0.0
      %399 = vst.msk [vmem:[#allocation3 + $0x48] sm:$0xff] %vm334, 0.0
      %400 = vst.msk [vmem:[#allocation3 + $0x50] sm:$0xff] %vm334, 0.0
      %401 = vst.msk [vmem:[#allocation3 + $0x58] sm:$0x3] %vm337, 0.0
      %402 = vst.msk [vmem:[#allocation3 + $0x60] sm:$0xff] %vm334, 0.0
      %403 = vst.msk [vmem:[#allocation3 + $0x68] sm:$0xff] %vm334, 0.0
      %404 = vst.msk [vmem:[#allocation3 + $0x70] sm:$0x3] %vm337, 0.0
      %405 = vst.msk [vmem:[#allocation3 + $0x78] sm:$0xff] %vm334, 0.0
      %406 = vst.msk [vmem:[#allocation3 + $0x80] sm:$0xff] %vm334, 0.0
      %407 = vst.msk [vmem:[#allocation3 + $0x88] sm:$0x3] %vm337, 0.0
      %408 = vst.msk [vmem:[#allocation3 + $0x90] sm:$0xff] %vm334, 0.0
      %409 = vst.msk [vmem:[#allocation3 + $0x98] sm:$0xff] %vm334, 0.0
      %410 = vst.msk [vmem:[#allocation3 + $0xa0] sm:$0x3] %vm337, 0.0
      %411 = vst.msk [vmem:[#allocation3 + $0xa8] sm:$0xff] %vm334, 0.0
      %412 = vst.msk [vmem:[#allocation3 + $0xb0] sm:$0xff] %vm334, 0.0
      %413 = vst.msk [vmem:[#allocation3 + $0xb8] sm:$0x3] %vm337, 0.0
      %414 = vst.msk [vmem:[#allocation3 + $0xc0] sm:$0xff] %vm334, 0.0
      %415 = vst.msk [vmem:[#allocation3 + $0xc8] sm:$0xff] %vm334, 0.0
      %416 = vst.msk [vmem:[#allocation3 + $0xd0] sm:$0x3] %vm337, 0.0
      %417 = vst.msk [vmem:[#allocation3 + $0xd8] sm:$0xff] %vm334, 0.0
      %418 = vst.msk [vmem:[#allocation3 + $0xe0] sm:$0xff] %vm334, 0.0
      %419 = vst.msk [vmem:[#allocation3 + $0xe8] sm:$0x3] %vm337, 0.0
      %420 = vst.msk [vmem:[#allocation3 + $0xf0] sm:$0xff] %vm334, 0.0
      %421 = vst.msk [vmem:[#allocation3 + $0xf8] sm:$0xff] %vm334, 0.0
      %422 = vst.msk [vmem:[#allocation3 + $0x100] sm:$0x3] %vm337, 0.0
      %423 = vst.msk [vmem:[#allocation3 + $0x108] sm:$0xff] %vm334, 0.0
      %424 = vst.msk [vmem:[#allocation3 + $0x110] sm:$0xff] %vm334, 0.0
      %425 = vst.msk [vmem:[#allocation3 + $0x118] sm:$0x3] %vm337, 0.0
      %426 = vst.msk [vmem:[#allocation3 + $0x120] sm:$0xff] %vm334, 0.0
      %427 = vst.msk [vmem:[#allocation3 + $0x128] sm:$0xff] %vm334, 0.0
      %428 = vst.msk [vmem:[#allocation3 + $0x130] sm:$0x3] %vm337, 0.0
      %429 = vst.msk [vmem:[#allocation3 + $0x138] sm:$0xff] %vm334, 0.0
      %430 = vst.msk [vmem:[#allocation3 + $0x140] sm:$0xff] %vm334, 0.0
      %431 = vst.msk [vmem:[#allocation3 + $0x148] sm:$0x3] %vm337, 0.0
      %432 = vst.msk [vmem:[#allocation3 + $0x150] sm:$0xff] %vm334, 0.0
      %433 = vst.msk [vmem:[#allocation3 + $0x158] sm:$0xff] %vm334, 0.0
      %434 = vst.msk [vmem:[#allocation3 + $0x160] sm:$0x3] %vm337, 0.0
      %435 = vst.msk [vmem:[#allocation3 + $0x168] sm:$0xff] %vm334, 0.0
      %436 = vst.msk [vmem:[#allocation3 + $0x170] sm:$0xff] %vm334, 0.0
      %437 = vst.msk [vmem:[#allocation3 + $0x178] sm:$0x3] %vm337, 0.0
      %438 = vst.msk [vmem:[#allocation3 + $0x180] sm:$0xff] %vm334, 0.0
      %439 = vst.msk [vmem:[#allocation3 + $0x188] sm:$0xff] %vm334, 0.0
      %440 = vst.msk [vmem:[#allocation3 + $0x190] sm:$0x3] %vm337, 0.0
      %441 = vst.msk [vmem:[#allocation3 + $0x198] sm:$0xff] %vm334, 0.0
      %442 = vst.msk [vmem:[#allocation3 + $0x1a0] sm:$0xff] %vm334, 0.0
      %443 = vst.msk [vmem:[#allocation3 + $0x1a8] sm:$0x3] %vm337, 0.0
      %v444 = vld [vmem:[%s327] sm:$0xff]
      %v445 = vld [vmem:[%s327 + $0x8] sm:$0xff]
      %v446 = vld [vmem:[%s327 + $0x10] sm:$0xff]
      %v447 = vld [vmem:[%s327 + $0x18] sm:$0xff]
      %v448 = vld [vmem:[%s327 + $0x20] sm:$0xff]
      %v449 = vld [vmem:[%s327 + $0x28] sm:$0xff]
      %v450 = vld [vmem:[%s327 + $0x30] sm:$0xff]
      %v451 = vld [vmem:[%s327 + $0x38] sm:$0xff]
      %v452 = vld [vmem:[%s327 + $0x40] sm:$0xff]
      %v453 = vld [vmem:[%s327 + $0x48] sm:$0xff]
      %v454 = vld [vmem:[%s327 + $0x50] sm:$0xff]
      %v455 = vld [vmem:[%s327 + $0x58] sm:$0xff]
      %v456 = vld [vmem:[%s327 + $0x60] sm:$0xff]
      %v457 = vld [vmem:[%s327 + $0x68] sm:$0xff]
      %v458 = vld [vmem:[%s327 + $0x70] sm:$0xff]
      %v459 = vld [vmem:[%s327 + $0x78] sm:$0xff]
      %v460 = vld [vmem:[%s327 + $0x80] sm:$0xff]
      %v461 = vld [vmem:[%s327 + $0x88] sm:$0xff]
      %v462 = vld [vmem:[%s327 + $0x90] sm:$0xff]
      %v463 = vld [vmem:[%s327 + $0x98] sm:$0xff]
      %v464 = vld [vmem:[%s327 + $0xa0] sm:$0xff]
      %v465 = vld [vmem:[%s327 + $0xa8] sm:$0xff]
      %v466 = vld [vmem:[%s327 + $0xb0] sm:$0xff]
      %v467 = vld [vmem:[%s327 + $0xb8] sm:$0xff]
      %v468 = vld [vmem:[%s327 + $0xc0] sm:$0xff]
      %v469 = vld [vmem:[%s327 + $0xc8] sm:$0xff]
      %v470 = vld [vmem:[%s327 + $0xd0] sm:$0xff]
      %v471 = vld [vmem:[%s327 + $0xd8] sm:$0xff]
      %v472 = vld [vmem:[%s327 + $0xe0] sm:$0xff]
      %v473 = vld [vmem:[%s327 + $0xe8] sm:$0xff]
      %v474 = vld [vmem:[%s327 + $0xf0] sm:$0xff]
      %v475 = vld [vmem:[%s327 + $0xf8] sm:$0xff]
      %476 = vxpose.xlu0.b32.start [1/16] %v444, 128
      %477 = vxpose.xlu0.b32.cont [2/16] %v446, 128
      %478 = vxpose.xlu0.b32.cont [3/16] %v448, 128
      %479 = vxpose.xlu0.b32.cont [4/16] %v450, 128
      %480 = vxpose.xlu0.b32.cont [5/16] %v452, 128
      %481 = vxpose.xlu0.b32.cont [6/16] %v454, 128
      %482 = vxpose.xlu0.b32.cont [7/16] %v456, 128
      %483 = vxpose.xlu0.b32.cont [8/16] %v458, 128
      %484 = vxpose.xlu0.b32.cont [9/16] %v460, 128
      %485 = vxpose.xlu0.b32.cont [10/16] %v462, 128
      %486 = vxpose.xlu0.b32.cont [11/16] %v464, 128
      %487 = vxpose.xlu0.b32.cont [12/16] %v466, 128
      %488 = vxpose.xlu0.b32.cont [13/16] %v468, 128
      %489 = vxpose.xlu0.b32.cont [14/16] %v470, 128
      %490 = vxpose.xlu0.b32.cont [15/16] %v472, 128
      %491 = vxpose.xlu0.b32.end [16/16] %v474, 128
      %v492 = vpop.trf.xlu0
      %v493 = vpop.trf.xlu0
      %v494 = vpop.trf.xlu0
      %v495 = vpop.trf.xlu0
      %v496 = vpop.trf.xlu0
      %v497 = vpop.trf.xlu0
      %v498 = vpop.trf.xlu0
      %v499 = vpop.trf.xlu0
      %v500 = vpop.trf.xlu0
      %v501 = vpop.trf.xlu0
      %v502 = vpop.trf.xlu0
      %v503 = vpop.trf.xlu0
      %v504 = vpop.trf.xlu0
      %v505 = vpop.trf.xlu0
      %v506 = vpop.trf.xlu0
      %v507 = vpop.trf.xlu0
      %508 = vxpose.xlu0.b32.start [1/16] %v445, 128
      %509 = vxpose.xlu0.b32.cont [2/16] %v447, 128
      %510 = vxpose.xlu0.b32.cont [3/16] %v449, 128
      %511 = vxpose.xlu0.b32.cont [4/16] %v451, 128
      %512 = vxpose.xlu0.b32.cont [5/16] %v453, 128
      %513 = vxpose.xlu0.b32.cont [6/16] %v455, 128
      %514 = vxpose.xlu0.b32.cont [7/16] %v457, 128
      %515 = vxpose.xlu0.b32.cont [8/16] %v459, 128
      %516 = vxpose.xlu0.b32.cont [9/16] %v461, 128
      %517 = vxpose.xlu0.b32.cont [10/16] %v463, 128
      %518 = vxpose.xlu0.b32.cont [11/16] %v465, 128
      %519 = vxpose.xlu0.b32.cont [12/16] %v467, 128
      %520 = vxpose.xlu0.b32.cont [13/16] %v469, 128
      %521 = vxpose.xlu0.b32.cont [14/16] %v471, 128
      %522 = vxpose.xlu0.b32.cont [15/16] %v473, 128
      %523 = vxpose.xlu0.b32.end [16/16] %v475, 128
      %v524 = vpop.trf.xlu0
      %v525 = vpop.trf.xlu0
      %v526 = vpop.trf.xlu0
      %v527 = vpop.trf.xlu0
      %v528 = vpop.trf.xlu0
      %v529 = vpop.trf.xlu0
      %v530 = vpop.trf.xlu0
      %v531 = vpop.trf.xlu0
      %v532 = vpop.trf.xlu0
      %v533 = vpop.trf.xlu0
      %v534 = vpop.trf.xlu0
      %v535 = vpop.trf.xlu0
      %v536 = vpop.trf.xlu0
      %v537 = vpop.trf.xlu0
      %v538 = vpop.trf.xlu0
      %v539 = vpop.trf.xlu0
      %v540 = vpack.c.bf16 %v493, %v492
      %v541 = vpack.c.bf16 %v495, %v494
      %v542 = vpack.c.bf16 %v497, %v496
      %v543 = vpack.c.bf16 %v499, %v498
      %v544 = vpack.c.bf16 %v501, %v500
      %v545 = vpack.c.bf16 %v503, %v502
      %v546 = vpack.c.bf16 %v505, %v504
      %v547 = vpack.c.bf16 %v507, %v506
      %v548 = vpack.c.bf16 %v525, %v524
      %v549 = vpack.c.bf16 %v527, %v526
      %v550 = vpack.c.bf16 %v529, %v528
      %v551 = vpack.c.bf16 %v531, %v530
      %v552 = vpack.c.bf16 %v533, %v532
      %v553 = vpack.c.bf16 %v535, %v534
      %v554 = vpack.c.bf16 %v537, %v536
      %v555 = vpack.c.bf16 %v539, %v538
      %v556 = vld [vmem:[%s1] sm:$0xf]
      %v557 = vld [vmem:[%s1 + $0x4] sm:$0xf]
      %v558 = vld [vmem:[%s1 + $0x8] sm:$0xf]
      %v559 = vld [vmem:[%s1 + $0xc] sm:$0xf]
      %v560 = vld [vmem:[%s1 + $0x10] sm:$0xf]
      %v561 = vld [vmem:[%s1 + $0x14] sm:$0xf]
      %v562 = vld [vmem:[%s1 + $0x18] sm:$0xf]
      %v563 = vld [vmem:[%s1 + $0x1c] sm:$0xf]
      %v564 = vld [vmem:[%s1 + $0x20] sm:$0xf]
      %v565 = vld [vmem:[%s1 + $0x24] sm:$0xf]
      %v566 = vld [vmem:[%s1 + $0x28] sm:$0xf]
      %v567 = vld [vmem:[%s1 + $0x2c] sm:$0xf]
      %v568 = vld [vmem:[%s1 + $0x30] sm:$0xf]
      %v569 = vld [vmem:[%s1 + $0x34] sm:$0xf]
      %v570 = vld [vmem:[%s1 + $0x38] sm:$0xf]
      %v571 = vld [vmem:[%s1 + $0x3c] sm:$0xf]
      %v572 = vld [vmem:[%s2] sm:$0x1]
      %v574 = vperm.slane %v572, 0
      %v592 = vunpack.c.l.b16 %v556
      %v593 = vunpack.c.l.b16 %v557
      %v594 = vunpack.c.l.b16 %v558
      %v595 = vunpack.c.l.b16 %v559
      %v596 = vunpack.c.l.b16 %v560
      %v597 = vunpack.c.l.b16 %v561
      %v598 = vunpack.c.l.b16 %v562
      %v599 = vunpack.c.l.b16 %v563
      %v600 = vunpack.c.l.b16 %v564
      %v601 = vunpack.c.l.b16 %v565
      %v602 = vunpack.c.l.b16 %v566
      %v603 = vunpack.c.l.b16 %v567
      %v604 = vunpack.c.l.b16 %v568
      %v605 = vunpack.c.l.b16 %v569
      %v606 = vunpack.c.l.b16 %v570
      %v607 = vunpack.c.l.b16 %v571
      %v608 = vpack.c.b16 %v593, %v592
      %v609 = vpack.c.b16 %v595, %v594
      %v610 = vpack.c.b16 %v597, %v596
      %v611 = vpack.c.b16 %v599, %v598
      %v612 = vpack.c.b16 %v601, %v600
      %v613 = vpack.c.b16 %v603, %v602
      %v614 = vpack.c.b16 %v605, %v604
      %v615 = vpack.c.b16 %v607, %v606
      %624 = vmatpush.bf16.msra.mxu0 %v615
      %625 = vmatpush.bf16.msra.mxu0 %v614
      %626 = vmatpush.bf16.msra.mxu0 %v613
      %627 = vmatpush.bf16.msra.mxu0 %v612
      %628 = vmatpush.bf16.msra.mxu0 %v611
      %629 = vmatpush.bf16.msra.mxu0 %v610
      %630 = vmatpush.bf16.msra.mxu0 %v609
      %631 = vmatpush.bf16.msra.mxu0 %v608
      %632 = vmatmul.bf16.gmra.mxu0 %v540
      %v633 = vpop.f32.mrf.mxu0
      %v634 = vadd.f32 %v574, %v633
      %v635 = vpop.f32.mrf.mxu0
      %v636 = vadd.f32 %v574, %v635
      %637 = vmatmul.bf16.gmra.mxu0 %v541
      %v638 = vpop.f32.mrf.mxu0
      %v639 = vadd.f32 %v574, %v638
      %v640 = vpop.f32.mrf.mxu0
      %v641 = vadd.f32 %v574, %v640
      %642 = vmatmul.bf16.gmra.mxu0 %v542
      %v643 = vpop.f32.mrf.mxu0
      %v644 = vadd.f32 %v574, %v643
      %v645 = vpop.f32.mrf.mxu0
      %v646 = vadd.f32 %v574, %v645
      %647 = vmatmul.bf16.gmra.mxu0 %v543
      %v648 = vpop.f32.mrf.mxu0
      %v649 = vadd.f32 %v574, %v648
      %v650 = vpop.f32.mrf.mxu0
      %v651 = vadd.f32 %v574, %v650
      %652 = vmatmul.bf16.gmra.mxu0 %v544
      %v653 = vpop.f32.mrf.mxu0
      %v654 = vadd.f32 %v574, %v653
      %v655 = vpop.f32.mrf.mxu0
      %v656 = vadd.f32 %v574, %v655
      %657 = vmatmul.bf16.gmra.mxu0 %v545
      %v658 = vpop.f32.mrf.mxu0
      %v659 = vadd.f32 %v574, %v658
      %v660 = vpop.f32.mrf.mxu0
      %v661 = vadd.f32 %v574, %v660
      %662 = vmatmul.bf16.gmra.mxu0 %v546
      %v663 = vpop.f32.mrf.mxu0
      %v664 = vadd.f32 %v574, %v663
      %v665 = vpop.f32.mrf.mxu0
      %v666 = vadd.f32 %v574, %v665
      %667 = vmatmul.bf16.gmra.mxu0 %v547
      %v668 = vpop.f32.mrf.mxu0
      %v669 = vadd.f32 %v574, %v668
      %v670 = vpop.f32.mrf.mxu0
      %v671 = vadd.f32 %v574, %v670
      %672 = vmatmul.bf16.gmra.mxu0 %v548
      %v673 = vpop.f32.mrf.mxu0
      %v674 = vadd.f32 %v574, %v673
      %v675 = vpop.f32.mrf.mxu0
      %v676 = vadd.f32 %v574, %v675
      %677 = vmatmul.bf16.gmra.mxu0 %v549
      %v678 = vpop.f32.mrf.mxu0
      %v679 = vadd.f32 %v574, %v678
      %v680 = vpop.f32.mrf.mxu0
      %v681 = vadd.f32 %v574, %v680
      %682 = vmatmul.bf16.gmra.mxu0 %v550
      %v683 = vpop.f32.mrf.mxu0
      %v684 = vadd.f32 %v574, %v683
      %v685 = vpop.f32.mrf.mxu0
      %v686 = vadd.f32 %v574, %v685
      %687 = vmatmul.bf16.gmra.mxu0 %v551
      %v688 = vpop.f32.mrf.mxu0
      %v689 = vadd.f32 %v574, %v688
      %v690 = vpop.f32.mrf.mxu0
      %v691 = vadd.f32 %v574, %v690
      %692 = vmatmul.bf16.gmra.mxu0 %v552
      %v693 = vpop.f32.mrf.mxu0
      %v694 = vadd.f32 %v574, %v693
      %v695 = vpop.f32.mrf.mxu0
      %v696 = vadd.f32 %v574, %v695
      %697 = vmatmul.bf16.gmra.mxu0 %v553
      %v698 = vpop.f32.mrf.mxu0
      %v699 = vadd.f32 %v574, %v698
      %v700 = vpop.f32.mrf.mxu0
      %v701 = vadd.f32 %v574, %v700
      %702 = vmatmul.bf16.gmra.mxu0 %v554
      %v703 = vpop.f32.mrf.mxu0
      %v704 = vadd.f32 %v574, %v703
      %v705 = vpop.f32.mrf.mxu0
      %v706 = vadd.f32 %v574, %v705
      %707 = vmatmul.bf16.gmra.mxu0 %v555
      %v708 = vpop.f32.mrf.mxu0
      %v709 = vadd.f32 %v574, %v708
      %v710 = vpop.f32.mrf.mxu0
      %v711 = vadd.f32 %v574, %v710
      %712 = vdwg.mxu0
      %vm713 = vcmp.gt.f32.partialorder %v634, 0.0
      %vm714 = vcmp.gt.f32.partialorder %v636, 0.0
      %vm715 = vcmp.gt.f32.partialorder %v639, 0.0
      %vm716 = vcmp.gt.f32.partialorder %v641, 0.0
      %vm717 = vcmp.gt.f32.partialorder %v644, 0.0
      %vm718 = vcmp.gt.f32.partialorder %v646, 0.0
      %vm719 = vcmp.gt.f32.partialorder %v649, 0.0
      %vm720 = vcmp.gt.f32.partialorder %v651, 0.0
      %vm721 = vcmp.gt.f32.partialorder %v654, 0.0
      %vm722 = vcmp.gt.f32.partialorder %v656, 0.0
      %vm723 = vcmp.gt.f32.partialorder %v659, 0.0
      %vm724 = vcmp.gt.f32.partialorder %v661, 0.0
      %vm725 = vcmp.gt.f32.partialorder %v664, 0.0
      %vm726 = vcmp.gt.f32.partialorder %v666, 0.0
      %vm727 = vcmp.gt.f32.partialorder %v669, 0.0
      %vm728 = vcmp.gt.f32.partialorder %v671, 0.0
      %vm729 = vcmp.gt.f32.partialorder %v674, 0.0
      %vm730 = vcmp.gt.f32.partialorder %v676, 0.0
      %vm731 = vcmp.gt.f32.partialorder %v679, 0.0
      %vm732 = vcmp.gt.f32.partialorder %v681, 0.0
      %vm733 = vcmp.gt.f32.partialorder %v684, 0.0
      %vm734 = vcmp.gt.f32.partialorder %v686, 0.0
      %vm735 = vcmp.gt.f32.partialorder %v689, 0.0
      %vm736 = vcmp.gt.f32.partialorder %v691, 0.0
      %vm737 = vcmp.gt.f32.partialorder %v694, 0.0
      %vm738 = vcmp.gt.f32.partialorder %v696, 0.0
      %vm739 = vcmp.gt.f32.partialorder %v699, 0.0
      %vm740 = vcmp.gt.f32.partialorder %v701, 0.0
      %vm741 = vcmp.gt.f32.partialorder %v704, 0.0
      %vm742 = vcmp.gt.f32.partialorder %v706, 0.0
      %vm743 = vcmp.gt.f32.partialorder %v709, 0.0
      %vm744 = vcmp.gt.f32.partialorder %v711, 0.0
      %v745 = vmul.f32 %v634, 0.2
      %v746 = vmul.f32 %v636, 0.2
      %v747 = vmul.f32 %v639, 0.2
      %v748 = vmul.f32 %v641, 0.2
      %v749 = vmul.f32 %v644, 0.2
      %v750 = vmul.f32 %v646, 0.2
      %v751 = vmul.f32 %v649, 0.2
      %v752 = vmul.f32 %v651, 0.2
      %v753 = vmul.f32 %v654, 0.2
      %v754 = vmul.f32 %v656, 0.2
      %v755 = vmul.f32 %v659, 0.2
      %v756 = vmul.f32 %v661, 0.2
      %v757 = vmul.f32 %v664, 0.2
      %v758 = vmul.f32 %v666, 0.2
      %v759 = vmul.f32 %v669, 0.2
      %v760 = vmul.f32 %v671, 0.2
      %v761 = vmul.f32 %v674, 0.2
      %v762 = vmul.f32 %v676, 0.2
      %v763 = vmul.f32 %v679, 0.2
      %v764 = vmul.f32 %v681, 0.2
      %v765 = vmul.f32 %v684, 0.2
      %v766 = vmul.f32 %v686, 0.2
      %v767 = vmul.f32 %v689, 0.2
      %v768 = vmul.f32 %v691, 0.2
      %v769 = vmul.f32 %v694, 0.2
      %v770 = vmul.f32 %v696, 0.2
      %v771 = vmul.f32 %v699, 0.2
      %v772 = vmul.f32 %v701, 0.2
      %v773 = vmul.f32 %v704, 0.2
      %v774 = vmul.f32 %v706, 0.2
      %v775 = vmul.f32 %v709, 0.2
      %v776 = vmul.f32 %v711, 0.2
      %v777 = vsel %vm713, %v634, %v745
      %v778 = vsel %vm714, %v636, %v746
      %v779 = vsel %vm715, %v639, %v747
      %v780 = vsel %vm716, %v641, %v748
      %v781 = vsel %vm717, %v644, %v749
      %v782 = vsel %vm718, %v646, %v750
      %v783 = vsel %vm719, %v649, %v751
      %v784 = vsel %vm720, %v651, %v752
      %v785 = vsel %vm721, %v654, %v753
      %v786 = vsel %vm722, %v656, %v754
      %v787 = vsel %vm723, %v659, %v755
      %v788 = vsel %vm724, %v661, %v756
      %v789 = vsel %vm725, %v664, %v757
      %v790 = vsel %vm726, %v666, %v758
      %v791 = vsel %vm727, %v669, %v759
      %v792 = vsel %vm728, %v671, %v760
      %v793 = vsel %vm729, %v674, %v761
      %v794 = vsel %vm730, %v676, %v762
      %v795 = vsel %vm731, %v679, %v763
      %v796 = vsel %vm732, %v681, %v764
      %v797 = vsel %vm733, %v684, %v765
      %v798 = vsel %vm734, %v686, %v766
      %v799 = vsel %vm735, %v689, %v767
      %v800 = vsel %vm736, %v691, %v768
      %v801 = vsel %vm737, %v694, %v769
      %v802 = vsel %vm738, %v696, %v770
      %v803 = vsel %vm739, %v699, %v771
      %v804 = vsel %vm740, %v701, %v772
      %v805 = vsel %vm741, %v704, %v773
      %v806 = vsel %vm742, %v706, %v774
      %v807 = vsel %vm743, %v709, %v775
      %v808 = vsel %vm744, %v711, %v776
      %s809 = scalar_lea.vmem [#allocation2], 24
      %810 = vst.msk [vmem:[%s809 + $0x1] sm:$0xff] %vm334, %v777
      %811 = vst.msk [vmem:[%s809 + $0x9] sm:$0xff] %vm334, %v778
      %812 = vst.msk [vmem:[%s809 + $0x19] sm:$0xff] %vm334, %v779
      %813 = vst.msk [vmem:[%s809 + $0x21] sm:$0xff] %vm334, %v780
      %814 = vst.msk [vmem:[%s809 + $0x31] sm:$0xff] %vm334, %v781
      %815 = vst.msk [vmem:[%s809 + $0x39] sm:$0xff] %vm334, %v782
      %816 = vst.msk [vmem:[%s809 + $0x49] sm:$0xff] %vm334, %v783
      %817 = vst.msk [vmem:[%s809 + $0x51] sm:$0xff] %vm334, %v784
      %818 = vst.msk [vmem:[%s809 + $0x61] sm:$0xff] %vm334, %v785
      %819 = vst.msk [vmem:[%s809 + $0x69] sm:$0xff] %vm334, %v786
      %820 = vst.msk [vmem:[%s809 + $0x79] sm:$0xff] %vm334, %v787
      %821 = vst.msk [vmem:[%s809 + $0x81] sm:$0xff] %vm334, %v788
      %822 = vst.msk [vmem:[%s809 + $0x91] sm:$0xff] %vm334, %v789
      %823 = vst.msk [vmem:[%s809 + $0x99] sm:$0xff] %vm334, %v790
      %824 = vst.msk [vmem:[%s809 + $0xa9] sm:$0xff] %vm334, %v791
      %825 = vst.msk [vmem:[%s809 + $0xb1] sm:$0xff] %vm334, %v792
      %826 = vst.msk [vmem:[%s809 + $0xc1] sm:$0xff] %vm334, %v793
      %827 = vst.msk [vmem:[%s809 + $0xc9] sm:$0xff] %vm334, %v794
      %828 = vst.msk [vmem:[%s809 + $0xd9] sm:$0xff] %vm334, %v795
      %829 = vst.msk [vmem:[%s809 + $0xe1] sm:$0xff] %vm334, %v796
      %830 = vst.msk [vmem:[%s809 + $0xf1] sm:$0xff] %vm334, %v797
      %831 = vst.msk [vmem:[%s809 + $0xf9] sm:$0xff] %vm334, %v798
      %832 = vst.msk [vmem:[%s809 + $0x109] sm:$0xff] %vm334, %v799
      %833 = vst.msk [vmem:[%s809 + $0x111] sm:$0xff] %vm334, %v800
      %834 = vst.msk [vmem:[%s809 + $0x121] sm:$0xff] %vm334, %v801
      %835 = vst.msk [vmem:[%s809 + $0x129] sm:$0xff] %vm334, %v802
      %836 = vst.msk [vmem:[%s809 + $0x139] sm:$0xff] %vm334, %v803
      %837 = vst.msk [vmem:[%s809 + $0x141] sm:$0xff] %vm334, %v804
      %838 = vst.msk [vmem:[%s809 + $0x151] sm:$0xff] %vm334, %v805
      %839 = vst.msk [vmem:[%s809 + $0x159] sm:$0xff] %vm334, %v806
      %840 = vst.msk [vmem:[%s809 + $0x169] sm:$0xff] %vm334, %v807
      %841 = vst.msk [vmem:[%s809 + $0x171] sm:$0xff] %vm334, %v808
      %v842 = vld [vmem:[#allocation2] sm:$0xff]
      %v843 = vld [vmem:[#allocation2 + $0x8] sm:$0xff]
      %v844 = vld [vmem:[#allocation2 + $0x10] sm:$0x3]
      %v845 = vld [vmem:[#allocation2 + $0x18] sm:$0xff]
      %v846 = vld [vmem:[#allocation2 + $0x20] sm:$0xff]
      %v847 = vld [vmem:[#allocation2 + $0x28] sm:$0x3]
      %v848 = vld [vmem:[#allocation2 + $0x30] sm:$0xff]
      %v849 = vld [vmem:[#allocation2 + $0x38] sm:$0xff]
      %v850 = vld [vmem:[#allocation2 + $0x40] sm:$0x3]
      %v851 = vld [vmem:[#allocation2 + $0x48] sm:$0xff]
      %v852 = vld [vmem:[#allocation2 + $0x50] sm:$0xff]
      %v853 = vld [vmem:[#allocation2 + $0x58] sm:$0x3]
      %v854 = vld [vmem:[#allocation2 + $0x60] sm:$0xff]
      %v855 = vld [vmem:[#allocation2 + $0x68] sm:$0xff]
      %v856 = vld [vmem:[#allocation2 + $0x70] sm:$0x3]
      %v857 = vld [vmem:[#allocation2 + $0x78] sm:$0xff]
      %v858 = vld [vmem:[#allocation2 + $0x80] sm:$0xff]
      %v859 = vld [vmem:[#allocation2 + $0x88] sm:$0x3]
      %v860 = vld [vmem:[#allocation2 + $0x90] sm:$0xff]
      %v861 = vld [vmem:[#allocation2 + $0x98] sm:$0xff]
      %v862 = vld [vmem:[#allocation2 + $0xa0] sm:$0x3]
      %v863 = vld [vmem:[#allocation2 + $0xa8] sm:$0xff]
      %v864 = vld [vmem:[#allocation2 + $0xb0] sm:$0xff]
      %v865 = vld [vmem:[#allocation2 + $0xb8] sm:$0x3]
      %v866 = vld [vmem:[#allocation2 + $0xc0] sm:$0xff]
      %v867 = vld [vmem:[#allocation2 + $0xc8] sm:$0xff]
      %v868 = vld [vmem:[#allocation2 + $0xd0] sm:$0x3]
      %v869 = vld [vmem:[#allocation2 + $0xd8] sm:$0xff]
      %v870 = vld [vmem:[#allocation2 + $0xe0] sm:$0xff]
      %v871 = vld [vmem:[#allocation2 + $0xe8] sm:$0x3]
      %v872 = vld [vmem:[#allocation2 + $0xf0] sm:$0xff]
      %v873 = vld [vmem:[#allocation2 + $0xf8] sm:$0xff]
      %v874 = vld [vmem:[#allocation2 + $0x100] sm:$0x3]
      %v875 = vld [vmem:[#allocation2 + $0x108] sm:$0xff]
      %v876 = vld [vmem:[#allocation2 + $0x110] sm:$0xff]
      %v877 = vld [vmem:[#allocation2 + $0x118] sm:$0x3]
      %v878 = vld [vmem:[#allocation2 + $0x120] sm:$0xff]
      %v879 = vld [vmem:[#allocation2 + $0x128] sm:$0xff]
      %v880 = vld [vmem:[#allocation2 + $0x130] sm:$0x3]
      %v881 = vld [vmem:[#allocation2 + $0x138] sm:$0xff]
      %v882 = vld [vmem:[#allocation2 + $0x140] sm:$0xff]
      %v883 = vld [vmem:[#allocation2 + $0x148] sm:$0x3]
      %v884 = vld [vmem:[#allocation2 + $0x150] sm:$0xff]
      %v885 = vld [vmem:[#allocation2 + $0x158] sm:$0xff]
      %v886 = vld [vmem:[#allocation2 + $0x160] sm:$0x3]
      %v887 = vld [vmem:[#allocation2 + $0x168] sm:$0xff]
      %v888 = vld [vmem:[#allocation2 + $0x170] sm:$0xff]
      %v889 = vld [vmem:[#allocation2 + $0x178] sm:$0x3]
      %v890 = vld [vmem:[#allocation2 + $0x180] sm:$0xff]
      %v891 = vld [vmem:[#allocation2 + $0x188] sm:$0xff]
      %v892 = vld [vmem:[#allocation2 + $0x190] sm:$0x3]
      %v893 = vld [vmem:[#allocation2 + $0x198] sm:$0xff]
      %v894 = vld [vmem:[#allocation2 + $0x1a0] sm:$0xff]
      %v895 = vld [vmem:[#allocation2 + $0x1a8] sm:$0x3]
      %vm944 = vcmask 1046528
      %v945 = vrot.slane %v842, 1
      %v946 = vrot.slane %v843, 1
      %v947 = vsel %vm944, %v945, %v946
      %v948 = vrot.slane %v844, 1
      %v949 = vsel %vm944, %v946, %v948
      %v950 = vrot.slane %v845, 1
      %v951 = vrot.slane %v846, 1
      %v952 = vsel %vm944, %v950, %v951
      %v953 = vrot.slane %v847, 1
      %v954 = vsel %vm944, %v951, %v953
      %v955 = vrot.slane %v848, 1
      %v956 = vrot.slane %v849, 1
      %v957 = vsel %vm944, %v955, %v956
      %v958 = vrot.slane %v850, 1
      %v959 = vsel %vm944, %v956, %v958
      %v960 = vrot.slane %v851, 1
      %v961 = vrot.slane %v852, 1
      %v962 = vsel %vm944, %v960, %v961
      %v963 = vrot.slane %v853, 1
      %v964 = vsel %vm944, %v961, %v963
      %v965 = vrot.slane %v854, 1
      %v966 = vrot.slane %v855, 1
      %v967 = vsel %vm944, %v965, %v966
      %v968 = vrot.slane %v856, 1
      %v969 = vsel %vm944, %v966, %v968
      %v970 = vrot.slane %v857, 1
      %v971 = vrot.slane %v858, 1
      %v972 = vsel %vm944, %v970, %v971
      %v973 = vrot.slane %v859, 1
      %v974 = vsel %vm944, %v971, %v973
      %v975 = vrot.slane %v860, 1
      %v976 = vrot.slane %v861, 1
      %v977 = vsel %vm944, %v975, %v976
      %v978 = vrot.slane %v862, 1
      %v979 = vsel %vm944, %v976, %v978
      %v980 = vrot.slane %v863, 1
      %v981 = vrot.slane %v864, 1
      %v982 = vsel %vm944, %v980, %v981
      %v983 = vrot.slane %v865, 1
      %v984 = vsel %vm944, %v981, %v983
      %v985 = vrot.slane %v866, 1
      %v986 = vrot.slane %v867, 1
      %v987 = vsel %vm944, %v985, %v986
      %v988 = vrot.slane %v868, 1
      %v989 = vsel %vm944, %v986, %v988
      %v990 = vrot.slane %v869, 1
      %v991 = vrot.slane %v870, 1
      %v992 = vsel %vm944, %v990, %v991
      %v993 = vrot.slane %v871, 1
      %v994 = vsel %vm944, %v991, %v993
      %v995 = vrot.slane %v872, 1
      %v996 = vrot.slane %v873, 1
      %v997 = vsel %vm944, %v995, %v996
      %v998 = vrot.slane %v874, 1
      %v999 = vsel %vm944, %v996, %v998
      %v1000 = vrot.slane %v875, 1
      %v1001 = vrot.slane %v876, 1
      %v1002 = vsel %vm944, %v1000, %v1001
      %v1003 = vrot.slane %v877, 1
      %v1004 = vsel %vm944, %v1001, %v1003
      %v1005 = vrot.slane %v878, 1
      %v1006 = vrot.slane %v879, 1
      %v1007 = vsel %vm944, %v1005, %v1006
      %v1008 = vrot.slane %v880, 1
      %v1009 = vsel %vm944, %v1006, %v1008
      %v1010 = vrot.slane %v881, 1
      %v1011 = vrot.slane %v882, 1
      %v1012 = vsel %vm944, %v1010, %v1011
      %v1013 = vrot.slane %v883, 1
      %v1014 = vsel %vm944, %v1011, %v1013
      %v1015 = vrot.slane %v884, 1
      %v1016 = vrot.slane %v885, 1
      %v1017 = vsel %vm944, %v1015, %v1016
      %v1018 = vrot.slane %v886, 1
      %v1019 = vsel %vm944, %v1016, %v1018
      %v1020 = vrot.slane %v887, 1
      %v1021 = vrot.slane %v888, 1
      %v1022 = vsel %vm944, %v1020, %v1021
      %v1023 = vrot.slane %v889, 1
      %v1024 = vsel %vm944, %v1021, %v1023
      %vm1025 = vcmask 1045504
      %v1026 = vrot.slane %v842, 2
      %v1027 = vrot.slane %v843, 2
      %v1028 = vsel %vm1025, %v1026, %v1027
      %v1029 = vrot.slane %v844, 2
      %v1030 = vsel %vm1025, %v1027, %v1029
      %v1031 = vrot.slane %v845, 2
      %v1032 = vrot.slane %v846, 2
      %v1033 = vsel %vm1025, %v1031, %v1032
      %v1034 = vrot.slane %v847, 2
      %v1035 = vsel %vm1025, %v1032, %v1034
      %v1036 = vrot.slane %v848, 2
      %v1037 = vrot.slane %v849, 2
      %v1038 = vsel %vm1025, %v1036, %v1037
      %v1039 = vrot.slane %v850, 2
      %v1040 = vsel %vm1025, %v1037, %v1039
      %v1041 = vrot.slane %v851, 2
      %v1042 = vrot.slane %v852, 2
      %v1043 = vsel %vm1025, %v1041, %v1042
      %v1044 = vrot.slane %v853, 2
      %v1045 = vsel %vm1025, %v1042, %v1044
      %v1046 = vrot.slane %v854, 2
      %v1047 = vrot.slane %v855, 2
      %v1048 = vsel %vm1025, %v1046, %v1047
      %v1049 = vrot.slane %v856, 2
      %v1050 = vsel %vm1025, %v1047, %v1049
      %v1051 = vrot.slane %v857, 2
      %v1052 = vrot.slane %v858, 2
      %v1053 = vsel %vm1025, %v1051, %v1052
      %v1054 = vrot.slane %v859, 2
      %v1055 = vsel %vm1025, %v1052, %v1054
      %v1056 = vrot.slane %v860, 2
      %v1057 = vrot.slane %v861, 2
      %v1058 = vsel %vm1025, %v1056, %v1057
      %v1059 = vrot.slane %v862, 2
      %v1060 = vsel %vm1025, %v1057, %v1059
      %v1061 = vrot.slane %v863, 2
      %v1062 = vrot.slane %v864, 2
      %v1063 = vsel %vm1025, %v1061, %v1062
      %v1064 = vrot.slane %v865, 2
      %v1065 = vsel %vm1025, %v1062, %v1064
      %v1066 = vrot.slane %v866, 2
      %v1067 = vrot.slane %v867, 2
      %v1068 = vsel %vm1025, %v1066, %v1067
      %v1069 = vrot.slane %v868, 2
      %v1070 = vsel %vm1025, %v1067, %v1069
      %v1071 = vrot.slane %v869, 2
      %v1072 = vrot.slane %v870, 2
      %v1073 = vsel %vm1025, %v1071, %v1072
      %v1074 = vrot.slane %v871, 2
      %v1075 = vsel %vm1025, %v1072, %v1074
      %v1076 = vrot.slane %v872, 2
      %v1077 = vrot.slane %v873, 2
      %v1078 = vsel %vm1025, %v1076, %v1077
      %v1079 = vrot.slane %v874, 2
      %v1080 = vsel %vm1025, %v1077, %v1079
      %v1081 = vrot.slane %v875, 2
      %v1082 = vrot.slane %v876, 2
      %v1083 = vsel %vm1025, %v1081, %v1082
      %v1084 = vrot.slane %v877, 2
      %v1085 = vsel %vm1025, %v1082, %v1084
      %v1086 = vrot.slane %v878, 2
      %v1087 = vrot.slane %v879, 2
      %v1088 = vsel %vm1025, %v1086, %v1087
      %v1089 = vrot.slane %v880, 2
      %v1090 = vsel %vm1025, %v1087, %v1089
      %v1091 = vrot.slane %v881, 2
      %v1092 = vrot.slane %v882, 2
      %v1093 = vsel %vm1025, %v1091, %v1092
      %v1094 = vrot.slane %v883, 2
      %v1095 = vsel %vm1025, %v1092, %v1094
      %v1096 = vrot.slane %v884, 2
      %v1097 = vrot.slane %v885, 2
      %v1098 = vsel %vm1025, %v1096, %v1097
      %v1099 = vrot.slane %v886, 2
      %v1100 = vsel %vm1025, %v1097, %v1099
      %v1101 = vrot.slane %v887, 2
      %v1102 = vrot.slane %v888, 2
      %v1103 = vsel %vm1025, %v1101, %v1102
      %v1104 = vrot.slane %v889, 2
      %v1105 = vsel %vm1025, %v1102, %v1104
      %v1109 = vrot.slane %v890, 1
      %v1110 = vrot.slane %v891, 1
      %v1111 = vsel %vm944, %v1109, %v1110
      %v1112 = vrot.slane %v892, 1
      %v1113 = vsel %vm944, %v1110, %v1112
      %v1114 = vrot.slane %v890, 2
      %v1115 = vrot.slane %v891, 2
      %v1116 = vsel %vm1025, %v1114, %v1115
      %v1117 = vrot.slane %v892, 2
      %v1118 = vsel %vm1025, %v1115, %v1117
      %v1122 = vrot.slane %v893, 1
      %v1123 = vrot.slane %v894, 1
      %v1124 = vsel %vm944, %v1122, %v1123
      %v1125 = vrot.slane %v895, 1
      %v1126 = vsel %vm944, %v1123, %v1125
      %v1127 = vrot.slane %v893, 2
      %v1128 = vrot.slane %v894, 2
      %v1129 = vsel %vm1025, %v1127, %v1128
      %v1130 = vrot.slane %v895, 2
      %v1131 = vsel %vm1025, %v1128, %v1130
      %1132 = vrot.lane.b32.xlu0 %v947, 8
      %v1133 = vpop.permute.xlu0 %1132
      %1134 = vrot.lane.b32.xlu0 %v949, 8
      %v1135 = vpop.permute.xlu0 %1134
      %1136 = vrot.lane.b32.xlu0 %v952, 8
      %v1137 = vpop.permute.xlu0 %1136
      %1138 = vrot.lane.b32.xlu0 %v954, 8
      %v1139 = vpop.permute.xlu0 %1138
      %1140 = vrot.lane.b32.xlu0 %v957, 8
      %v1141 = vpop.permute.xlu0 %1140
      %1142 = vrot.lane.b32.xlu0 %v959, 8
      %v1143 = vpop.permute.xlu0 %1142
      %1144 = vrot.lane.b32.xlu0 %v962, 8
      %v1145 = vpop.permute.xlu0 %1144
      %1146 = vrot.lane.b32.xlu0 %v964, 8
      %v1147 = vpop.permute.xlu0 %1146
      %1148 = vrot.lane.b32.xlu0 %v967, 8
      %v1149 = vpop.permute.xlu0 %1148
      %1150 = vrot.lane.b32.xlu0 %v969, 8
      %v1151 = vpop.permute.xlu0 %1150
      %1152 = vrot.lane.b32.xlu0 %v972, 8
      %v1153 = vpop.permute.xlu0 %1152
      %1154 = vrot.lane.b32.xlu0 %v974, 8
      %v1155 = vpop.permute.xlu0 %1154
      %1156 = vrot.lane.b32.xlu0 %v977, 8
      %v1157 = vpop.permute.xlu0 %1156
      %1158 = vrot.lane.b32.xlu0 %v979, 8
      %v1159 = vpop.permute.xlu0 %1158
      %1160 = vrot.lane.b32.xlu0 %v982, 8
      %v1161 = vpop.permute.xlu0 %1160
      %1162 = vrot.lane.b32.xlu0 %v984, 8
      %v1163 = vpop.permute.xlu0 %1162
      %1164 = vrot.lane.b32.xlu0 %v987, 8
      %v1165 = vpop.permute.xlu0 %1164
      %1166 = vrot.lane.b32.xlu0 %v989, 8
      %v1167 = vpop.permute.xlu0 %1166
      %1168 = vrot.lane.b32.xlu0 %v992, 8
      %v1169 = vpop.permute.xlu0 %1168
      %1170 = vrot.lane.b32.xlu0 %v994, 8
      %v1171 = vpop.permute.xlu0 %1170
      %1172 = vrot.lane.b32.xlu0 %v997, 8
      %v1173 = vpop.permute.xlu0 %1172
      %1174 = vrot.lane.b32.xlu0 %v999, 8
      %v1175 = vpop.permute.xlu0 %1174
      %1176 = vrot.lane.b32.xlu0 %v1002, 8
      %v1177 = vpop.permute.xlu0 %1176
      %1178 = vrot.lane.b32.xlu0 %v1004, 8
      %v1179 = vpop.permute.xlu0 %1178
      %1180 = vrot.lane.b32.xlu0 %v1007, 8
      %v1181 = vpop.permute.xlu0 %1180
      %1182 = vrot.lane.b32.xlu0 %v1009, 8
      %v1183 = vpop.permute.xlu0 %1182
      %1184 = vrot.lane.b32.xlu0 %v1012, 8
      %v1185 = vpop.permute.xlu0 %1184
      %1186 = vrot.lane.b32.xlu0 %v1014, 8
      %v1187 = vpop.permute.xlu0 %1186
      %1188 = vrot.lane.b32.xlu0 %v1017, 8
      %v1189 = vpop.permute.xlu0 %1188
      %1190 = vrot.lane.b32.xlu0 %v1019, 8
      %v1191 = vpop.permute.xlu0 %1190
      %1192 = vrot.lane.b32.xlu0 %v1022, 8
      %v1193 = vpop.permute.xlu0 %1192
      %1194 = vrot.lane.b32.xlu0 %v1024, 8
      %v1195 = vpop.permute.xlu0 %1194
      %1228 = vrot.lane.b32.xlu0 %v1028, 16
      %v1229 = vpop.permute.xlu0 %1228
      %1230 = vrot.lane.b32.xlu0 %v1030, 16
      %v1231 = vpop.permute.xlu0 %1230
      %1232 = vrot.lane.b32.xlu0 %v1033, 16
      %v1233 = vpop.permute.xlu0 %1232
      %1234 = vrot.lane.b32.xlu0 %v1035, 16
      %v1235 = vpop.permute.xlu0 %1234
      %1236 = vrot.lane.b32.xlu0 %v1038, 16
      %v1237 = vpop.permute.xlu0 %1236
      %1238 = vrot.lane.b32.xlu0 %v1040, 16
      %v1239 = vpop.permute.xlu0 %1238
      %1240 = vrot.lane.b32.xlu0 %v1043, 16
      %v1241 = vpop.permute.xlu0 %1240
      %1242 = vrot.lane.b32.xlu0 %v1045, 16
      %v1243 = vpop.permute.xlu0 %1242
      %1244 = vrot.lane.b32.xlu0 %v1048, 16
      %v1245 = vpop.permute.xlu0 %1244
      %1246 = vrot.lane.b32.xlu0 %v1050, 16
      %v1247 = vpop.permute.xlu0 %1246
      %1248 = vrot.lane.b32.xlu0 %v1053, 16
      %v1249 = vpop.permute.xlu0 %1248
      %1250 = vrot.lane.b32.xlu0 %v1055, 16
      %v1251 = vpop.permute.xlu0 %1250
      %1252 = vrot.lane.b32.xlu0 %v1058, 16
      %v1253 = vpop.permute.xlu0 %1252
      %1254 = vrot.lane.b32.xlu0 %v1060, 16
      %v1255 = vpop.permute.xlu0 %1254
      %1256 = vrot.lane.b32.xlu0 %v1063, 16
      %v1257 = vpop.permute.xlu0 %1256
      %1258 = vrot.lane.b32.xlu0 %v1065, 16
      %v1259 = vpop.permute.xlu0 %1258
      %1260 = vrot.lane.b32.xlu0 %v1068, 16
      %v1261 = vpop.permute.xlu0 %1260
      %1262 = vrot.lane.b32.xlu0 %v1070, 16
      %v1263 = vpop.permute.xlu0 %1262
      %1264 = vrot.lane.b32.xlu0 %v1073, 16
      %v1265 = vpop.permute.xlu0 %1264
      %1266 = vrot.lane.b32.xlu0 %v1075, 16
      %v1267 = vpop.permute.xlu0 %1266
      %1268 = vrot.lane.b32.xlu0 %v1078, 16
      %v1269 = vpop.permute.xlu0 %1268
      %1270 = vrot.lane.b32.xlu0 %v1080, 16
      %v1271 = vpop.permute.xlu0 %1270
      %1272 = vrot.lane.b32.xlu0 %v1083, 16
      %v1273 = vpop.permute.xlu0 %1272
      %1274 = vrot.lane.b32.xlu0 %v1085, 16
      %v1275 = vpop.permute.xlu0 %1274
      %1276 = vrot.lane.b32.xlu0 %v1088, 16
      %v1277 = vpop.permute.xlu0 %1276
      %1278 = vrot.lane.b32.xlu0 %v1090, 16
      %v1279 = vpop.permute.xlu0 %1278
      %1280 = vrot.lane.b32.xlu0 %v1093, 16
      %v1281 = vpop.permute.xlu0 %1280
      %1282 = vrot.lane.b32.xlu0 %v1095, 16
      %v1283 = vpop.permute.xlu0 %1282
      %1284 = vrot.lane.b32.xlu0 %v1098, 16
      %v1285 = vpop.permute.xlu0 %1284
      %1286 = vrot.lane.b32.xlu0 %v1100, 16
      %v1287 = vpop.permute.xlu0 %1286
      %1288 = vrot.lane.b32.xlu0 %v1103, 16
      %v1289 = vpop.permute.xlu0 %1288
      %1290 = vrot.lane.b32.xlu0 %v1105, 16
      %v1291 = vpop.permute.xlu0 %1290
      %1324 = vrot.lane.b32.xlu0 %v845, 24
      %v1325 = vpop.permute.xlu0 %1324
      %1326 = vrot.lane.b32.xlu0 %v846, 24
      %v1327 = vpop.permute.xlu0 %1326
      %1328 = vrot.lane.b32.xlu0 %v848, 24
      %v1329 = vpop.permute.xlu0 %1328
      %1330 = vrot.lane.b32.xlu0 %v849, 24
      %v1331 = vpop.permute.xlu0 %1330
      %1332 = vrot.lane.b32.xlu0 %v851, 24
      %v1333 = vpop.permute.xlu0 %1332
      %1334 = vrot.lane.b32.xlu0 %v852, 24
      %v1335 = vpop.permute.xlu0 %1334
      %1336 = vrot.lane.b32.xlu0 %v854, 24
      %v1337 = vpop.permute.xlu0 %1336
      %1338 = vrot.lane.b32.xlu0 %v855, 24
      %v1339 = vpop.permute.xlu0 %1338
      %1340 = vrot.lane.b32.xlu0 %v857, 24
      %v1341 = vpop.permute.xlu0 %1340
      %1342 = vrot.lane.b32.xlu0 %v858, 24
      %v1343 = vpop.permute.xlu0 %1342
      %1344 = vrot.lane.b32.xlu0 %v860, 24
      %v1345 = vpop.permute.xlu0 %1344
      %1346 = vrot.lane.b32.xlu0 %v861, 24
      %v1347 = vpop.permute.xlu0 %1346
      %1348 = vrot.lane.b32.xlu0 %v863, 24
      %v1349 = vpop.permute.xlu0 %1348
      %1350 = vrot.lane.b32.xlu0 %v864, 24
      %v1351 = vpop.permute.xlu0 %1350
      %1352 = vrot.lane.b32.xlu0 %v866, 24
      %v1353 = vpop.permute.xlu0 %1352
      %1354 = vrot.lane.b32.xlu0 %v867, 24
      %v1355 = vpop.permute.xlu0 %1354
      %1356 = vrot.lane.b32.xlu0 %v869, 24
      %v1357 = vpop.permute.xlu0 %1356
      %1358 = vrot.lane.b32.xlu0 %v870, 24
      %v1359 = vpop.permute.xlu0 %1358
      %1360 = vrot.lane.b32.xlu0 %v872, 24
      %v1361 = vpop.permute.xlu0 %1360
      %1362 = vrot.lane.b32.xlu0 %v873, 24
      %v1363 = vpop.permute.xlu0 %1362
      %1364 = vrot.lane.b32.xlu0 %v875, 24
      %v1365 = vpop.permute.xlu0 %1364
      %1366 = vrot.lane.b32.xlu0 %v876, 24
      %v1367 = vpop.permute.xlu0 %1366
      %1368 = vrot.lane.b32.xlu0 %v878, 24
      %v1369 = vpop.permute.xlu0 %1368
      %1370 = vrot.lane.b32.xlu0 %v879, 24
      %v1371 = vpop.permute.xlu0 %1370
      %1372 = vrot.lane.b32.xlu0 %v881, 24
      %v1373 = vpop.permute.xlu0 %1372
      %1374 = vrot.lane.b32.xlu0 %v882, 24
      %v1375 = vpop.permute.xlu0 %1374
      %1376 = vrot.lane.b32.xlu0 %v884, 24
      %v1377 = vpop.permute.xlu0 %1376
      %1378 = vrot.lane.b32.xlu0 %v885, 24
      %v1379 = vpop.permute.xlu0 %1378
      %1380 = vrot.lane.b32.xlu0 %v887, 24
      %v1381 = vpop.permute.xlu0 %1380
      %1382 = vrot.lane.b32.xlu0 %v888, 24
      %v1383 = vpop.permute.xlu0 %1382
      %1384 = vrot.lane.b32.xlu0 %v890, 24
      %v1385 = vpop.permute.xlu0 %1384
      %1386 = vrot.lane.b32.xlu0 %v891, 24
      %v1387 = vpop.permute.xlu0 %1386
      %1420 = vrot.lane.b32.xlu0 %v952, 32
      %v1421 = vpop.permute.xlu0 %1420
      %1422 = vrot.lane.b32.xlu0 %v954, 32
      %v1423 = vpop.permute.xlu0 %1422
      %1424 = vrot.lane.b32.xlu0 %v957, 32
      %v1425 = vpop.permute.xlu0 %1424
      %1426 = vrot.lane.b32.xlu0 %v959, 32
      %v1427 = vpop.permute.xlu0 %1426
      %1428 = vrot.lane.b32.xlu0 %v962, 32
      %v1429 = vpop.permute.xlu0 %1428
      %1430 = vrot.lane.b32.xlu0 %v964, 32
      %v1431 = vpop.permute.xlu0 %1430
      %1432 = vrot.lane.b32.xlu0 %v967, 32
      %v1433 = vpop.permute.xlu0 %1432
      %1434 = vrot.lane.b32.xlu0 %v969, 32
      %v1435 = vpop.permute.xlu0 %1434
      %1436 = vrot.lane.b32.xlu0 %v972, 32
      %v1437 = vpop.permute.xlu0 %1436
      %1438 = vrot.lane.b32.xlu0 %v974, 32
      %v1439 = vpop.permute.xlu0 %1438
      %1440 = vrot.lane.b32.xlu0 %v977, 32
      %v1441 = vpop.permute.xlu0 %1440
      %1442 = vrot.lane.b32.xlu0 %v979, 32
      %v1443 = vpop.permute.xlu0 %1442
      %1444 = vrot.lane.b32.xlu0 %v982, 32
      %v1445 = vpop.permute.xlu0 %1444
      %1446 = vrot.lane.b32.xlu0 %v984, 32
      %v1447 = vpop.permute.xlu0 %1446
      %1448 = vrot.lane.b32.xlu0 %v987, 32
      %v1449 = vpop.permute.xlu0 %1448
      %1450 = vrot.lane.b32.xlu0 %v989, 32
      %v1451 = vpop.permute.xlu0 %1450
      %1452 = vrot.lane.b32.xlu0 %v992, 32
      %v1453 = vpop.permute.xlu0 %1452
      %1454 = vrot.lane.b32.xlu0 %v994, 32
      %v1455 = vpop.permute.xlu0 %1454
      %1456 = vrot.lane.b32.xlu0 %v997, 32
      %v1457 = vpop.permute.xlu0 %1456
      %1458 = vrot.lane.b32.xlu0 %v999, 32
      %v1459 = vpop.permute.xlu0 %1458
      %1460 = vrot.lane.b32.xlu0 %v1002, 32
      %v1461 = vpop.permute.xlu0 %1460
      %1462 = vrot.lane.b32.xlu0 %v1004, 32
      %v1463 = vpop.permute.xlu0 %1462
      %1464 = vrot.lane.b32.xlu0 %v1007, 32
      %v1465 = vpop.permute.xlu0 %1464
      %1466 = vrot.lane.b32.xlu0 %v1009, 32
      %v1467 = vpop.permute.xlu0 %1466
      %1468 = vrot.lane.b32.xlu0 %v1012, 32
      %v1469 = vpop.permute.xlu0 %1468
      %1470 = vrot.lane.b32.xlu0 %v1014, 32
      %v1471 = vpop.permute.xlu0 %1470
      %1472 = vrot.lane.b32.xlu0 %v1017, 32
      %v1473 = vpop.permute.xlu0 %1472
      %1474 = vrot.lane.b32.xlu0 %v1019, 32
      %v1475 = vpop.permute.xlu0 %1474
      %1476 = vrot.lane.b32.xlu0 %v1022, 32
      %v1477 = vpop.permute.xlu0 %1476
      %1478 = vrot.lane.b32.xlu0 %v1024, 32
      %v1479 = vpop.permute.xlu0 %1478
      %1480 = vrot.lane.b32.xlu0 %v1111, 32
      %v1481 = vpop.permute.xlu0 %1480
      %1482 = vrot.lane.b32.xlu0 %v1113, 32
      %v1483 = vpop.permute.xlu0 %1482
      %1516 = vrot.lane.b32.xlu0 %v1033, 40
      %v1517 = vpop.permute.xlu0 %1516
      %1518 = vrot.lane.b32.xlu0 %v1035, 40
      %v1519 = vpop.permute.xlu0 %1518
      %1520 = vrot.lane.b32.xlu0 %v1038, 40
      %v1521 = vpop.permute.xlu0 %1520
      %1522 = vrot.lane.b32.xlu0 %v1040, 40
      %v1523 = vpop.permute.xlu0 %1522
      %1524 = vrot.lane.b32.xlu0 %v1043, 40
      %v1525 = vpop.permute.xlu0 %1524
      %1526 = vrot.lane.b32.xlu0 %v1045, 40
      %v1527 = vpop.permute.xlu0 %1526
      %1528 = vrot.lane.b32.xlu0 %v1048, 40
      %v1529 = vpop.permute.xlu0 %1528
      %1530 = vrot.lane.b32.xlu0 %v1050, 40
      %v1531 = vpop.permute.xlu0 %1530
      %1532 = vrot.lane.b32.xlu0 %v1053, 40
      %v1533 = vpop.permute.xlu0 %1532
      %1534 = vrot.lane.b32.xlu0 %v1055, 40
      %v1535 = vpop.permute.xlu0 %1534
      %1536 = vrot.lane.b32.xlu0 %v1058, 40
      %v1537 = vpop.permute.xlu0 %1536
      %1538 = vrot.lane.b32.xlu0 %v1060, 40
      %v1539 = vpop.permute.xlu0 %1538
      %1540 = vrot.lane.b32.xlu0 %v1063, 40
      %v1541 = vpop.permute.xlu0 %1540
      %1542 = vrot.lane.b32.xlu0 %v1065, 40
      %v1543 = vpop.permute.xlu0 %1542
      %1544 = vrot.lane.b32.xlu0 %v1068, 40
      %v1545 = vpop.permute.xlu0 %1544
      %1546 = vrot.lane.b32.xlu0 %v1070, 40
      %v1547 = vpop.permute.xlu0 %1546
      %1548 = vrot.lane.b32.xlu0 %v1073, 40
      %v1549 = vpop.permute.xlu0 %1548
      %1550 = vrot.lane.b32.xlu0 %v1075, 40
      %v1551 = vpop.permute.xlu0 %1550
      %1552 = vrot.lane.b32.xlu0 %v1078, 40
      %v1553 = vpop.permute.xlu0 %1552
      %1554 = vrot.lane.b32.xlu0 %v1080, 40
      %v1555 = vpop.permute.xlu0 %1554
      %1556 = vrot.lane.b32.xlu0 %v1083, 40
      %v1557 = vpop.permute.xlu0 %1556
      %1558 = vrot.lane.b32.xlu0 %v1085, 40
      %v1559 = vpop.permute.xlu0 %1558
      %1560 = vrot.lane.b32.xlu0 %v1088, 40
      %v1561 = vpop.permute.xlu0 %1560
      %1562 = vrot.lane.b32.xlu0 %v1090, 40
      %v1563 = vpop.permute.xlu0 %1562
      %1564 = vrot.lane.b32.xlu0 %v1093, 40
      %v1565 = vpop.permute.xlu0 %1564
      %1566 = vrot.lane.b32.xlu0 %v1095, 40
      %v1567 = vpop.permute.xlu0 %1566
      %1568 = vrot.lane.b32.xlu0 %v1098, 40
      %v1569 = vpop.permute.xlu0 %1568
      %1570 = vrot.lane.b32.xlu0 %v1100, 40
      %v1571 = vpop.permute.xlu0 %1570
      %1572 = vrot.lane.b32.xlu0 %v1103, 40
      %v1573 = vpop.permute.xlu0 %1572
      %1574 = vrot.lane.b32.xlu0 %v1105, 40
      %v1575 = vpop.permute.xlu0 %1574
      %1576 = vrot.lane.b32.xlu0 %v1116, 40
      %v1577 = vpop.permute.xlu0 %1576
      %1578 = vrot.lane.b32.xlu0 %v1118, 40
      %v1579 = vpop.permute.xlu0 %1578
      %1612 = vrot.lane.b32.xlu0 %v848, 48
      %v1613 = vpop.permute.xlu0 %1612
      %1614 = vrot.lane.b32.xlu0 %v849, 48
      %v1615 = vpop.permute.xlu0 %1614
      %1616 = vrot.lane.b32.xlu0 %v851, 48
      %v1617 = vpop.permute.xlu0 %1616
      %1618 = vrot.lane.b32.xlu0 %v852, 48
      %v1619 = vpop.permute.xlu0 %1618
      %1620 = vrot.lane.b32.xlu0 %v854, 48
      %v1621 = vpop.permute.xlu0 %1620
      %1622 = vrot.lane.b32.xlu0 %v855, 48
      %v1623 = vpop.permute.xlu0 %1622
      %1624 = vrot.lane.b32.xlu0 %v857, 48
      %v1625 = vpop.permute.xlu0 %1624
      %1626 = vrot.lane.b32.xlu0 %v858, 48
      %v1627 = vpop.permute.xlu0 %1626
      %1628 = vrot.lane.b32.xlu0 %v860, 48
      %v1629 = vpop.permute.xlu0 %1628
      %1630 = vrot.lane.b32.xlu0 %v861, 48
      %v1631 = vpop.permute.xlu0 %1630
      %1632 = vrot.lane.b32.xlu0 %v863, 48
      %v1633 = vpop.permute.xlu0 %1632
      %1634 = vrot.lane.b32.xlu0 %v864, 48
      %v1635 = vpop.permute.xlu0 %1634
      %1636 = vrot.lane.b32.xlu0 %v866, 48
      %v1637 = vpop.permute.xlu0 %1636
      %1638 = vrot.lane.b32.xlu0 %v867, 48
      %v1639 = vpop.permute.xlu0 %1638
      %1640 = vrot.lane.b32.xlu0 %v869, 48
      %v1641 = vpop.permute.xlu0 %1640
      %1642 = vrot.lane.b32.xlu0 %v870, 48
      %v1643 = vpop.permute.xlu0 %1642
      %1644 = vrot.lane.b32.xlu0 %v872, 48
      %v1645 = vpop.permute.xlu0 %1644
      %1646 = vrot.lane.b32.xlu0 %v873, 48
      %v1647 = vpop.permute.xlu0 %1646
      %1648 = vrot.lane.b32.xlu0 %v875, 48
      %v1649 = vpop.permute.xlu0 %1648
      %1650 = vrot.lane.b32.xlu0 %v876, 48
      %v1651 = vpop.permute.xlu0 %1650
      %1652 = vrot.lane.b32.xlu0 %v878, 48
      %v1653 = vpop.permute.xlu0 %1652
      %1654 = vrot.lane.b32.xlu0 %v879, 48
      %v1655 = vpop.permute.xlu0 %1654
      %1656 = vrot.lane.b32.xlu0 %v881, 48
      %v1657 = vpop.permute.xlu0 %1656
      %1658 = vrot.lane.b32.xlu0 %v882, 48
      %v1659 = vpop.permute.xlu0 %1658
      %1660 = vrot.lane.b32.xlu0 %v884, 48
      %v1661 = vpop.permute.xlu0 %1660
      %1662 = vrot.lane.b32.xlu0 %v885, 48
      %v1663 = vpop.permute.xlu0 %1662
      %1664 = vrot.lane.b32.xlu0 %v887, 48
      %v1665 = vpop.permute.xlu0 %1664
      %1666 = vrot.lane.b32.xlu0 %v888, 48
      %v1667 = vpop.permute.xlu0 %1666
      %1668 = vrot.lane.b32.xlu0 %v890, 48
      %v1669 = vpop.permute.xlu0 %1668
      %1670 = vrot.lane.b32.xlu0 %v891, 48
      %v1671 = vpop.permute.xlu0 %1670
      %1672 = vrot.lane.b32.xlu0 %v893, 48
      %v1673 = vpop.permute.xlu0 %1672
      %1674 = vrot.lane.b32.xlu0 %v894, 48
      %v1675 = vpop.permute.xlu0 %1674
      %1708 = vrot.lane.b32.xlu0 %v957, 56
      %v1709 = vpop.permute.xlu0 %1708
      %1710 = vrot.lane.b32.xlu0 %v959, 56
      %v1711 = vpop.permute.xlu0 %1710
      %1712 = vrot.lane.b32.xlu0 %v962, 56
      %v1713 = vpop.permute.xlu0 %1712
      %1714 = vrot.lane.b32.xlu0 %v964, 56
      %v1715 = vpop.permute.xlu0 %1714
      %1716 = vrot.lane.b32.xlu0 %v967, 56
      %v1717 = vpop.permute.xlu0 %1716
      %1718 = vrot.lane.b32.xlu0 %v969, 56
      %v1719 = vpop.permute.xlu0 %1718
      %1720 = vrot.lane.b32.xlu0 %v972, 56
      %v1721 = vpop.permute.xlu0 %1720
      %1722 = vrot.lane.b32.xlu0 %v974, 56
      %v1723 = vpop.permute.xlu0 %1722
      %1724 = vrot.lane.b32.xlu0 %v977, 56
      %v1725 = vpop.permute.xlu0 %1724
      %1726 = vrot.lane.b32.xlu0 %v979, 56
      %v1727 = vpop.permute.xlu0 %1726
      %1728 = vrot.lane.b32.xlu0 %v982, 56
      %v1729 = vpop.permute.xlu0 %1728
      %1730 = vrot.lane.b32.xlu0 %v984, 56
      %v1731 = vpop.permute.xlu0 %1730
      %1732 = vrot.lane.b32.xlu0 %v987, 56
      %v1733 = vpop.permute.xlu0 %1732
      %1734 = vrot.lane.b32.xlu0 %v989, 56
      %v1735 = vpop.permute.xlu0 %1734
      %1736 = vrot.lane.b32.xlu0 %v992, 56
      %v1737 = vpop.permute.xlu0 %1736
      %1738 = vrot.lane.b32.xlu0 %v994, 56
      %v1739 = vpop.permute.xlu0 %1738
      %1740 = vrot.lane.b32.xlu0 %v997, 56
      %v1741 = vpop.permute.xlu0 %1740
      %1742 = vrot.lane.b32.xlu0 %v999, 56
      %v1743 = vpop.permute.xlu0 %1742
      %1744 = vrot.lane.b32.xlu0 %v1002, 56
      %v1745 = vpop.permute.xlu0 %1744
      %1746 = vrot.lane.b32.xlu0 %v1004, 56
      %v1747 = vpop.permute.xlu0 %1746
      %1748 = vrot.lane.b32.xlu0 %v1007, 56
      %v1749 = vpop.permute.xlu0 %1748
      %1750 = vrot.lane.b32.xlu0 %v1009, 56
      %v1751 = vpop.permute.xlu0 %1750
      %1752 = vrot.lane.b32.xlu0 %v1012, 56
      %v1753 = vpop.permute.xlu0 %1752
      %1754 = vrot.lane.b32.xlu0 %v1014, 56
      %v1755 = vpop.permute.xlu0 %1754
      %1756 = vrot.lane.b32.xlu0 %v1017, 56
      %v1757 = vpop.permute.xlu0 %1756
      %1758 = vrot.lane.b32.xlu0 %v1019, 56
      %v1759 = vpop.permute.xlu0 %1758
      %1760 = vrot.lane.b32.xlu0 %v1022, 56
      %v1761 = vpop.permute.xlu0 %1760
      %1762 = vrot.lane.b32.xlu0 %v1024, 56
      %v1763 = vpop.permute.xlu0 %1762
      %1764 = vrot.lane.b32.xlu0 %v1111, 56
      %v1765 = vpop.permute.xlu0 %1764
      %1766 = vrot.lane.b32.xlu0 %v1113, 56
      %v1767 = vpop.permute.xlu0 %1766
      %1768 = vrot.lane.b32.xlu0 %v1124, 56
      %v1769 = vpop.permute.xlu0 %1768
      %1770 = vrot.lane.b32.xlu0 %v1126, 56
      %v1771 = vpop.permute.xlu0 %1770
      %1804 = vrot.lane.b32.xlu0 %v1038, 64
      %v1805 = vpop.permute.xlu0 %1804
      %1806 = vrot.lane.b32.xlu0 %v1040, 64
      %v1807 = vpop.permute.xlu0 %1806
      %1808 = vrot.lane.b32.xlu0 %v1043, 64
      %v1809 = vpop.permute.xlu0 %1808
      %1810 = vrot.lane.b32.xlu0 %v1045, 64
      %v1811 = vpop.permute.xlu0 %1810
      %1812 = vrot.lane.b32.xlu0 %v1048, 64
      %v1813 = vpop.permute.xlu0 %1812
      %1814 = vrot.lane.b32.xlu0 %v1050, 64
      %v1815 = vpop.permute.xlu0 %1814
      %1816 = vrot.lane.b32.xlu0 %v1053, 64
      %v1817 = vpop.permute.xlu0 %1816
      %1818 = vrot.lane.b32.xlu0 %v1055, 64
      %v1819 = vpop.permute.xlu0 %1818
      %1820 = vrot.lane.b32.xlu0 %v1058, 64
      %v1821 = vpop.permute.xlu0 %1820
      %1822 = vrot.lane.b32.xlu0 %v1060, 64
      %v1823 = vpop.permute.xlu0 %1822
      %1824 = vrot.lane.b32.xlu0 %v1063, 64
      %v1825 = vpop.permute.xlu0 %1824
      %1826 = vrot.lane.b32.xlu0 %v1065, 64
      %v1827 = vpop.permute.xlu0 %1826
      %1828 = vrot.lane.b32.xlu0 %v1068, 64
      %v1829 = vpop.permute.xlu0 %1828
      %1830 = vrot.lane.b32.xlu0 %v1070, 64
      %v1831 = vpop.permute.xlu0 %1830
      %1832 = vrot.lane.b32.xlu0 %v1073, 64
      %v1833 = vpop.permute.xlu0 %1832
      %1834 = vrot.lane.b32.xlu0 %v1075, 64
      %v1835 = vpop.permute.xlu0 %1834
      %1836 = vrot.lane.b32.xlu0 %v1078, 64
      %v1837 = vpop.permute.xlu0 %1836
      %1838 = vrot.lane.b32.xlu0 %v1080, 64
      %v1839 = vpop.permute.xlu0 %1838
      %1840 = vrot.lane.b32.xlu0 %v1083, 64
      %v1841 = vpop.permute.xlu0 %1840
      %1842 = vrot.lane.b32.xlu0 %v1085, 64
      %v1843 = vpop.permute.xlu0 %1842
      %1844 = vrot.lane.b32.xlu0 %v1088, 64
      %v1845 = vpop.permute.xlu0 %1844
      %1846 = vrot.lane.b32.xlu0 %v1090, 64
      %v1847 = vpop.permute.xlu0 %1846
      %1848 = vrot.lane.b32.xlu0 %v1093, 64
      %v1849 = vpop.permute.xlu0 %1848
      %1850 = vrot.lane.b32.xlu0 %v1095, 64
      %v1851 = vpop.permute.xlu0 %1850
      %1852 = vrot.lane.b32.xlu0 %v1098, 64
      %v1853 = vpop.permute.xlu0 %1852
      %1854 = vrot.lane.b32.xlu0 %v1100, 64
      %v1855 = vpop.permute.xlu0 %1854
      %1856 = vrot.lane.b32.xlu0 %v1103, 64
      %v1857 = vpop.permute.xlu0 %1856
      %1858 = vrot.lane.b32.xlu0 %v1105, 64
      %v1859 = vpop.permute.xlu0 %1858
      %1860 = vrot.lane.b32.xlu0 %v1116, 64
      %v1861 = vpop.permute.xlu0 %1860
      %1862 = vrot.lane.b32.xlu0 %v1118, 64
      %v1863 = vpop.permute.xlu0 %1862
      %1864 = vrot.lane.b32.xlu0 %v1129, 64
      %v1865 = vpop.permute.xlu0 %1864
      %1866 = vrot.lane.b32.xlu0 %v1131, 64
      %v1867 = vpop.permute.xlu0 %1866
      %v1900 = vsel %vm334, %v842, %v1133
      %v1901 = vsel %vm334, %v843, %v1135
      %v1902 = vsel %vm334, %v845, %v1137
      %v1903 = vsel %vm334, %v846, %v1139
      %v1904 = vsel %vm334, %v848, %v1141
      %v1905 = vsel %vm334, %v849, %v1143
      %v1906 = vsel %vm334, %v851, %v1145
      %v1907 = vsel %vm334, %v852, %v1147
      %v1908 = vsel %vm334, %v854, %v1149
      %v1909 = vsel %vm334, %v855, %v1151
      %v1910 = vsel %vm334, %v857, %v1153
      %v1911 = vsel %vm334, %v858, %v1155
      %v1912 = vsel %vm334, %v860, %v1157
      %v1913 = vsel %vm334, %v861, %v1159
      %v1914 = vsel %vm334, %v863, %v1161
      %v1915 = vsel %vm334, %v864, %v1163
      %v1916 = vsel %vm334, %v866, %v1165
      %v1917 = vsel %vm334, %v867, %v1167
      %v1918 = vsel %vm334, %v869, %v1169
      %v1919 = vsel %vm334, %v870, %v1171
      %v1920 = vsel %vm334, %v872, %v1173
      %v1921 = vsel %vm334, %v873, %v1175
      %v1922 = vsel %vm334, %v875, %v1177
      %v1923 = vsel %vm334, %v876, %v1179
      %v1924 = vsel %vm334, %v878, %v1181
      %v1925 = vsel %vm334, %v879, %v1183
      %v1926 = vsel %vm334, %v881, %v1185
      %v1927 = vsel %vm334, %v882, %v1187
      %v1928 = vsel %vm334, %v884, %v1189
      %v1929 = vsel %vm334, %v885, %v1191
      %v1930 = vsel %vm334, %v887, %v1193
      %v1931 = vsel %vm334, %v888, %v1195
      %vm1932 = vcmask 130048
      %v1933 = vsel %vm1932, %v1900, %v1229
      %v1934 = vsel %vm1932, %v1901, %v1231
      %v1935 = vsel %vm1932, %v1902, %v1233
      %v1936 = vsel %vm1932, %v1903, %v1235
      %v1937 = vsel %vm1932, %v1904, %v1237
      %v1938 = vsel %vm1932, %v1905, %v1239
      %v1939 = vsel %vm1932, %v1906, %v1241
      %v1940 = vsel %vm1932, %v1907, %v1243
      %v1941 = vsel %vm1932, %v1908, %v1245
      %v1942 = vsel %vm1932, %v1909, %v1247
      %v1943 = vsel %vm1932, %v1910, %v1249
      %v1944 = vsel %vm1932, %v1911, %v1251
      %v1945 = vsel %vm1932, %v1912, %v1253
      %v1946 = vsel %vm1932, %v1913, %v1255
      %v1947 = vsel %vm1932, %v1914, %v1257
      %v1948 = vsel %vm1932, %v1915, %v1259
      %v1949 = vsel %vm1932, %v1916, %v1261
      %v1950 = vsel %vm1932, %v1917, %v1263
      %v1951 = vsel %vm1932, %v1918, %v1265
      %v1952 = vsel %vm1932, %v1919, %v1267
      %v1953 = vsel %vm1932, %v1920, %v1269
      %v1954 = vsel %vm1932, %v1921, %v1271
      %v1955 = vsel %vm1932, %v1922, %v1273
      %v1956 = vsel %vm1932, %v1923, %v1275
      %v1957 = vsel %vm1932, %v1924, %v1277
      %v1958 = vsel %vm1932, %v1925, %v1279
      %v1959 = vsel %vm1932, %v1926, %v1281
      %v1960 = vsel %vm1932, %v1927, %v1283
      %v1961 = vsel %vm1932, %v1928, %v1285
      %v1962 = vsel %vm1932, %v1929, %v1287
      %v1963 = vsel %vm1932, %v1930, %v1289
      %v1964 = vsel %vm1932, %v1931, %v1291
      %vm1965 = vcmask 195584
      %v1966 = vsel %vm1965, %v1933, %v1325
      %v1967 = vsel %vm1965, %v1934, %v1327
      %v1968 = vsel %vm1965, %v1935, %v1329
      %v1969 = vsel %vm1965, %v1936, %v1331
      %v1970 = vsel %vm1965, %v1937, %v1333
      %v1971 = vsel %vm1965, %v1938, %v1335
      %v1972 = vsel %vm1965, %v1939, %v1337
      %v1973 = vsel %vm1965, %v1940, %v1339
      %v1974 = vsel %vm1965, %v1941, %v1341
      %v1975 = vsel %vm1965, %v1942, %v1343
      %v1976 = vsel %vm1965, %v1943, %v1345
      %v1977 = vsel %vm1965, %v1944, %v1347
      %v1978 = vsel %vm1965, %v1945, %v1349
      %v1979 = vsel %vm1965, %v1946, %v1351
      %v1980 = vsel %vm1965, %v1947, %v1353
      %v1981 = vsel %vm1965, %v1948, %v1355
      %v1982 = vsel %vm1965, %v1949, %v1357
      %v1983 = vsel %vm1965, %v1950, %v1359
      %v1984 = vsel %vm1965, %v1951, %v1361
      %v1985 = vsel %vm1965, %v1952, %v1363
      %v1986 = vsel %vm1965, %v1953, %v1365
      %v1987 = vsel %vm1965, %v1954, %v1367
      %v1988 = vsel %vm1965, %v1955, %v1369
      %v1989 = vsel %vm1965, %v1956, %v1371
      %v1990 = vsel %vm1965, %v1957, %v1373
      %v1991 = vsel %vm1965, %v1958, %v1375
      %v1992 = vsel %vm1965, %v1959, %v1377
      %v1993 = vsel %vm1965, %v1960, %v1379
      %v1994 = vsel %vm1965, %v1961, %v1381
      %v1995 = vsel %vm1965, %v1962, %v1383
      %v1996 = vsel %vm1965, %v1963, %v1385
      %v1997 = vsel %vm1965, %v1964, %v1387
      %vm1998 = vcmask 261120
      %v1999 = vsel %vm1998, %v1966, %v1421
      %v2000 = vsel %vm1998, %v1967, %v1423
      %v2001 = vsel %vm1998, %v1968, %v1425
      %v2002 = vsel %vm1998, %v1969, %v1427
      %v2003 = vsel %vm1998, %v1970, %v1429
      %v2004 = vsel %vm1998, %v1971, %v1431
      %v2005 = vsel %vm1998, %v1972, %v1433
      %v2006 = vsel %vm1998, %v1973, %v1435
      %v2007 = vsel %vm1998, %v1974, %v1437
      %v2008 = vsel %vm1998, %v1975, %v1439
      %v2009 = vsel %vm1998, %v1976, %v1441
      %v2010 = vsel %vm1998, %v1977, %v1443
      %v2011 = vsel %vm1998, %v1978, %v1445
      %v2012 = vsel %vm1998, %v1979, %v1447
      %v2013 = vsel %vm1998, %v1980, %v1449
      %v2014 = vsel %vm1998, %v1981, %v1451
      %v2015 = vsel %vm1998, %v1982, %v1453
      %v2016 = vsel %vm1998, %v1983, %v1455
      %v2017 = vsel %vm1998, %v1984, %v1457
      %v2018 = vsel %vm1998, %v1985, %v1459
      %v2019 = vsel %vm1998, %v1986, %v1461
      %v2020 = vsel %vm1998, %v1987, %v1463
      %v2021 = vsel %vm1998, %v1988, %v1465
      %v2022 = vsel %vm1998, %v1989, %v1467
      %v2023 = vsel %vm1998, %v1990, %v1469
      %v2024 = vsel %vm1998, %v1991, %v1471
      %v2025 = vsel %vm1998, %v1992, %v1473
      %v2026 = vsel %vm1998, %v1993, %v1475
      %v2027 = vsel %vm1998, %v1994, %v1477
      %v2028 = vsel %vm1998, %v1995, %v1479
      %v2029 = vsel %vm1998, %v1996, %v1481
      %v2030 = vsel %vm1998, %v1997, %v1483
      %vm2031 = vcmask 326656
      %v2032 = vsel %vm2031, %v1999, %v1517
      %v2033 = vsel %vm2031, %v2000, %v1519
      %v2034 = vsel %vm2031, %v2001, %v1521
      %v2035 = vsel %vm2031, %v2002, %v1523
      %v2036 = vsel %vm2031, %v2003, %v1525
      %v2037 = vsel %vm2031, %v2004, %v1527
      %v2038 = vsel %vm2031, %v2005, %v1529
      %v2039 = vsel %vm2031, %v2006, %v1531
      %v2040 = vsel %vm2031, %v2007, %v1533
      %v2041 = vsel %vm2031, %v2008, %v1535
      %v2042 = vsel %vm2031, %v2009, %v1537
      %v2043 = vsel %vm2031, %v2010, %v1539
      %v2044 = vsel %vm2031, %v2011, %v1541
      %v2045 = vsel %vm2031, %v2012, %v1543
      %v2046 = vsel %vm2031, %v2013, %v1545
      %v2047 = vsel %vm2031, %v2014, %v1547
      %v2048 = vsel %vm2031, %v2015, %v1549
      %v2049 = vsel %vm2031, %v2016, %v1551
      %v2050 = vsel %vm2031, %v2017, %v1553
      %v2051 = vsel %vm2031, %v2018, %v1555
      %v2052 = vsel %vm2031, %v2019, %v1557
      %v2053 = vsel %vm2031, %v2020, %v1559
      %v2054 = vsel %vm2031, %v2021, %v1561
      %v2055 = vsel %vm2031, %v2022, %v1563
      %v2056 = vsel %vm2031, %v2023, %v1565
      %v2057 = vsel %vm2031, %v2024, %v1567
      %v2058 = vsel %vm2031, %v2025, %v1569
      %v2059 = vsel %vm2031, %v2026, %v1571
      %v2060 = vsel %vm2031, %v2027, %v1573
      %v2061 = vsel %vm2031, %v2028, %v1575
      %v2062 = vsel %vm2031, %v2029, %v1577
      %v2063 = vsel %vm2031, %v2030, %v1579
      %vm2064 = vcmask 392192
      %v2065 = vsel %vm2064, %v2032, %v1613
      %v2066 = vsel %vm2064, %v2033, %v1615
      %v2067 = vsel %vm2064, %v2034, %v1617
      %v2068 = vsel %vm2064, %v2035, %v1619
      %v2069 = vsel %vm2064, %v2036, %v1621
      %v2070 = vsel %vm2064, %v2037, %v1623
      %v2071 = vsel %vm2064, %v2038, %v1625
      %v2072 = vsel %vm2064, %v2039, %v1627
      %v2073 = vsel %vm2064, %v2040, %v1629
      %v2074 = vsel %vm2064, %v2041, %v1631
      %v2075 = vsel %vm2064, %v2042, %v1633
      %v2076 = vsel %vm2064, %v2043, %v1635
      %v2077 = vsel %vm2064, %v2044, %v1637
      %v2078 = vsel %vm2064, %v2045, %v1639
      %v2079 = vsel %vm2064, %v2046, %v1641
      %v2080 = vsel %vm2064, %v2047, %v1643
      %v2081 = vsel %vm2064, %v2048, %v1645
      %v2082 = vsel %vm2064, %v2049, %v1647
      %v2083 = vsel %vm2064, %v2050, %v1649
      %v2084 = vsel %vm2064, %v2051, %v1651
      %v2085 = vsel %vm2064, %v2052, %v1653
      %v2086 = vsel %vm2064, %v2053, %v1655
      %v2087 = vsel %vm2064, %v2054, %v1657
      %v2088 = vsel %vm2064, %v2055, %v1659
      %v2089 = vsel %vm2064, %v2056, %v1661
      %v2090 = vsel %vm2064, %v2057, %v1663
      %v2091 = vsel %vm2064, %v2058, %v1665
      %v2092 = vsel %vm2064, %v2059, %v1667
      %v2093 = vsel %vm2064, %v2060, %v1669
      %v2094 = vsel %vm2064, %v2061, %v1671
      %v2095 = vsel %vm2064, %v2062, %v1673
      %v2096 = vsel %vm2064, %v2063, %v1675
      %vm2097 = vcmask 457728
      %v2098 = vsel %vm2097, %v2065, %v1709
      %v2099 = vsel %vm2097, %v2066, %v1711
      %v2100 = vsel %vm2097, %v2067, %v1713
      %v2101 = vsel %vm2097, %v2068, %v1715
      %v2102 = vsel %vm2097, %v2069, %v1717
      %v2103 = vsel %vm2097, %v2070, %v1719
      %v2104 = vsel %vm2097, %v2071, %v1721
      %v2105 = vsel %vm2097, %v2072, %v1723
      %v2106 = vsel %vm2097, %v2073, %v1725
      %v2107 = vsel %vm2097, %v2074, %v1727
      %v2108 = vsel %vm2097, %v2075, %v1729
      %v2109 = vsel %vm2097, %v2076, %v1731
      %v2110 = vsel %vm2097, %v2077, %v1733
      %v2111 = vsel %vm2097, %v2078, %v1735
      %v2112 = vsel %vm2097, %v2079, %v1737
      %v2113 = vsel %vm2097, %v2080, %v1739
      %v2114 = vsel %vm2097, %v2081, %v1741
      %v2115 = vsel %vm2097, %v2082, %v1743
      %v2116 = vsel %vm2097, %v2083, %v1745
      %v2117 = vsel %vm2097, %v2084, %v1747
      %v2118 = vsel %vm2097, %v2085, %v1749
      %v2119 = vsel %vm2097, %v2086, %v1751
      %v2120 = vsel %vm2097, %v2087, %v1753
      %v2121 = vsel %vm2097, %v2088, %v1755
      %v2122 = vsel %vm2097, %v2089, %v1757
      %v2123 = vsel %vm2097, %v2090, %v1759
      %v2124 = vsel %vm2097, %v2091, %v1761
      %v2125 = vsel %vm2097, %v2092, %v1763
      %v2126 = vsel %vm2097, %v2093, %v1765
      %v2127 = vsel %vm2097, %v2094, %v1767
      %v2128 = vsel %vm2097, %v2095, %v1769
      %v2129 = vsel %vm2097, %v2096, %v1771
      %vm2130 = vcmask 523264
      %v2131 = vsel %vm2130, %v2098, %v1805
      %v2132 = vsel %vm2130, %v2099, %v1807
      %v2133 = vsel %vm2130, %v2100, %v1809
      %v2134 = vsel %vm2130, %v2101, %v1811
      %v2135 = vsel %vm2130, %v2102, %v1813
      %v2136 = vsel %vm2130, %v2103, %v1815
      %v2137 = vsel %vm2130, %v2104, %v1817
      %v2138 = vsel %vm2130, %v2105, %v1819
      %v2139 = vsel %vm2130, %v2106, %v1821
      %v2140 = vsel %vm2130, %v2107, %v1823
      %v2141 = vsel %vm2130, %v2108, %v1825
      %v2142 = vsel %vm2130, %v2109, %v1827
      %v2143 = vsel %vm2130, %v2110, %v1829
      %v2144 = vsel %vm2130, %v2111, %v1831
      %v2145 = vsel %vm2130, %v2112, %v1833
      %v2146 = vsel %vm2130, %v2113, %v1835
      %v2147 = vsel %vm2130, %v2114, %v1837
      %v2148 = vsel %vm2130, %v2115, %v1839
      %v2149 = vsel %vm2130, %v2116, %v1841
      %v2150 = vsel %vm2130, %v2117, %v1843
      %v2151 = vsel %vm2130, %v2118, %v1845
      %v2152 = vsel %vm2130, %v2119, %v1847
      %v2153 = vsel %vm2130, %v2120, %v1849
      %v2154 = vsel %vm2130, %v2121, %v1851
      %v2155 = vsel %vm2130, %v2122, %v1853
      %v2156 = vsel %vm2130, %v2123, %v1855
      %v2157 = vsel %vm2130, %v2124, %v1857
      %v2158 = vsel %vm2130, %v2125, %v1859
      %v2159 = vsel %vm2130, %v2126, %v1861
      %v2160 = vsel %vm2130, %v2127, %v1863
      %v2161 = vsel %vm2130, %v2128, %v1865
      %v2162 = vsel %vm2130, %v2129, %v1867
      %v2163 = vpack.c.bf16 %v2132, %v2131
      %v2164 = vpack.c.bf16 %v2134, %v2133
      %v2165 = vpack.c.bf16 %v2136, %v2135
      %v2166 = vpack.c.bf16 %v2138, %v2137
      %v2167 = vpack.c.bf16 %v2140, %v2139
      %v2168 = vpack.c.bf16 %v2142, %v2141
      %v2169 = vpack.c.bf16 %v2144, %v2143
      %v2170 = vpack.c.bf16 %v2146, %v2145
      %v2171 = vpack.c.bf16 %v2148, %v2147
      %v2172 = vpack.c.bf16 %v2150, %v2149
      %v2173 = vpack.c.bf16 %v2152, %v2151
      %v2174 = vpack.c.bf16 %v2154, %v2153
      %v2175 = vpack.c.bf16 %v2156, %v2155
      %v2176 = vpack.c.bf16 %v2158, %v2157
      %v2177 = vpack.c.bf16 %v2160, %v2159
      %v2178 = vpack.c.bf16 %v2162, %v2161
      %v2179 = vld [vmem:[%s3] sm:$0xf]
      %v2180 = vld [vmem:[%s3 + $0x4] sm:$0xf]
      %v2181 = vld [vmem:[%s3 + $0x8] sm:$0xf]
      %v2182 = vld [vmem:[%s3 + $0xc] sm:$0xf]
      %v2183 = vld [vmem:[%s3 + $0x10] sm:$0xf]
      %v2184 = vld [vmem:[%s3 + $0x14] sm:$0xf]
      %v2185 = vld [vmem:[%s3 + $0x18] sm:$0xf]
      %v2186 = vld [vmem:[%s3 + $0x1c] sm:$0xf]
      %v2187 = vld [vmem:[%s3 + $0x20] sm:$0xf]
      %v2188 = vld [vmem:[%s4] sm:$0x1]
      %v2190 = vperm.slane %v2188, 0
      %v2201 = vunpack.c.l.b16 %v2179
      %v2202 = vunpack.c.l.b16 %v2180
      %v2203 = vunpack.c.l.b16 %v2181
      %v2204 = vunpack.c.l.b16 %v2182
      %v2205 = vunpack.c.l.b16 %v2183
      %v2206 = vunpack.c.l.b16 %v2184
      %v2207 = vunpack.c.l.b16 %v2185
      %v2208 = vunpack.c.l.b16 %v2186
      %v2209 = vunpack.c.l.b16 %v2187
      %v2210 = vpack.c.b16 %v2202, %v2201
      %v2211 = vpack.c.b16 %v2204, %v2203
      %v2212 = vpack.c.b16 %v2206, %v2205
      %v2213 = vpack.c.b16 %v2208, %v2207
      %v2214 = vpack.c.b16 %v2209, %v2209
      %vm2219 = vcmask 588800
      %v2221 = vsel %vm2219, %v2163, 0
      %v2224 = vsel %vm2219, %v2164, 0
      %v2227 = vsel %vm2219, %v2165, 0
      %v2230 = vsel %vm2219, %v2166, 0
      %v2233 = vsel %vm2219, %v2167, 0
      %v2236 = vsel %vm2219, %v2168, 0
      %v2239 = vsel %vm2219, %v2169, 0
      %v2242 = vsel %vm2219, %v2170, 0
      %v2245 = vsel %vm2219, %v2171, 0
      %v2248 = vsel %vm2219, %v2172, 0
      %v2251 = vsel %vm2219, %v2173, 0
      %v2254 = vsel %vm2219, %v2174, 0
      %v2257 = vsel %vm2219, %v2175, 0
      %v2260 = vsel %vm2219, %v2176, 0
      %v2263 = vsel %vm2219, %v2177, 0
      %v2266 = vsel %vm2219, %v2178, 0
      %vm2268 = vcmask 1043456
      %v2270 = vsel %vm2268, %v2214, 0
      %2272 = vmatpush.bf16.msra.mxu0 0
      %2273 = vmatpush.bf16.msra.mxu0 0
      %2274 = vmatpush.bf16.msra.mxu0 0
      %2275 = vmatpush.bf16.msra.mxu0 %v2270
      %2276 = vmatpush.bf16.msra.mxu0 %v2213
      %2277 = vmatpush.bf16.msra.mxu0 %v2212
      %2278 = vmatpush.bf16.msra.mxu0 %v2211
      %2279 = vmatpush.bf16.msra.mxu0 %v2210
      %2280 = vmatmul.bf16.gmra.mxu0 %v2221
      %v2281 = vpop.f32.mrf.mxu0
      %v2282 = vadd.f32 %v2190, %v2281
      %v2283 = vpop.f32.mrf.mxu0
      %v2284 = vadd.f32 %v2190, %v2283
      %2285 = vmatmul.bf16.gmra.mxu0 %v2224
      %v2286 = vpop.f32.mrf.mxu0
      %v2287 = vadd.f32 %v2190, %v2286
      %v2288 = vpop.f32.mrf.mxu0
      %v2289 = vadd.f32 %v2190, %v2288
      %2290 = vmatmul.bf16.gmra.mxu0 %v2227
      %v2291 = vpop.f32.mrf.mxu0
      %v2292 = vadd.f32 %v2190, %v2291
      %v2293 = vpop.f32.mrf.mxu0
      %v2294 = vadd.f32 %v2190, %v2293
      %2295 = vmatmul.bf16.gmra.mxu0 %v2230
      %v2296 = vpop.f32.mrf.mxu0
      %v2297 = vadd.f32 %v2190, %v2296
      %v2298 = vpop.f32.mrf.mxu0
      %v2299 = vadd.f32 %v2190, %v2298
      %2300 = vmatmul.bf16.gmra.mxu0 %v2233
      %v2301 = vpop.f32.mrf.mxu0
      %v2302 = vadd.f32 %v2190, %v2301
      %v2303 = vpop.f32.mrf.mxu0
      %v2304 = vadd.f32 %v2190, %v2303
      %2305 = vmatmul.bf16.gmra.mxu0 %v2236
      %v2306 = vpop.f32.mrf.mxu0
      %v2307 = vadd.f32 %v2190, %v2306
      %v2308 = vpop.f32.mrf.mxu0
      %v2309 = vadd.f32 %v2190, %v2308
      %2310 = vmatmul.bf16.gmra.mxu0 %v2239
      %v2311 = vpop.f32.mrf.mxu0
      %v2312 = vadd.f32 %v2190, %v2311
      %v2313 = vpop.f32.mrf.mxu0
      %v2314 = vadd.f32 %v2190, %v2313
      %2315 = vmatmul.bf16.gmra.mxu0 %v2242
      %v2316 = vpop.f32.mrf.mxu0
      %v2317 = vadd.f32 %v2190, %v2316
      %v2318 = vpop.f32.mrf.mxu0
      %v2319 = vadd.f32 %v2190, %v2318
      %2320 = vmatmul.bf16.gmra.mxu0 %v2245
      %v2321 = vpop.f32.mrf.mxu0
      %v2322 = vadd.f32 %v2190, %v2321
      %v2323 = vpop.f32.mrf.mxu0
      %v2324 = vadd.f32 %v2190, %v2323
      %2325 = vmatmul.bf16.gmra.mxu0 %v2248
      %v2326 = vpop.f32.mrf.mxu0
      %v2327 = vadd.f32 %v2190, %v2326
      %v2328 = vpop.f32.mrf.mxu0
      %v2329 = vadd.f32 %v2190, %v2328
      %2330 = vmatmul.bf16.gmra.mxu0 %v2251
      %v2331 = vpop.f32.mrf.mxu0
      %v2332 = vadd.f32 %v2190, %v2331
      %v2333 = vpop.f32.mrf.mxu0
      %v2334 = vadd.f32 %v2190, %v2333
      %2335 = vmatmul.bf16.gmra.mxu0 %v2254
      %v2336 = vpop.f32.mrf.mxu0
      %v2337 = vadd.f32 %v2190, %v2336
      %v2338 = vpop.f32.mrf.mxu0
      %v2339 = vadd.f32 %v2190, %v2338
      %2340 = vmatmul.bf16.gmra.mxu0 %v2257
      %v2341 = vpop.f32.mrf.mxu0
      %v2342 = vadd.f32 %v2190, %v2341
      %v2343 = vpop.f32.mrf.mxu0
      %v2344 = vadd.f32 %v2190, %v2343
      %2345 = vmatmul.bf16.gmra.mxu0 %v2260
      %v2346 = vpop.f32.mrf.mxu0
      %v2347 = vadd.f32 %v2190, %v2346
      %v2348 = vpop.f32.mrf.mxu0
      %v2349 = vadd.f32 %v2190, %v2348
      %2350 = vmatmul.bf16.gmra.mxu0 %v2263
      %v2351 = vpop.f32.mrf.mxu0
      %v2352 = vadd.f32 %v2190, %v2351
      %v2353 = vpop.f32.mrf.mxu0
      %v2354 = vadd.f32 %v2190, %v2353
      %2355 = vmatmul.bf16.gmra.mxu0 %v2266
      %v2356 = vpop.f32.mrf.mxu0
      %v2357 = vadd.f32 %v2190, %v2356
      %v2358 = vpop.f32.mrf.mxu0
      %v2359 = vadd.f32 %v2190, %v2358
      %2360 = vdwg.mxu0
      %vm2361 = vcmp.gt.f32.partialorder %v2282, 0.0
      %vm2362 = vcmp.gt.f32.partialorder %v2284, 0.0
      %vm2363 = vcmp.gt.f32.partialorder %v2287, 0.0
      %vm2364 = vcmp.gt.f32.partialorder %v2289, 0.0
      %vm2365 = vcmp.gt.f32.partialorder %v2292, 0.0
      %vm2366 = vcmp.gt.f32.partialorder %v2294, 0.0
      %vm2367 = vcmp.gt.f32.partialorder %v2297, 0.0
      %vm2368 = vcmp.gt.f32.partialorder %v2299, 0.0
      %vm2369 = vcmp.gt.f32.partialorder %v2302, 0.0
      %vm2370 = vcmp.gt.f32.partialorder %v2304, 0.0
      %vm2371 = vcmp.gt.f32.partialorder %v2307, 0.0
      %vm2372 = vcmp.gt.f32.partialorder %v2309, 0.0
      %vm2373 = vcmp.gt.f32.partialorder %v2312, 0.0
      %vm2374 = vcmp.gt.f32.partialorder %v2314, 0.0
      %vm2375 = vcmp.gt.f32.partialorder %v2317, 0.0
      %vm2376 = vcmp.gt.f32.partialorder %v2319, 0.0
      %vm2377 = vcmp.gt.f32.partialorder %v2322, 0.0
      %vm2378 = vcmp.gt.f32.partialorder %v2324, 0.0
      %vm2379 = vcmp.gt.f32.partialorder %v2327, 0.0
      %vm2380 = vcmp.gt.f32.partialorder %v2329, 0.0
      %vm2381 = vcmp.gt.f32.partialorder %v2332, 0.0
      %vm2382 = vcmp.gt.f32.partialorder %v2334, 0.0
      %vm2383 = vcmp.gt.f32.partialorder %v2337, 0.0
      %vm2384 = vcmp.gt.f32.partialorder %v2339, 0.0
      %vm2385 = vcmp.gt.f32.partialorder %v2342, 0.0
      %vm2386 = vcmp.gt.f32.partialorder %v2344, 0.0
      %vm2387 = vcmp.gt.f32.partialorder %v2347, 0.0
      %vm2388 = vcmp.gt.f32.partialorder %v2349, 0.0
      %vm2389 = vcmp.gt.f32.partialorder %v2352, 0.0
      %vm2390 = vcmp.gt.f32.partialorder %v2354, 0.0
      %vm2391 = vcmp.gt.f32.partialorder %v2357, 0.0
      %vm2392 = vcmp.gt.f32.partialorder %v2359, 0.0
      %v2393 = vmul.f32 %v2282, 0.2
      %v2394 = vmul.f32 %v2284, 0.2
      %v2395 = vmul.f32 %v2287, 0.2
      %v2396 = vmul.f32 %v2289, 0.2
      %v2397 = vmul.f32 %v2292, 0.2
      %v2398 = vmul.f32 %v2294, 0.2
      %v2399 = vmul.f32 %v2297, 0.2
      %v2400 = vmul.f32 %v2299, 0.2
      %v2401 = vmul.f32 %v2302, 0.2
      %v2402 = vmul.f32 %v2304, 0.2
      %v2403 = vmul.f32 %v2307, 0.2
      %v2404 = vmul.f32 %v2309, 0.2
      %v2405 = vmul.f32 %v2312, 0.2
      %v2406 = vmul.f32 %v2314, 0.2
      %v2407 = vmul.f32 %v2317, 0.2
      %v2408 = vmul.f32 %v2319, 0.2
      %v2409 = vmul.f32 %v2322, 0.2
      %v2410 = vmul.f32 %v2324, 0.2
      %v2411 = vmul.f32 %v2327, 0.2
      %v2412 = vmul.f32 %v2329, 0.2
      %v2413 = vmul.f32 %v2332, 0.2
      %v2414 = vmul.f32 %v2334, 0.2
      %v2415 = vmul.f32 %v2337, 0.2
      %v2416 = vmul.f32 %v2339, 0.2
      %v2417 = vmul.f32 %v2342, 0.2
      %v2418 = vmul.f32 %v2344, 0.2
      %v2419 = vmul.f32 %v2347, 0.2
      %v2420 = vmul.f32 %v2349, 0.2
      %v2421 = vmul.f32 %v2352, 0.2
      %v2422 = vmul.f32 %v2354, 0.2
      %v2423 = vmul.f32 %v2357, 0.2
      %v2424 = vmul.f32 %v2359, 0.2
      %v2425 = vsel %vm2361, %v2282, %v2393
      %v2426 = vsel %vm2362, %v2284, %v2394
      %v2427 = vsel %vm2363, %v2287, %v2395
      %v2428 = vsel %vm2364, %v2289, %v2396
      %v2429 = vsel %vm2365, %v2292, %v2397
      %v2430 = vsel %vm2366, %v2294, %v2398
      %v2431 = vsel %vm2367, %v2297, %v2399
      %v2432 = vsel %vm2368, %v2299, %v2400
      %v2433 = vsel %vm2369, %v2302, %v2401
      %v2434 = vsel %vm2370, %v2304, %v2402
      %v2435 = vsel %vm2371, %v2307, %v2403
      %v2436 = vsel %vm2372, %v2309, %v2404
      %v2437 = vsel %vm2373, %v2312, %v2405
      %v2438 = vsel %vm2374, %v2314, %v2406
      %v2439 = vsel %vm2375, %v2317, %v2407
      %v2440 = vsel %vm2376, %v2319, %v2408
      %v2441 = vsel %vm2377, %v2322, %v2409
      %v2442 = vsel %vm2378, %v2324, %v2410
      %v2443 = vsel %vm2379, %v2327, %v2411
      %v2444 = vsel %vm2380, %v2329, %v2412
      %v2445 = vsel %vm2381, %v2332, %v2413
      %v2446 = vsel %vm2382, %v2334, %v2414
      %v2447 = vsel %vm2383, %v2337, %v2415
      %v2448 = vsel %vm2384, %v2339, %v2416
      %v2449 = vsel %vm2385, %v2342, %v2417
      %v2450 = vsel %vm2386, %v2344, %v2418
      %v2451 = vsel %vm2387, %v2347, %v2419
      %v2452 = vsel %vm2388, %v2349, %v2420
      %v2453 = vsel %vm2389, %v2352, %v2421
      %v2454 = vsel %vm2390, %v2354, %v2422
      %v2455 = vsel %vm2391, %v2357, %v2423
      %v2456 = vsel %vm2392, %v2359, %v2424
      %s2457 = scalar_lea.vmem [#allocation3], 24
      %2458 = vst.msk [vmem:[%s2457 + $0x1] sm:$0xff] %vm334, %v2425
      %2459 = vst.msk [vmem:[%s2457 + $0x9] sm:$0xff] %vm334, %v2426
      %2460 = vst.msk [vmem:[%s2457 + $0x19] sm:$0xff] %vm334, %v2427
      %2461 = vst.msk [vmem:[%s2457 + $0x21] sm:$0xff] %vm334, %v2428
      %2462 = vst.msk [vmem:[%s2457 + $0x31] sm:$0xff] %vm334, %v2429
      %2463 = vst.msk [vmem:[%s2457 + $0x39] sm:$0xff] %vm334, %v2430
      %2464 = vst.msk [vmem:[%s2457 + $0x49] sm:$0xff] %vm334, %v2431
      %2465 = vst.msk [vmem:[%s2457 + $0x51] sm:$0xff] %vm334, %v2432
      %2466 = vst.msk [vmem:[%s2457 + $0x61] sm:$0xff] %vm334, %v2433
      %2467 = vst.msk [vmem:[%s2457 + $0x69] sm:$0xff] %vm334, %v2434
      %2468 = vst.msk [vmem:[%s2457 + $0x79] sm:$0xff] %vm334, %v2435
      %2469 = vst.msk [vmem:[%s2457 + $0x81] sm:$0xff] %vm334, %v2436
      %2470 = vst.msk [vmem:[%s2457 + $0x91] sm:$0xff] %vm334, %v2437
      %2471 = vst.msk [vmem:[%s2457 + $0x99] sm:$0xff] %vm334, %v2438
      %2472 = vst.msk [vmem:[%s2457 + $0xa9] sm:$0xff] %vm334, %v2439
      %2473 = vst.msk [vmem:[%s2457 + $0xb1] sm:$0xff] %vm334, %v2440
      %2474 = vst.msk [vmem:[%s2457 + $0xc1] sm:$0xff] %vm334, %v2441
      %2475 = vst.msk [vmem:[%s2457 + $0xc9] sm:$0xff] %vm334, %v2442
      %2476 = vst.msk [vmem:[%s2457 + $0xd9] sm:$0xff] %vm334, %v2443
      %2477 = vst.msk [vmem:[%s2457 + $0xe1] sm:$0xff] %vm334, %v2444
      %2478 = vst.msk [vmem:[%s2457 + $0xf1] sm:$0xff] %vm334, %v2445
      %2479 = vst.msk [vmem:[%s2457 + $0xf9] sm:$0xff] %vm334, %v2446
      %2480 = vst.msk [vmem:[%s2457 + $0x109] sm:$0xff] %vm334, %v2447
      %2481 = vst.msk [vmem:[%s2457 + $0x111] sm:$0xff] %vm334, %v2448
      %2482 = vst.msk [vmem:[%s2457 + $0x121] sm:$0xff] %vm334, %v2449
      %2483 = vst.msk [vmem:[%s2457 + $0x129] sm:$0xff] %vm334, %v2450
      %2484 = vst.msk [vmem:[%s2457 + $0x139] sm:$0xff] %vm334, %v2451
      %2485 = vst.msk [vmem:[%s2457 + $0x141] sm:$0xff] %vm334, %v2452
      %2486 = vst.msk [vmem:[%s2457 + $0x151] sm:$0xff] %vm334, %v2453
      %2487 = vst.msk [vmem:[%s2457 + $0x159] sm:$0xff] %vm334, %v2454
      %2488 = vst.msk [vmem:[%s2457 + $0x169] sm:$0xff] %vm334, %v2455
      %2489 = vst.msk [vmem:[%s2457 + $0x171] sm:$0xff] %vm334, %v2456
      %v2490 = vld [vmem:[#allocation3] sm:$0xff]
      %v2491 = vld [vmem:[#allocation3 + $0x8] sm:$0xff]
      %v2492 = vld [vmem:[#allocation3 + $0x10] sm:$0x3]
      %v2493 = vld [vmem:[#allocation3 + $0x18] sm:$0xff]
      %v2494 = vld [vmem:[#allocation3 + $0x20] sm:$0xff]
      %v2495 = vld [vmem:[#allocation3 + $0x28] sm:$0x3]
      %v2496 = vld [vmem:[#allocation3 + $0x30] sm:$0xff]
      %v2497 = vld [vmem:[#allocation3 + $0x38] sm:$0xff]
      %v2498 = vld [vmem:[#allocation3 + $0x40] sm:$0x3]
      %v2499 = vld [vmem:[#allocation3 + $0x48] sm:$0xff]
      %v2500 = vld [vmem:[#allocation3 + $0x50] sm:$0xff]
      %v2501 = vld [vmem:[#allocation3 + $0x58] sm:$0x3]
      %v2502 = vld [vmem:[#allocation3 + $0x60] sm:$0xff]
      %v2503 = vld [vmem:[#allocation3 + $0x68] sm:$0xff]
      %v2504 = vld [vmem:[#allocation3 + $0x70] sm:$0x3]
      %v2505 = vld [vmem:[#allocation3 + $0x78] sm:$0xff]
      %v2506 = vld [vmem:[#allocation3 + $0x80] sm:$0xff]
      %v2507 = vld [vmem:[#allocation3 + $0x88] sm:$0x3]
      %v2508 = vld [vmem:[#allocation3 + $0x90] sm:$0xff]
      %v2509 = vld [vmem:[#allocation3 + $0x98] sm:$0xff]
      %v2510 = vld [vmem:[#allocation3 + $0xa0] sm:$0x3]
      %v2511 = vld [vmem:[#allocation3 + $0xa8] sm:$0xff]
      %v2512 = vld [vmem:[#allocation3 + $0xb0] sm:$0xff]
      %v2513 = vld [vmem:[#allocation3 + $0xb8] sm:$0x3]
      %v2514 = vld [vmem:[#allocation3 + $0xc0] sm:$0xff]
      %v2515 = vld [vmem:[#allocation3 + $0xc8] sm:$0xff]
      %v2516 = vld [vmem:[#allocation3 + $0xd0] sm:$0x3]
      %v2517 = vld [vmem:[#allocation3 + $0xd8] sm:$0xff]
      %v2518 = vld [vmem:[#allocation3 + $0xe0] sm:$0xff]
      %v2519 = vld [vmem:[#allocation3 + $0xe8] sm:$0x3]
      %v2520 = vld [vmem:[#allocation3 + $0xf0] sm:$0xff]
      %v2521 = vld [vmem:[#allocation3 + $0xf8] sm:$0xff]
      %v2522 = vld [vmem:[#allocation3 + $0x100] sm:$0x3]
      %v2523 = vld [vmem:[#allocation3 + $0x108] sm:$0xff]
      %v2524 = vld [vmem:[#allocation3 + $0x110] sm:$0xff]
      %v2525 = vld [vmem:[#allocation3 + $0x118] sm:$0x3]
      %v2526 = vld [vmem:[#allocation3 + $0x120] sm:$0xff]
      %v2527 = vld [vmem:[#allocation3 + $0x128] sm:$0xff]
      %v2528 = vld [vmem:[#allocation3 + $0x130] sm:$0x3]
      %v2529 = vld [vmem:[#allocation3 + $0x138] sm:$0xff]
      %v2530 = vld [vmem:[#allocation3 + $0x140] sm:$0xff]
      %v2531 = vld [vmem:[#allocation3 + $0x148] sm:$0x3]
      %v2532 = vld [vmem:[#allocation3 + $0x150] sm:$0xff]
      %v2533 = vld [vmem:[#allocation3 + $0x158] sm:$0xff]
      %v2534 = vld [vmem:[#allocation3 + $0x160] sm:$0x3]
      %v2535 = vld [vmem:[#allocation3 + $0x168] sm:$0xff]
      %v2536 = vld [vmem:[#allocation3 + $0x170] sm:$0xff]
      %v2537 = vld [vmem:[#allocation3 + $0x178] sm:$0x3]
      %v2538 = vld [vmem:[#allocation3 + $0x180] sm:$0xff]
      %v2539 = vld [vmem:[#allocation3 + $0x188] sm:$0xff]
      %v2540 = vld [vmem:[#allocation3 + $0x190] sm:$0x3]
      %v2541 = vld [vmem:[#allocation3 + $0x198] sm:$0xff]
      %v2542 = vld [vmem:[#allocation3 + $0x1a0] sm:$0xff]
      %v2543 = vld [vmem:[#allocation3 + $0x1a8] sm:$0x3]
      %v2592 = vrot.slane %v2490, 1
      %v2593 = vrot.slane %v2491, 1
      %v2594 = vsel %vm944, %v2592, %v2593
      %v2595 = vrot.slane %v2492, 1
      %v2596 = vsel %vm944, %v2593, %v2595
      %v2597 = vrot.slane %v2493, 1
      %v2598 = vrot.slane %v2494, 1
      %v2599 = vsel %vm944, %v2597, %v2598
      %v2600 = vrot.slane %v2495, 1
      %v2601 = vsel %vm944, %v2598, %v2600
      %v2602 = vrot.slane %v2496, 1
      %v2603 = vrot.slane %v2497, 1
      %v2604 = vsel %vm944, %v2602, %v2603
      %v2605 = vrot.slane %v2498, 1
      %v2606 = vsel %vm944, %v2603, %v2605
      %v2607 = vrot.slane %v2499, 1
      %v2608 = vrot.slane %v2500, 1
      %v2609 = vsel %vm944, %v2607, %v2608
      %v2610 = vrot.slane %v2501, 1
      %v2611 = vsel %vm944, %v2608, %v2610
      %v2612 = vrot.slane %v2502, 1
      %v2613 = vrot.slane %v2503, 1
      %v2614 = vsel %vm944, %v2612, %v2613
      %v2615 = vrot.slane %v2504, 1
      %v2616 = vsel %vm944, %v2613, %v2615
      %v2617 = vrot.slane %v2505, 1
      %v2618 = vrot.slane %v2506, 1
      %v2619 = vsel %vm944, %v2617, %v2618
      %v2620 = vrot.slane %v2507, 1
      %v2621 = vsel %vm944, %v2618, %v2620
      %v2622 = vrot.slane %v2508, 1
      %v2623 = vrot.slane %v2509, 1
      %v2624 = vsel %vm944, %v2622, %v2623
      %v2625 = vrot.slane %v2510, 1
      %v2626 = vsel %vm944, %v2623, %v2625
      %v2627 = vrot.slane %v2511, 1
      %v2628 = vrot.slane %v2512, 1
      %v2629 = vsel %vm944, %v2627, %v2628
      %v2630 = vrot.slane %v2513, 1
      %v2631 = vsel %vm944, %v2628, %v2630
      %v2632 = vrot.slane %v2514, 1
      %v2633 = vrot.slane %v2515, 1
      %v2634 = vsel %vm944, %v2632, %v2633
      %v2635 = vrot.slane %v2516, 1
      %v2636 = vsel %vm944, %v2633, %v2635
      %v2637 = vrot.slane %v2517, 1
      %v2638 = vrot.slane %v2518, 1
      %v2639 = vsel %vm944, %v2637, %v2638
      %v2640 = vrot.slane %v2519, 1
      %v2641 = vsel %vm944, %v2638, %v2640
      %v2642 = vrot.slane %v2520, 1
      %v2643 = vrot.slane %v2521, 1
      %v2644 = vsel %vm944, %v2642, %v2643
      %v2645 = vrot.slane %v2522, 1
      %v2646 = vsel %vm944, %v2643, %v2645
      %v2647 = vrot.slane %v2523, 1
      %v2648 = vrot.slane %v2524, 1
      %v2649 = vsel %vm944, %v2647, %v2648
      %v2650 = vrot.slane %v2525, 1
      %v2651 = vsel %vm944, %v2648, %v2650
      %v2652 = vrot.slane %v2526, 1
      %v2653 = vrot.slane %v2527, 1
      %v2654 = vsel %vm944, %v2652, %v2653
      %v2655 = vrot.slane %v2528, 1
      %v2656 = vsel %vm944, %v2653, %v2655
      %v2657 = vrot.slane %v2529, 1
      %v2658 = vrot.slane %v2530, 1
      %v2659 = vsel %vm944, %v2657, %v2658
      %v2660 = vrot.slane %v2531, 1
      %v2661 = vsel %vm944, %v2658, %v2660
      %v2662 = vrot.slane %v2532, 1
      %v2663 = vrot.slane %v2533, 1
      %v2664 = vsel %vm944, %v2662, %v2663
      %v2665 = vrot.slane %v2534, 1
      %v2666 = vsel %vm944, %v2663, %v2665
      %v2667 = vrot.slane %v2535, 1
      %v2668 = vrot.slane %v2536, 1
      %v2669 = vsel %vm944, %v2667, %v2668
      %v2670 = vrot.slane %v2537, 1
      %v2671 = vsel %vm944, %v2668, %v2670
      %v2672 = vrot.slane %v2490, 2
      %v2673 = vrot.slane %v2491, 2
      %v2674 = vsel %vm1025, %v2672, %v2673
      %v2675 = vrot.slane %v2492, 2
      %v2676 = vsel %vm1025, %v2673, %v2675
      %v2677 = vrot.slane %v2493, 2
      %v2678 = vrot.slane %v2494, 2
      %v2679 = vsel %vm1025, %v2677, %v2678
      %v2680 = vrot.slane %v2495, 2
      %v2681 = vsel %vm1025, %v2678, %v2680
      %v2682 = vrot.slane %v2496, 2
      %v2683 = vrot.slane %v2497, 2
      %v2684 = vsel %vm1025, %v2682, %v2683
      %v2685 = vrot.slane %v2498, 2
      %v2686 = vsel %vm1025, %v2683, %v2685
      %v2687 = vrot.slane %v2499, 2
      %v2688 = vrot.slane %v2500, 2
      %v2689 = vsel %vm1025, %v2687, %v2688
      %v2690 = vrot.slane %v2501, 2
      %v2691 = vsel %vm1025, %v2688, %v2690
      %v2692 = vrot.slane %v2502, 2
      %v2693 = vrot.slane %v2503, 2
      %v2694 = vsel %vm1025, %v2692, %v2693
      %v2695 = vrot.slane %v2504, 2
      %v2696 = vsel %vm1025, %v2693, %v2695
      %v2697 = vrot.slane %v2505, 2
      %v2698 = vrot.slane %v2506, 2
      %v2699 = vsel %vm1025, %v2697, %v2698
      %v2700 = vrot.slane %v2507, 2
      %v2701 = vsel %vm1025, %v2698, %v2700
      %v2702 = vrot.slane %v2508, 2
      %v2703 = vrot.slane %v2509, 2
      %v2704 = vsel %vm1025, %v2702, %v2703
      %v2705 = vrot.slane %v2510, 2
      %v2706 = vsel %vm1025, %v2703, %v2705
      %v2707 = vrot.slane %v2511, 2
      %v2708 = vrot.slane %v2512, 2
      %v2709 = vsel %vm1025, %v2707, %v2708
      %v2710 = vrot.slane %v2513, 2
      %v2711 = vsel %vm1025, %v2708, %v2710
      %v2712 = vrot.slane %v2514, 2
      %v2713 = vrot.slane %v2515, 2
      %v2714 = vsel %vm1025, %v2712, %v2713
      %v2715 = vrot.slane %v2516, 2
      %v2716 = vsel %vm1025, %v2713, %v2715
      %v2717 = vrot.slane %v2517, 2
      %v2718 = vrot.slane %v2518, 2
      %v2719 = vsel %vm1025, %v2717, %v2718
      %v2720 = vrot.slane %v2519, 2
      %v2721 = vsel %vm1025, %v2718, %v2720
      %v2722 = vrot.slane %v2520, 2
      %v2723 = vrot.slane %v2521, 2
      %v2724 = vsel %vm1025, %v2722, %v2723
      %v2725 = vrot.slane %v2522, 2
      %v2726 = vsel %vm1025, %v2723, %v2725
      %v2727 = vrot.slane %v2523, 2
      %v2728 = vrot.slane %v2524, 2
      %v2729 = vsel %vm1025, %v2727, %v2728
      %v2730 = vrot.slane %v2525, 2
      %v2731 = vsel %vm1025, %v2728, %v2730
      %v2732 = vrot.slane %v2526, 2
      %v2733 = vrot.slane %v2527, 2
      %v2734 = vsel %vm1025, %v2732, %v2733
      %v2735 = vrot.slane %v2528, 2
      %v2736 = vsel %vm1025, %v2733, %v2735
      %v2737 = vrot.slane %v2529, 2
      %v2738 = vrot.slane %v2530, 2
      %v2739 = vsel %vm1025, %v2737, %v2738
      %v2740 = vrot.slane %v2531, 2
      %v2741 = vsel %vm1025, %v2738, %v2740
      %v2742 = vrot.slane %v2532, 2
      %v2743 = vrot.slane %v2533, 2
      %v2744 = vsel %vm1025, %v2742, %v2743
      %v2745 = vrot.slane %v2534, 2
      %v2746 = vsel %vm1025, %v2743, %v2745
      %v2747 = vrot.slane %v2535, 2
      %v2748 = vrot.slane %v2536, 2
      %v2749 = vsel %vm1025, %v2747, %v2748
      %v2750 = vrot.slane %v2537, 2
      %v2751 = vsel %vm1025, %v2748, %v2750
      %v2755 = vrot.slane %v2538, 1
      %v2756 = vrot.slane %v2539, 1
      %v2757 = vsel %vm944, %v2755, %v2756
      %v2758 = vrot.slane %v2540, 1
      %v2759 = vsel %vm944, %v2756, %v2758
      %v2760 = vrot.slane %v2538, 2
      %v2761 = vrot.slane %v2539, 2
      %v2762 = vsel %vm1025, %v2760, %v2761
      %v2763 = vrot.slane %v2540, 2
      %v2764 = vsel %vm1025, %v2761, %v2763
      %v2768 = vrot.slane %v2541, 1
      %v2769 = vrot.slane %v2542, 1
      %v2770 = vsel %vm944, %v2768, %v2769
      %v2771 = vrot.slane %v2543, 1
      %v2772 = vsel %vm944, %v2769, %v2771
      %v2773 = vrot.slane %v2541, 2
      %v2774 = vrot.slane %v2542, 2
      %v2775 = vsel %vm1025, %v2773, %v2774
      %v2776 = vrot.slane %v2543, 2
      %v2777 = vsel %vm1025, %v2774, %v2776
      %2778 = vrot.lane.b32.xlu0 %v2594, 8
      %v2779 = vpop.permute.xlu0 %2778
      %2780 = vrot.lane.b32.xlu0 %v2596, 8
      %v2781 = vpop.permute.xlu0 %2780
      %2782 = vrot.lane.b32.xlu0 %v2599, 8
      %v2783 = vpop.permute.xlu0 %2782
      %2784 = vrot.lane.b32.xlu0 %v2601, 8
      %v2785 = vpop.permute.xlu0 %2784
      %2786 = vrot.lane.b32.xlu0 %v2604, 8
      %v2787 = vpop.permute.xlu0 %2786
      %2788 = vrot.lane.b32.xlu0 %v2606, 8
      %v2789 = vpop.permute.xlu0 %2788
      %2790 = vrot.lane.b32.xlu0 %v2609, 8
      %v2791 = vpop.permute.xlu0 %2790
      %2792 = vrot.lane.b32.xlu0 %v2611, 8
      %v2793 = vpop.permute.xlu0 %2792
      %2794 = vrot.lane.b32.xlu0 %v2614, 8
      %v2795 = vpop.permute.xlu0 %2794
      %2796 = vrot.lane.b32.xlu0 %v2616, 8
      %v2797 = vpop.permute.xlu0 %2796
      %2798 = vrot.lane.b32.xlu0 %v2619, 8
      %v2799 = vpop.permute.xlu0 %2798
      %2800 = vrot.lane.b32.xlu0 %v2621, 8
      %v2801 = vpop.permute.xlu0 %2800
      %2802 = vrot.lane.b32.xlu0 %v2624, 8
      %v2803 = vpop.permute.xlu0 %2802
      %2804 = vrot.lane.b32.xlu0 %v2626, 8
      %v2805 = vpop.permute.xlu0 %2804
      %2806 = vrot.lane.b32.xlu0 %v2629, 8
      %v2807 = vpop.permute.xlu0 %2806
      %2808 = vrot.lane.b32.xlu0 %v2631, 8
      %v2809 = vpop.permute.xlu0 %2808
      %2810 = vrot.lane.b32.xlu0 %v2634, 8
      %v2811 = vpop.permute.xlu0 %2810
      %2812 = vrot.lane.b32.xlu0 %v2636, 8
      %v2813 = vpop.permute.xlu0 %2812
      %2814 = vrot.lane.b32.xlu0 %v2639, 8
      %v2815 = vpop.permute.xlu0 %2814
      %2816 = vrot.lane.b32.xlu0 %v2641, 8
      %v2817 = vpop.permute.xlu0 %2816
      %2818 = vrot.lane.b32.xlu0 %v2644, 8
      %v2819 = vpop.permute.xlu0 %2818
      %2820 = vrot.lane.b32.xlu0 %v2646, 8
      %v2821 = vpop.permute.xlu0 %2820
      %2822 = vrot.lane.b32.xlu0 %v2649, 8
      %v2823 = vpop.permute.xlu0 %2822
      %2824 = vrot.lane.b32.xlu0 %v2651, 8
      %v2825 = vpop.permute.xlu0 %2824
      %2826 = vrot.lane.b32.xlu0 %v2654, 8
      %v2827 = vpop.permute.xlu0 %2826
      %2828 = vrot.lane.b32.xlu0 %v2656, 8
      %v2829 = vpop.permute.xlu0 %2828
      %2830 = vrot.lane.b32.xlu0 %v2659, 8
      %v2831 = vpop.permute.xlu0 %2830
      %2832 = vrot.lane.b32.xlu0 %v2661, 8
      %v2833 = vpop.permute.xlu0 %2832
      %2834 = vrot.lane.b32.xlu0 %v2664, 8
      %v2835 = vpop.permute.xlu0 %2834
      %2836 = vrot.lane.b32.xlu0 %v2666, 8
      %v2837 = vpop.permute.xlu0 %2836
      %2838 = vrot.lane.b32.xlu0 %v2669, 8
      %v2839 = vpop.permute.xlu0 %2838
      %2840 = vrot.lane.b32.xlu0 %v2671, 8
      %v2841 = vpop.permute.xlu0 %2840
      %2874 = vrot.lane.b32.xlu0 %v2674, 16
      %v2875 = vpop.permute.xlu0 %2874
      %2876 = vrot.lane.b32.xlu0 %v2676, 16
      %v2877 = vpop.permute.xlu0 %2876
      %2878 = vrot.lane.b32.xlu0 %v2679, 16
      %v2879 = vpop.permute.xlu0 %2878
      %2880 = vrot.lane.b32.xlu0 %v2681, 16
      %v2881 = vpop.permute.xlu0 %2880
      %2882 = vrot.lane.b32.xlu0 %v2684, 16
      %v2883 = vpop.permute.xlu0 %2882
      %2884 = vrot.lane.b32.xlu0 %v2686, 16
      %v2885 = vpop.permute.xlu0 %2884
      %2886 = vrot.lane.b32.xlu0 %v2689, 16
      %v2887 = vpop.permute.xlu0 %2886
      %2888 = vrot.lane.b32.xlu0 %v2691, 16
      %v2889 = vpop.permute.xlu0 %2888
      %2890 = vrot.lane.b32.xlu0 %v2694, 16
      %v2891 = vpop.permute.xlu0 %2890
      %2892 = vrot.lane.b32.xlu0 %v2696, 16
      %v2893 = vpop.permute.xlu0 %2892
      %2894 = vrot.lane.b32.xlu0 %v2699, 16
      %v2895 = vpop.permute.xlu0 %2894
      %2896 = vrot.lane.b32.xlu0 %v2701, 16
      %v2897 = vpop.permute.xlu0 %2896
      %2898 = vrot.lane.b32.xlu0 %v2704, 16
      %v2899 = vpop.permute.xlu0 %2898
      %2900 = vrot.lane.b32.xlu0 %v2706, 16
      %v2901 = vpop.permute.xlu0 %2900
      %2902 = vrot.lane.b32.xlu0 %v2709, 16
      %v2903 = vpop.permute.xlu0 %2902
      %2904 = vrot.lane.b32.xlu0 %v2711, 16
      %v2905 = vpop.permute.xlu0 %2904
      %2906 = vrot.lane.b32.xlu0 %v2714, 16
      %v2907 = vpop.permute.xlu0 %2906
      %2908 = vrot.lane.b32.xlu0 %v2716, 16
      %v2909 = vpop.permute.xlu0 %2908
      %2910 = vrot.lane.b32.xlu0 %v2719, 16
      %v2911 = vpop.permute.xlu0 %2910
      %2912 = vrot.lane.b32.xlu0 %v2721, 16
      %v2913 = vpop.permute.xlu0 %2912
      %2914 = vrot.lane.b32.xlu0 %v2724, 16
      %v2915 = vpop.permute.xlu0 %2914
      %2916 = vrot.lane.b32.xlu0 %v2726, 16
      %v2917 = vpop.permute.xlu0 %2916
      %2918 = vrot.lane.b32.xlu0 %v2729, 16
      %v2919 = vpop.permute.xlu0 %2918
      %2920 = vrot.lane.b32.xlu0 %v2731, 16
      %v2921 = vpop.permute.xlu0 %2920
      %2922 = vrot.lane.b32.xlu0 %v2734, 16
      %v2923 = vpop.permute.xlu0 %2922
      %2924 = vrot.lane.b32.xlu0 %v2736, 16
      %v2925 = vpop.permute.xlu0 %2924
      %2926 = vrot.lane.b32.xlu0 %v2739, 16
      %v2927 = vpop.permute.xlu0 %2926
      %2928 = vrot.lane.b32.xlu0 %v2741, 16
      %v2929 = vpop.permute.xlu0 %2928
      %2930 = vrot.lane.b32.xlu0 %v2744, 16
      %v2931 = vpop.permute.xlu0 %2930
      %2932 = vrot.lane.b32.xlu0 %v2746, 16
      %v2933 = vpop.permute.xlu0 %2932
      %2934 = vrot.lane.b32.xlu0 %v2749, 16
      %v2935 = vpop.permute.xlu0 %2934
      %2936 = vrot.lane.b32.xlu0 %v2751, 16
      %v2937 = vpop.permute.xlu0 %2936
      %2970 = vrot.lane.b32.xlu0 %v2493, 24
      %v2971 = vpop.permute.xlu0 %2970
      %2972 = vrot.lane.b32.xlu0 %v2494, 24
      %v2973 = vpop.permute.xlu0 %2972
      %2974 = vrot.lane.b32.xlu0 %v2496, 24
      %v2975 = vpop.permute.xlu0 %2974
      %2976 = vrot.lane.b32.xlu0 %v2497, 24
      %v2977 = vpop.permute.xlu0 %2976
      %2978 = vrot.lane.b32.xlu0 %v2499, 24
      %v2979 = vpop.permute.xlu0 %2978
      %2980 = vrot.lane.b32.xlu0 %v2500, 24
      %v2981 = vpop.permute.xlu0 %2980
      %2982 = vrot.lane.b32.xlu0 %v2502, 24
      %v2983 = vpop.permute.xlu0 %2982
      %2984 = vrot.lane.b32.xlu0 %v2503, 24
      %v2985 = vpop.permute.xlu0 %2984
      %2986 = vrot.lane.b32.xlu0 %v2505, 24
      %v2987 = vpop.permute.xlu0 %2986
      %2988 = vrot.lane.b32.xlu0 %v2506, 24
      %v2989 = vpop.permute.xlu0 %2988
      %2990 = vrot.lane.b32.xlu0 %v2508, 24
      %v2991 = vpop.permute.xlu0 %2990
      %2992 = vrot.lane.b32.xlu0 %v2509, 24
      %v2993 = vpop.permute.xlu0 %2992
      %2994 = vrot.lane.b32.xlu0 %v2511, 24
      %v2995 = vpop.permute.xlu0 %2994
      %2996 = vrot.lane.b32.xlu0 %v2512, 24
      %v2997 = vpop.permute.xlu0 %2996
      %2998 = vrot.lane.b32.xlu0 %v2514, 24
      %v2999 = vpop.permute.xlu0 %2998
      %3000 = vrot.lane.b32.xlu0 %v2515, 24
      %v3001 = vpop.permute.xlu0 %3000
      %3002 = vrot.lane.b32.xlu0 %v2517, 24
      %v3003 = vpop.permute.xlu0 %3002
      %3004 = vrot.lane.b32.xlu0 %v2518, 24
      %v3005 = vpop.permute.xlu0 %3004
      %3006 = vrot.lane.b32.xlu0 %v2520, 24
      %v3007 = vpop.permute.xlu0 %3006
      %3008 = vrot.lane.b32.xlu0 %v2521, 24
      %v3009 = vpop.permute.xlu0 %3008
      %3010 = vrot.lane.b32.xlu0 %v2523, 24
      %v3011 = vpop.permute.xlu0 %3010
      %3012 = vrot.lane.b32.xlu0 %v2524, 24
      %v3013 = vpop.permute.xlu0 %3012
      %3014 = vrot.lane.b32.xlu0 %v2526, 24
      %v3015 = vpop.permute.xlu0 %3014
      %3016 = vrot.lane.b32.xlu0 %v2527, 24
      %v3017 = vpop.permute.xlu0 %3016
      %3018 = vrot.lane.b32.xlu0 %v2529, 24
      %v3019 = vpop.permute.xlu0 %3018
      %3020 = vrot.lane.b32.xlu0 %v2530, 24
      %v3021 = vpop.permute.xlu0 %3020
      %3022 = vrot.lane.b32.xlu0 %v2532, 24
      %v3023 = vpop.permute.xlu0 %3022
      %3024 = vrot.lane.b32.xlu0 %v2533, 24
      %v3025 = vpop.permute.xlu0 %3024
      %3026 = vrot.lane.b32.xlu0 %v2535, 24
      %v3027 = vpop.permute.xlu0 %3026
      %3028 = vrot.lane.b32.xlu0 %v2536, 24
      %v3029 = vpop.permute.xlu0 %3028
      %3030 = vrot.lane.b32.xlu0 %v2538, 24
      %v3031 = vpop.permute.xlu0 %3030
      %3032 = vrot.lane.b32.xlu0 %v2539, 24
      %v3033 = vpop.permute.xlu0 %3032
      %3066 = vrot.lane.b32.xlu0 %v2599, 32
      %v3067 = vpop.permute.xlu0 %3066
      %3068 = vrot.lane.b32.xlu0 %v2601, 32
      %v3069 = vpop.permute.xlu0 %3068
      %3070 = vrot.lane.b32.xlu0 %v2604, 32
      %v3071 = vpop.permute.xlu0 %3070
      %3072 = vrot.lane.b32.xlu0 %v2606, 32
      %v3073 = vpop.permute.xlu0 %3072
      %3074 = vrot.lane.b32.xlu0 %v2609, 32
      %v3075 = vpop.permute.xlu0 %3074
      %3076 = vrot.lane.b32.xlu0 %v2611, 32
      %v3077 = vpop.permute.xlu0 %3076
      %3078 = vrot.lane.b32.xlu0 %v2614, 32
      %v3079 = vpop.permute.xlu0 %3078
      %3080 = vrot.lane.b32.xlu0 %v2616, 32
      %v3081 = vpop.permute.xlu0 %3080
      %3082 = vrot.lane.b32.xlu0 %v2619, 32
      %v3083 = vpop.permute.xlu0 %3082
      %3084 = vrot.lane.b32.xlu0 %v2621, 32
      %v3085 = vpop.permute.xlu0 %3084
      %3086 = vrot.lane.b32.xlu0 %v2624, 32
      %v3087 = vpop.permute.xlu0 %3086
      %3088 = vrot.lane.b32.xlu0 %v2626, 32
      %v3089 = vpop.permute.xlu0 %3088
      %3090 = vrot.lane.b32.xlu0 %v2629, 32
      %v3091 = vpop.permute.xlu0 %3090
      %3092 = vrot.lane.b32.xlu0 %v2631, 32
      %v3093 = vpop.permute.xlu0 %3092
      %3094 = vrot.lane.b32.xlu0 %v2634, 32
      %v3095 = vpop.permute.xlu0 %3094
      %3096 = vrot.lane.b32.xlu0 %v2636, 32
      %v3097 = vpop.permute.xlu0 %3096
      %3098 = vrot.lane.b32.xlu0 %v2639, 32
      %v3099 = vpop.permute.xlu0 %3098
      %3100 = vrot.lane.b32.xlu0 %v2641, 32
      %v3101 = vpop.permute.xlu0 %3100
      %3102 = vrot.lane.b32.xlu0 %v2644, 32
      %v3103 = vpop.permute.xlu0 %3102
      %3104 = vrot.lane.b32.xlu0 %v2646, 32
      %v3105 = vpop.permute.xlu0 %3104
      %3106 = vrot.lane.b32.xlu0 %v2649, 32
      %v3107 = vpop.permute.xlu0 %3106
      %3108 = vrot.lane.b32.xlu0 %v2651, 32
      %v3109 = vpop.permute.xlu0 %3108
      %3110 = vrot.lane.b32.xlu0 %v2654, 32
      %v3111 = vpop.permute.xlu0 %3110
      %3112 = vrot.lane.b32.xlu0 %v2656, 32
      %v3113 = vpop.permute.xlu0 %3112
      %3114 = vrot.lane.b32.xlu0 %v2659, 32
      %v3115 = vpop.permute.xlu0 %3114
      %3116 = vrot.lane.b32.xlu0 %v2661, 32
      %v3117 = vpop.permute.xlu0 %3116
      %3118 = vrot.lane.b32.xlu0 %v2664, 32
      %v3119 = vpop.permute.xlu0 %3118
      %3120 = vrot.lane.b32.xlu0 %v2666, 32
      %v3121 = vpop.permute.xlu0 %3120
      %3122 = vrot.lane.b32.xlu0 %v2669, 32
      %v3123 = vpop.permute.xlu0 %3122
      %3124 = vrot.lane.b32.xlu0 %v2671, 32
      %v3125 = vpop.permute.xlu0 %3124
      %3126 = vrot.lane.b32.xlu0 %v2757, 32
      %v3127 = vpop.permute.xlu0 %3126
      %3128 = vrot.lane.b32.xlu0 %v2759, 32
      %v3129 = vpop.permute.xlu0 %3128
      %3162 = vrot.lane.b32.xlu0 %v2679, 40
      %v3163 = vpop.permute.xlu0 %3162
      %3164 = vrot.lane.b32.xlu0 %v2681, 40
      %v3165 = vpop.permute.xlu0 %3164
      %3166 = vrot.lane.b32.xlu0 %v2684, 40
      %v3167 = vpop.permute.xlu0 %3166
      %3168 = vrot.lane.b32.xlu0 %v2686, 40
      %v3169 = vpop.permute.xlu0 %3168
      %3170 = vrot.lane.b32.xlu0 %v2689, 40
      %v3171 = vpop.permute.xlu0 %3170
      %3172 = vrot.lane.b32.xlu0 %v2691, 40
      %v3173 = vpop.permute.xlu0 %3172
      %3174 = vrot.lane.b32.xlu0 %v2694, 40
      %v3175 = vpop.permute.xlu0 %3174
      %3176 = vrot.lane.b32.xlu0 %v2696, 40
      %v3177 = vpop.permute.xlu0 %3176
      %3178 = vrot.lane.b32.xlu0 %v2699, 40
      %v3179 = vpop.permute.xlu0 %3178
      %3180 = vrot.lane.b32.xlu0 %v2701, 40
      %v3181 = vpop.permute.xlu0 %3180
      %3182 = vrot.lane.b32.xlu0 %v2704, 40
      %v3183 = vpop.permute.xlu0 %3182
      %3184 = vrot.lane.b32.xlu0 %v2706, 40
      %v3185 = vpop.permute.xlu0 %3184
      %3186 = vrot.lane.b32.xlu0 %v2709, 40
      %v3187 = vpop.permute.xlu0 %3186
      %3188 = vrot.lane.b32.xlu0 %v2711, 40
      %v3189 = vpop.permute.xlu0 %3188
      %3190 = vrot.lane.b32.xlu0 %v2714, 40
      %v3191 = vpop.permute.xlu0 %3190
      %3192 = vrot.lane.b32.xlu0 %v2716, 40
      %v3193 = vpop.permute.xlu0 %3192
      %3194 = vrot.lane.b32.xlu0 %v2719, 40
      %v3195 = vpop.permute.xlu0 %3194
      %3196 = vrot.lane.b32.xlu0 %v2721, 40
      %v3197 = vpop.permute.xlu0 %3196
      %3198 = vrot.lane.b32.xlu0 %v2724, 40
      %v3199 = vpop.permute.xlu0 %3198
      %3200 = vrot.lane.b32.xlu0 %v2726, 40
      %v3201 = vpop.permute.xlu0 %3200
      %3202 = vrot.lane.b32.xlu0 %v2729, 40
      %v3203 = vpop.permute.xlu0 %3202
      %3204 = vrot.lane.b32.xlu0 %v2731, 40
      %v3205 = vpop.permute.xlu0 %3204
      %3206 = vrot.lane.b32.xlu0 %v2734, 40
      %v3207 = vpop.permute.xlu0 %3206
      %3208 = vrot.lane.b32.xlu0 %v2736, 40
      %v3209 = vpop.permute.xlu0 %3208
      %3210 = vrot.lane.b32.xlu0 %v2739, 40
      %v3211 = vpop.permute.xlu0 %3210
      %3212 = vrot.lane.b32.xlu0 %v2741, 40
      %v3213 = vpop.permute.xlu0 %3212
      %3214 = vrot.lane.b32.xlu0 %v2744, 40
      %v3215 = vpop.permute.xlu0 %3214
      %3216 = vrot.lane.b32.xlu0 %v2746, 40
      %v3217 = vpop.permute.xlu0 %3216
      %3218 = vrot.lane.b32.xlu0 %v2749, 40
      %v3219 = vpop.permute.xlu0 %3218
      %3220 = vrot.lane.b32.xlu0 %v2751, 40
      %v3221 = vpop.permute.xlu0 %3220
      %3222 = vrot.lane.b32.xlu0 %v2762, 40
      %v3223 = vpop.permute.xlu0 %3222
      %3224 = vrot.lane.b32.xlu0 %v2764, 40
      %v3225 = vpop.permute.xlu0 %3224
      %3258 = vrot.lane.b32.xlu0 %v2496, 48
      %v3259 = vpop.permute.xlu0 %3258
      %3260 = vrot.lane.b32.xlu0 %v2497, 48
      %v3261 = vpop.permute.xlu0 %3260
      %3262 = vrot.lane.b32.xlu0 %v2499, 48
      %v3263 = vpop.permute.xlu0 %3262
      %3264 = vrot.lane.b32.xlu0 %v2500, 48
      %v3265 = vpop.permute.xlu0 %3264
      %3266 = vrot.lane.b32.xlu0 %v2502, 48
      %v3267 = vpop.permute.xlu0 %3266
      %3268 = vrot.lane.b32.xlu0 %v2503, 48
      %v3269 = vpop.permute.xlu0 %3268
      %3270 = vrot.lane.b32.xlu0 %v2505, 48
      %v3271 = vpop.permute.xlu0 %3270
      %3272 = vrot.lane.b32.xlu0 %v2506, 48
      %v3273 = vpop.permute.xlu0 %3272
      %3274 = vrot.lane.b32.xlu0 %v2508, 48
      %v3275 = vpop.permute.xlu0 %3274
      %3276 = vrot.lane.b32.xlu0 %v2509, 48
      %v3277 = vpop.permute.xlu0 %3276
      %3278 = vrot.lane.b32.xlu0 %v2511, 48
      %v3279 = vpop.permute.xlu0 %3278
      %3280 = vrot.lane.b32.xlu0 %v2512, 48
      %v3281 = vpop.permute.xlu0 %3280
      %3282 = vrot.lane.b32.xlu0 %v2514, 48
      %v3283 = vpop.permute.xlu0 %3282
      %3284 = vrot.lane.b32.xlu0 %v2515, 48
      %v3285 = vpop.permute.xlu0 %3284
      %3286 = vrot.lane.b32.xlu0 %v2517, 48
      %v3287 = vpop.permute.xlu0 %3286
      %3288 = vrot.lane.b32.xlu0 %v2518, 48
      %v3289 = vpop.permute.xlu0 %3288
      %3290 = vrot.lane.b32.xlu0 %v2520, 48
      %v3291 = vpop.permute.xlu0 %3290
      %3292 = vrot.lane.b32.xlu0 %v2521, 48
      %v3293 = vpop.permute.xlu0 %3292
      %3294 = vrot.lane.b32.xlu0 %v2523, 48
      %v3295 = vpop.permute.xlu0 %3294
      %3296 = vrot.lane.b32.xlu0 %v2524, 48
      %v3297 = vpop.permute.xlu0 %3296
      %3298 = vrot.lane.b32.xlu0 %v2526, 48
      %v3299 = vpop.permute.xlu0 %3298
      %3300 = vrot.lane.b32.xlu0 %v2527, 48
      %v3301 = vpop.permute.xlu0 %3300
      %3302 = vrot.lane.b32.xlu0 %v2529, 48
      %v3303 = vpop.permute.xlu0 %3302
      %3304 = vrot.lane.b32.xlu0 %v2530, 48
      %v3305 = vpop.permute.xlu0 %3304
      %3306 = vrot.lane.b32.xlu0 %v2532, 48
      %v3307 = vpop.permute.xlu0 %3306
      %3308 = vrot.lane.b32.xlu0 %v2533, 48
      %v3309 = vpop.permute.xlu0 %3308
      %3310 = vrot.lane.b32.xlu0 %v2535, 48
      %v3311 = vpop.permute.xlu0 %3310
      %3312 = vrot.lane.b32.xlu0 %v2536, 48
      %v3313 = vpop.permute.xlu0 %3312
      %3314 = vrot.lane.b32.xlu0 %v2538, 48
      %v3315 = vpop.permute.xlu0 %3314
      %3316 = vrot.lane.b32.xlu0 %v2539, 48
      %v3317 = vpop.permute.xlu0 %3316
      %3318 = vrot.lane.b32.xlu0 %v2541, 48
      %v3319 = vpop.permute.xlu0 %3318
      %3320 = vrot.lane.b32.xlu0 %v2542, 48
      %v3321 = vpop.permute.xlu0 %3320
      %3354 = vrot.lane.b32.xlu0 %v2604, 56
      %v3355 = vpop.permute.xlu0 %3354
      %3356 = vrot.lane.b32.xlu0 %v2606, 56
      %v3357 = vpop.permute.xlu0 %3356
      %3358 = vrot.lane.b32.xlu0 %v2609, 56
      %v3359 = vpop.permute.xlu0 %3358
      %3360 = vrot.lane.b32.xlu0 %v2611, 56
      %v3361 = vpop.permute.xlu0 %3360
      %3362 = vrot.lane.b32.xlu0 %v2614, 56
      %v3363 = vpop.permute.xlu0 %3362
      %3364 = vrot.lane.b32.xlu0 %v2616, 56
      %v3365 = vpop.permute.xlu0 %3364
      %3366 = vrot.lane.b32.xlu0 %v2619, 56
      %v3367 = vpop.permute.xlu0 %3366
      %3368 = vrot.lane.b32.xlu0 %v2621, 56
      %v3369 = vpop.permute.xlu0 %3368
      %3370 = vrot.lane.b32.xlu0 %v2624, 56
      %v3371 = vpop.permute.xlu0 %3370
      %3372 = vrot.lane.b32.xlu0 %v2626, 56
      %v3373 = vpop.permute.xlu0 %3372
      %3374 = vrot.lane.b32.xlu0 %v2629, 56
      %v3375 = vpop.permute.xlu0 %3374
      %3376 = vrot.lane.b32.xlu0 %v2631, 56
      %v3377 = vpop.permute.xlu0 %3376
      %3378 = vrot.lane.b32.xlu0 %v2634, 56
      %v3379 = vpop.permute.xlu0 %3378
      %3380 = vrot.lane.b32.xlu0 %v2636, 56
      %v3381 = vpop.permute.xlu0 %3380
      %3382 = vrot.lane.b32.xlu0 %v2639, 56
      %v3383 = vpop.permute.xlu0 %3382
      %3384 = vrot.lane.b32.xlu0 %v2641, 56
      %v3385 = vpop.permute.xlu0 %3384
      %3386 = vrot.lane.b32.xlu0 %v2644, 56
      %v3387 = vpop.permute.xlu0 %3386
      %3388 = vrot.lane.b32.xlu0 %v2646, 56
      %v3389 = vpop.permute.xlu0 %3388
      %3390 = vrot.lane.b32.xlu0 %v2649, 56
      %v3391 = vpop.permute.xlu0 %3390
      %3392 = vrot.lane.b32.xlu0 %v2651, 56
      %v3393 = vpop.permute.xlu0 %3392
      %3394 = vrot.lane.b32.xlu0 %v2654, 56
      %v3395 = vpop.permute.xlu0 %3394
      %3396 = vrot.lane.b32.xlu0 %v2656, 56
      %v3397 = vpop.permute.xlu0 %3396
      %3398 = vrot.lane.b32.xlu0 %v2659, 56
      %v3399 = vpop.permute.xlu0 %3398
      %3400 = vrot.lane.b32.xlu0 %v2661, 56
      %v3401 = vpop.permute.xlu0 %3400
      %3402 = vrot.lane.b32.xlu0 %v2664, 56
      %v3403 = vpop.permute.xlu0 %3402
      %3404 = vrot.lane.b32.xlu0 %v2666, 56
      %v3405 = vpop.permute.xlu0 %3404
      %3406 = vrot.lane.b32.xlu0 %v2669, 56
      %v3407 = vpop.permute.xlu0 %3406
      %3408 = vrot.lane.b32.xlu0 %v2671, 56
      %v3409 = vpop.permute.xlu0 %3408
      %3410 = vrot.lane.b32.xlu0 %v2757, 56
      %v3411 = vpop.permute.xlu0 %3410
      %3412 = vrot.lane.b32.xlu0 %v2759, 56
      %v3413 = vpop.permute.xlu0 %3412
      %3414 = vrot.lane.b32.xlu0 %v2770, 56
      %v3415 = vpop.permute.xlu0 %3414
      %3416 = vrot.lane.b32.xlu0 %v2772, 56
      %v3417 = vpop.permute.xlu0 %3416
      %3450 = vrot.lane.b32.xlu0 %v2684, 64
      %v3451 = vpop.permute.xlu0 %3450
      %3452 = vrot.lane.b32.xlu0 %v2686, 64
      %v3453 = vpop.permute.xlu0 %3452
      %3454 = vrot.lane.b32.xlu0 %v2689, 64
      %v3455 = vpop.permute.xlu0 %3454
      %3456 = vrot.lane.b32.xlu0 %v2691, 64
      %v3457 = vpop.permute.xlu0 %3456
      %3458 = vrot.lane.b32.xlu0 %v2694, 64
      %v3459 = vpop.permute.xlu0 %3458
      %3460 = vrot.lane.b32.xlu0 %v2696, 64
      %v3461 = vpop.permute.xlu0 %3460
      %3462 = vrot.lane.b32.xlu0 %v2699, 64
      %v3463 = vpop.permute.xlu0 %3462
      %3464 = vrot.lane.b32.xlu0 %v2701, 64
      %v3465 = vpop.permute.xlu0 %3464
      %3466 = vrot.lane.b32.xlu0 %v2704, 64
      %v3467 = vpop.permute.xlu0 %3466
      %3468 = vrot.lane.b32.xlu0 %v2706, 64
      %v3469 = vpop.permute.xlu0 %3468
      %3470 = vrot.lane.b32.xlu0 %v2709, 64
      %v3471 = vpop.permute.xlu0 %3470
      %3472 = vrot.lane.b32.xlu0 %v2711, 64
      %v3473 = vpop.permute.xlu0 %3472
      %3474 = vrot.lane.b32.xlu0 %v2714, 64
      %v3475 = vpop.permute.xlu0 %3474
      %3476 = vrot.lane.b32.xlu0 %v2716, 64
      %v3477 = vpop.permute.xlu0 %3476
      %3478 = vrot.lane.b32.xlu0 %v2719, 64
      %v3479 = vpop.permute.xlu0 %3478
      %3480 = vrot.lane.b32.xlu0 %v2721, 64
      %v3481 = vpop.permute.xlu0 %3480
      %3482 = vrot.lane.b32.xlu0 %v2724, 64
      %v3483 = vpop.permute.xlu0 %3482
      %3484 = vrot.lane.b32.xlu0 %v2726, 64
      %v3485 = vpop.permute.xlu0 %3484
      %3486 = vrot.lane.b32.xlu0 %v2729, 64
      %v3487 = vpop.permute.xlu0 %3486
      %3488 = vrot.lane.b32.xlu0 %v2731, 64
      %v3489 = vpop.permute.xlu0 %3488
      %3490 = vrot.lane.b32.xlu0 %v2734, 64
      %v3491 = vpop.permute.xlu0 %3490
      %3492 = vrot.lane.b32.xlu0 %v2736, 64
      %v3493 = vpop.permute.xlu0 %3492
      %3494 = vrot.lane.b32.xlu0 %v2739, 64
      %v3495 = vpop.permute.xlu0 %3494
      %3496 = vrot.lane.b32.xlu0 %v2741, 64
      %v3497 = vpop.permute.xlu0 %3496
      %3498 = vrot.lane.b32.xlu0 %v2744, 64
      %v3499 = vpop.permute.xlu0 %3498
      %3500 = vrot.lane.b32.xlu0 %v2746, 64
      %v3501 = vpop.permute.xlu0 %3500
      %3502 = vrot.lane.b32.xlu0 %v2749, 64
      %v3503 = vpop.permute.xlu0 %3502
      %3504 = vrot.lane.b32.xlu0 %v2751, 64
      %v3505 = vpop.permute.xlu0 %3504
      %3506 = vrot.lane.b32.xlu0 %v2762, 64
      %v3507 = vpop.permute.xlu0 %3506
      %3508 = vrot.lane.b32.xlu0 %v2764, 64
      %v3509 = vpop.permute.xlu0 %3508
      %3510 = vrot.lane.b32.xlu0 %v2775, 64
      %v3511 = vpop.permute.xlu0 %3510
      %3512 = vrot.lane.b32.xlu0 %v2777, 64
      %v3513 = vpop.permute.xlu0 %3512
      %v3546 = vsel %vm334, %v2490, %v2779
      %v3547 = vsel %vm334, %v2491, %v2781
      %v3548 = vsel %vm334, %v2493, %v2783
      %v3549 = vsel %vm334, %v2494, %v2785
      %v3550 = vsel %vm334, %v2496, %v2787
      %v3551 = vsel %vm334, %v2497, %v2789
      %v3552 = vsel %vm334, %v2499, %v2791
      %v3553 = vsel %vm334, %v2500, %v2793
      %v3554 = vsel %vm334, %v2502, %v2795
      %v3555 = vsel %vm334, %v2503, %v2797
      %v3556 = vsel %vm334, %v2505, %v2799
      %v3557 = vsel %vm334, %v2506, %v2801
      %v3558 = vsel %vm334, %v2508, %v2803
      %v3559 = vsel %vm334, %v2509, %v2805
      %v3560 = vsel %vm334, %v2511, %v2807
      %v3561 = vsel %vm334, %v2512, %v2809
      %v3562 = vsel %vm334, %v2514, %v2811
      %v3563 = vsel %vm334, %v2515, %v2813
      %v3564 = vsel %vm334, %v2517, %v2815
      %v3565 = vsel %vm334, %v2518, %v2817
      %v3566 = vsel %vm334, %v2520, %v2819
      %v3567 = vsel %vm334, %v2521, %v2821
      %v3568 = vsel %vm334, %v2523, %v2823
      %v3569 = vsel %vm334, %v2524, %v2825
      %v3570 = vsel %vm334, %v2526, %v2827
      %v3571 = vsel %vm334, %v2527, %v2829
      %v3572 = vsel %vm334, %v2529, %v2831
      %v3573 = vsel %vm334, %v2530, %v2833
      %v3574 = vsel %vm334, %v2532, %v2835
      %v3575 = vsel %vm334, %v2533, %v2837
      %v3576 = vsel %vm334, %v2535, %v2839
      %v3577 = vsel %vm334, %v2536, %v2841
      %v3578 = vsel %vm1932, %v3546, %v2875
      %v3579 = vsel %vm1932, %v3547, %v2877
      %v3580 = vsel %vm1932, %v3548, %v2879
      %v3581 = vsel %vm1932, %v3549, %v2881
      %v3582 = vsel %vm1932, %v3550, %v2883
      %v3583 = vsel %vm1932, %v3551, %v2885
      %v3584 = vsel %vm1932, %v3552, %v2887
      %v3585 = vsel %vm1932, %v3553, %v2889
      %v3586 = vsel %vm1932, %v3554, %v2891
      %v3587 = vsel %vm1932, %v3555, %v2893
      %v3588 = vsel %vm1932, %v3556, %v2895
      %v3589 = vsel %vm1932, %v3557, %v2897
      %v3590 = vsel %vm1932, %v3558, %v2899
      %v3591 = vsel %vm1932, %v3559, %v2901
      %v3592 = vsel %vm1932, %v3560, %v2903
      %v3593 = vsel %vm1932, %v3561, %v2905
      %v3594 = vsel %vm1932, %v3562, %v2907
      %v3595 = vsel %vm1932, %v3563, %v2909
      %v3596 = vsel %vm1932, %v3564, %v2911
      %v3597 = vsel %vm1932, %v3565, %v2913
      %v3598 = vsel %vm1932, %v3566, %v2915
      %v3599 = vsel %vm1932, %v3567, %v2917
      %v3600 = vsel %vm1932, %v3568, %v2919
      %v3601 = vsel %vm1932, %v3569, %v2921
      %v3602 = vsel %vm1932, %v3570, %v2923
      %v3603 = vsel %vm1932, %v3571, %v2925
      %v3604 = vsel %vm1932, %v3572, %v2927
      %v3605 = vsel %vm1932, %v3573, %v2929
      %v3606 = vsel %vm1932, %v3574, %v2931
      %v3607 = vsel %vm1932, %v3575, %v2933
      %v3608 = vsel %vm1932, %v3576, %v2935
      %v3609 = vsel %vm1932, %v3577, %v2937
      %v3610 = vsel %vm1965, %v3578, %v2971
      %v3611 = vsel %vm1965, %v3579, %v2973
      %v3612 = vsel %vm1965, %v3580, %v2975
      %v3613 = vsel %vm1965, %v3581, %v2977
      %v3614 = vsel %vm1965, %v3582, %v2979
      %v3615 = vsel %vm1965, %v3583, %v2981
      %v3616 = vsel %vm1965, %v3584, %v2983
      %v3617 = vsel %vm1965, %v3585, %v2985
      %v3618 = vsel %vm1965, %v3586, %v2987
      %v3619 = vsel %vm1965, %v3587, %v2989
      %v3620 = vsel %vm1965, %v3588, %v2991
      %v3621 = vsel %vm1965, %v3589, %v2993
      %v3622 = vsel %vm1965, %v3590, %v2995
      %v3623 = vsel %vm1965, %v3591, %v2997
      %v3624 = vsel %vm1965, %v3592, %v2999
      %v3625 = vsel %vm1965, %v3593, %v3001
      %v3626 = vsel %vm1965, %v3594, %v3003
      %v3627 = vsel %vm1965, %v3595, %v3005
      %v3628 = vsel %vm1965, %v3596, %v3007
      %v3629 = vsel %vm1965, %v3597, %v3009
      %v3630 = vsel %vm1965, %v3598, %v3011
      %v3631 = vsel %vm1965, %v3599, %v3013
      %v3632 = vsel %vm1965, %v3600, %v3015
      %v3633 = vsel %vm1965, %v3601, %v3017
      %v3634 = vsel %vm1965, %v3602, %v3019
      %v3635 = vsel %vm1965, %v3603, %v3021
      %v3636 = vsel %vm1965, %v3604, %v3023
      %v3637 = vsel %vm1965, %v3605, %v3025
      %v3638 = vsel %vm1965, %v3606, %v3027
      %v3639 = vsel %vm1965, %v3607, %v3029
      %v3640 = vsel %vm1965, %v3608, %v3031
      %v3641 = vsel %vm1965, %v3609, %v3033
      %v3642 = vsel %vm1998, %v3610, %v3067
      %v3643 = vsel %vm1998, %v3611, %v3069
      %v3644 = vsel %vm1998, %v3612, %v3071
      %v3645 = vsel %vm1998, %v3613, %v3073
      %v3646 = vsel %vm1998, %v3614, %v3075
      %v3647 = vsel %vm1998, %v3615, %v3077
      %v3648 = vsel %vm1998, %v3616, %v3079
      %v3649 = vsel %vm1998, %v3617, %v3081
      %v3650 = vsel %vm1998, %v3618, %v3083
      %v3651 = vsel %vm1998, %v3619, %v3085
      %v3652 = vsel %vm1998, %v3620, %v3087
      %v3653 = vsel %vm1998, %v3621, %v3089
      %v3654 = vsel %vm1998, %v3622, %v3091
      %v3655 = vsel %vm1998, %v3623, %v3093
      %v3656 = vsel %vm1998, %v3624, %v3095
      %v3657 = vsel %vm1998, %v3625, %v3097
      %v3658 = vsel %vm1998, %v3626, %v3099
      %v3659 = vsel %vm1998, %v3627, %v3101
      %v3660 = vsel %vm1998, %v3628, %v3103
      %v3661 = vsel %vm1998, %v3629, %v3105
      %v3662 = vsel %vm1998, %v3630, %v3107
      %v3663 = vsel %vm1998, %v3631, %v3109
      %v3664 = vsel %vm1998, %v3632, %v3111
      %v3665 = vsel %vm1998, %v3633, %v3113
      %v3666 = vsel %vm1998, %v3634, %v3115
      %v3667 = vsel %vm1998, %v3635, %v3117
      %v3668 = vsel %vm1998, %v3636, %v3119
      %v3669 = vsel %vm1998, %v3637, %v3121
      %v3670 = vsel %vm1998, %v3638, %v3123
      %v3671 = vsel %vm1998, %v3639, %v3125
      %v3672 = vsel %vm1998, %v3640, %v3127
      %v3673 = vsel %vm1998, %v3641, %v3129
      %v3674 = vsel %vm2031, %v3642, %v3163
      %v3675 = vsel %vm2031, %v3643, %v3165
      %v3676 = vsel %vm2031, %v3644, %v3167
      %v3677 = vsel %vm2031, %v3645, %v3169
      %v3678 = vsel %vm2031, %v3646, %v3171
      %v3679 = vsel %vm2031, %v3647, %v3173
      %v3680 = vsel %vm2031, %v3648, %v3175
      %v3681 = vsel %vm2031, %v3649, %v3177
      %v3682 = vsel %vm2031, %v3650, %v3179
      %v3683 = vsel %vm2031, %v3651, %v3181
      %v3684 = vsel %vm2031, %v3652, %v3183
      %v3685 = vsel %vm2031, %v3653, %v3185
      %v3686 = vsel %vm2031, %v3654, %v3187
      %v3687 = vsel %vm2031, %v3655, %v3189
      %v3688 = vsel %vm2031, %v3656, %v3191
      %v3689 = vsel %vm2031, %v3657, %v3193
      %v3690 = vsel %vm2031, %v3658, %v3195
      %v3691 = vsel %vm2031, %v3659, %v3197
      %v3692 = vsel %vm2031, %v3660, %v3199
      %v3693 = vsel %vm2031, %v3661, %v3201
      %v3694 = vsel %vm2031, %v3662, %v3203
      %v3695 = vsel %vm2031, %v3663, %v3205
      %v3696 = vsel %vm2031, %v3664, %v3207
      %v3697 = vsel %vm2031, %v3665, %v3209
      %v3698 = vsel %vm2031, %v3666, %v3211
      %v3699 = vsel %vm2031, %v3667, %v3213
      %v3700 = vsel %vm2031, %v3668, %v3215
      %v3701 = vsel %vm2031, %v3669, %v3217
      %v3702 = vsel %vm2031, %v3670, %v3219
      %v3703 = vsel %vm2031, %v3671, %v3221
      %v3704 = vsel %vm2031, %v3672, %v3223
      %v3705 = vsel %vm2031, %v3673, %v3225
      %v3706 = vsel %vm2064, %v3674, %v3259
      %v3707 = vsel %vm2064, %v3675, %v3261
      %v3708 = vsel %vm2064, %v3676, %v3263
      %v3709 = vsel %vm2064, %v3677, %v3265
      %v3710 = vsel %vm2064, %v3678, %v3267
      %v3711 = vsel %vm2064, %v3679, %v3269
      %v3712 = vsel %vm2064, %v3680, %v3271
      %v3713 = vsel %vm2064, %v3681, %v3273
      %v3714 = vsel %vm2064, %v3682, %v3275
      %v3715 = vsel %vm2064, %v3683, %v3277
      %v3716 = vsel %vm2064, %v3684, %v3279
      %v3717 = vsel %vm2064, %v3685, %v3281
      %v3718 = vsel %vm2064, %v3686, %v3283
      %v3719 = vsel %vm2064, %v3687, %v3285
      %v3720 = vsel %vm2064, %v3688, %v3287
      %v3721 = vsel %vm2064, %v3689, %v3289
      %v3722 = vsel %vm2064, %v3690, %v3291
      %v3723 = vsel %vm2064, %v3691, %v3293
      %v3724 = vsel %vm2064, %v3692, %v3295
      %v3725 = vsel %vm2064, %v3693, %v3297
      %v3726 = vsel %vm2064, %v3694, %v3299
      %v3727 = vsel %vm2064, %v3695, %v3301
      %v3728 = vsel %vm2064, %v3696, %v3303
      %v3729 = vsel %vm2064, %v3697, %v3305
      %v3730 = vsel %vm2064, %v3698, %v3307
      %v3731 = vsel %vm2064, %v3699, %v3309
      %v3732 = vsel %vm2064, %v3700, %v3311
      %v3733 = vsel %vm2064, %v3701, %v3313
      %v3734 = vsel %vm2064, %v3702, %v3315
      %v3735 = vsel %vm2064, %v3703, %v3317
      %v3736 = vsel %vm2064, %v3704, %v3319
      %v3737 = vsel %vm2064, %v3705, %v3321
      %v3738 = vsel %vm2097, %v3706, %v3355
      %v3739 = vsel %vm2097, %v3707, %v3357
      %v3740 = vsel %vm2097, %v3708, %v3359
      %v3741 = vsel %vm2097, %v3709, %v3361
      %v3742 = vsel %vm2097, %v3710, %v3363
      %v3743 = vsel %vm2097, %v3711, %v3365
      %v3744 = vsel %vm2097, %v3712, %v3367
      %v3745 = vsel %vm2097, %v3713, %v3369
      %v3746 = vsel %vm2097, %v3714, %v3371
      %v3747 = vsel %vm2097, %v3715, %v3373
      %v3748 = vsel %vm2097, %v3716, %v3375
      %v3749 = vsel %vm2097, %v3717, %v3377
      %v3750 = vsel %vm2097, %v3718, %v3379
      %v3751 = vsel %vm2097, %v3719, %v3381
      %v3752 = vsel %vm2097, %v3720, %v3383
      %v3753 = vsel %vm2097, %v3721, %v3385
      %v3754 = vsel %vm2097, %v3722, %v3387
      %v3755 = vsel %vm2097, %v3723, %v3389
      %v3756 = vsel %vm2097, %v3724, %v3391
      %v3757 = vsel %vm2097, %v3725, %v3393
      %v3758 = vsel %vm2097, %v3726, %v3395
      %v3759 = vsel %vm2097, %v3727, %v3397
      %v3760 = vsel %vm2097, %v3728, %v3399
      %v3761 = vsel %vm2097, %v3729, %v3401
      %v3762 = vsel %vm2097, %v3730, %v3403
      %v3763 = vsel %vm2097, %v3731, %v3405
      %v3764 = vsel %vm2097, %v3732, %v3407
      %v3765 = vsel %vm2097, %v3733, %v3409
      %v3766 = vsel %vm2097, %v3734, %v3411
      %v3767 = vsel %vm2097, %v3735, %v3413
      %v3768 = vsel %vm2097, %v3736, %v3415
      %v3769 = vsel %vm2097, %v3737, %v3417
      %v3770 = vsel %vm2130, %v3738, %v3451
      %v3771 = vsel %vm2130, %v3739, %v3453
      %v3772 = vsel %vm2130, %v3740, %v3455
      %v3773 = vsel %vm2130, %v3741, %v3457
      %v3774 = vsel %vm2130, %v3742, %v3459
      %v3775 = vsel %vm2130, %v3743, %v3461
      %v3776 = vsel %vm2130, %v3744, %v3463
      %v3777 = vsel %vm2130, %v3745, %v3465
      %v3778 = vsel %vm2130, %v3746, %v3467
      %v3779 = vsel %vm2130, %v3747, %v3469
      %v3780 = vsel %vm2130, %v3748, %v3471
      %v3781 = vsel %vm2130, %v3749, %v3473
      %v3782 = vsel %vm2130, %v3750, %v3475
      %v3783 = vsel %vm2130, %v3751, %v3477
      %v3784 = vsel %vm2130, %v3752, %v3479
      %v3785 = vsel %vm2130, %v3753, %v3481
      %v3786 = vsel %vm2130, %v3754, %v3483
      %v3787 = vsel %vm2130, %v3755, %v3485
      %v3788 = vsel %vm2130, %v3756, %v3487
      %v3789 = vsel %vm2130, %v3757, %v3489
      %v3790 = vsel %vm2130, %v3758, %v3491
      %v3791 = vsel %vm2130, %v3759, %v3493
      %v3792 = vsel %vm2130, %v3760, %v3495
      %v3793 = vsel %vm2130, %v3761, %v3497
      %v3794 = vsel %vm2130, %v3762, %v3499
      %v3795 = vsel %vm2130, %v3763, %v3501
      %v3796 = vsel %vm2130, %v3764, %v3503
      %v3797 = vsel %vm2130, %v3765, %v3505
      %v3798 = vsel %vm2130, %v3766, %v3507
      %v3799 = vsel %vm2130, %v3767, %v3509
      %v3800 = vsel %vm2130, %v3768, %v3511
      %v3801 = vsel %vm2130, %v3769, %v3513
      %v3802 = vpack.c.bf16 %v3771, %v3770
      %v3803 = vpack.c.bf16 %v3773, %v3772
      %v3804 = vpack.c.bf16 %v3775, %v3774
      %v3805 = vpack.c.bf16 %v3777, %v3776
      %v3806 = vpack.c.bf16 %v3779, %v3778
      %v3807 = vpack.c.bf16 %v3781, %v3780
      %v3808 = vpack.c.bf16 %v3783, %v3782
      %v3809 = vpack.c.bf16 %v3785, %v3784
      %v3810 = vpack.c.bf16 %v3787, %v3786
      %v3811 = vpack.c.bf16 %v3789, %v3788
      %v3812 = vpack.c.bf16 %v3791, %v3790
      %v3813 = vpack.c.bf16 %v3793, %v3792
      %v3814 = vpack.c.bf16 %v3795, %v3794
      %v3815 = vpack.c.bf16 %v3797, %v3796
      %v3816 = vpack.c.bf16 %v3799, %v3798
      %v3817 = vpack.c.bf16 %v3801, %v3800
      %v3818 = vld [vmem:[%s5] sm:$0xf]
      %v3819 = vld [vmem:[%s5 + $0x4] sm:$0xf]
      %v3820 = vld [vmem:[%s5 + $0x8] sm:$0xf]
      %v3821 = vld [vmem:[%s5 + $0xc] sm:$0xf]
      %v3822 = vld [vmem:[%s5 + $0x10] sm:$0xf]
      %v3823 = vld [vmem:[%s5 + $0x14] sm:$0xf]
      %v3824 = vld [vmem:[%s5 + $0x18] sm:$0xf]
      %v3825 = vld [vmem:[%s5 + $0x1c] sm:$0xf]
      %v3826 = vld [vmem:[%s5 + $0x20] sm:$0xf]
      %v3827 = vld [vmem:[%s6] sm:$0x1]
      %v3829 = vperm.slane %v3827, 0
      %v3840 = vunpack.c.l.b16 %v3818
      %v3841 = vunpack.c.l.b16 %v3819
      %v3842 = vunpack.c.l.b16 %v3820
      %v3843 = vunpack.c.l.b16 %v3821
      %v3844 = vunpack.c.l.b16 %v3822
      %v3845 = vunpack.c.l.b16 %v3823
      %v3846 = vunpack.c.l.b16 %v3824
      %v3847 = vunpack.c.l.b16 %v3825
      %v3848 = vunpack.c.l.b16 %v3826
      %v3849 = vpack.c.b16 %v3841, %v3840
      %v3850 = vpack.c.b16 %v3843, %v3842
      %v3851 = vpack.c.b16 %v3845, %v3844
      %v3852 = vpack.c.b16 %v3847, %v3846
      %v3853 = vpack.c.b16 %v3848, %v3848
      %v3859 = vsel %vm2219, %v3802, 0
      %v3862 = vsel %vm2219, %v3803, 0
      %v3865 = vsel %vm2219, %v3804, 0
      %v3868 = vsel %vm2219, %v3805, 0
      %v3871 = vsel %vm2219, %v3806, 0
      %v3874 = vsel %vm2219, %v3807, 0
      %v3877 = vsel %vm2219, %v3808, 0
      %v3880 = vsel %vm2219, %v3809, 0
      %v3883 = vsel %vm2219, %v3810, 0
      %v3886 = vsel %vm2219, %v3811, 0
      %v3889 = vsel %vm2219, %v3812, 0
      %v3892 = vsel %vm2219, %v3813, 0
      %v3895 = vsel %vm2219, %v3814, 0
      %v3898 = vsel %vm2219, %v3815, 0
      %v3901 = vsel %vm2219, %v3816, 0
      %v3904 = vsel %vm2219, %v3817, 0
      %v3907 = vsel %vm2268, %v3853, 0
      %3909 = vmatpush.bf16.msra.mxu0 0
      %3910 = vmatpush.bf16.msra.mxu0 0
      %3911 = vmatpush.bf16.msra.mxu0 0
      %3912 = vmatpush.bf16.msra.mxu0 %v3907
      %3913 = vmatpush.bf16.msra.mxu0 %v3852
      %3914 = vmatpush.bf16.msra.mxu0 %v3851
      %3915 = vmatpush.bf16.msra.mxu0 %v3850
      %3916 = vmatpush.bf16.msra.mxu0 %v3849
      %3917 = vmatmul.bf16.gmra.mxu0 %v3859
      %v3918 = vpop.f32.mrf.mxu0
      %v3919 = vadd.f32 %v3829, %v3918
      %v3920 = vpop.f32.mrf.mxu0
      %v3921 = vadd.f32 %v3829, %v3920
      %3922 = vmatmul.bf16.gmra.mxu0 %v3862
      %v3923 = vpop.f32.mrf.mxu0
      %v3924 = vadd.f32 %v3829, %v3923
      %v3925 = vpop.f32.mrf.mxu0
      %v3926 = vadd.f32 %v3829, %v3925
      %3927 = vmatmul.bf16.gmra.mxu0 %v3865
      %v3928 = vpop.f32.mrf.mxu0
      %v3929 = vadd.f32 %v3829, %v3928
      %v3930 = vpop.f32.mrf.mxu0
      %v3931 = vadd.f32 %v3829, %v3930
      %3932 = vmatmul.bf16.gmra.mxu0 %v3868
      %v3933 = vpop.f32.mrf.mxu0
      %v3934 = vadd.f32 %v3829, %v3933
      %v3935 = vpop.f32.mrf.mxu0
      %v3936 = vadd.f32 %v3829, %v3935
      %3937 = vmatmul.bf16.gmra.mxu0 %v3871
      %v3938 = vpop.f32.mrf.mxu0
      %v3939 = vadd.f32 %v3829, %v3938
      %v3940 = vpop.f32.mrf.mxu0
      %v3941 = vadd.f32 %v3829, %v3940
      %3942 = vmatmul.bf16.gmra.mxu0 %v3874
      %v3943 = vpop.f32.mrf.mxu0
      %v3944 = vadd.f32 %v3829, %v3943
      %v3945 = vpop.f32.mrf.mxu0
      %v3946 = vadd.f32 %v3829, %v3945
      %3947 = vmatmul.bf16.gmra.mxu0 %v3877
      %v3948 = vpop.f32.mrf.mxu0
      %v3949 = vadd.f32 %v3829, %v3948
      %v3950 = vpop.f32.mrf.mxu0
      %v3951 = vadd.f32 %v3829, %v3950
      %3952 = vmatmul.bf16.gmra.mxu0 %v3880
      %v3953 = vpop.f32.mrf.mxu0
      %v3954 = vadd.f32 %v3829, %v3953
      %v3955 = vpop.f32.mrf.mxu0
      %v3956 = vadd.f32 %v3829, %v3955
      %3957 = vmatmul.bf16.gmra.mxu0 %v3883
      %v3958 = vpop.f32.mrf.mxu0
      %v3959 = vadd.f32 %v3829, %v3958
      %v3960 = vpop.f32.mrf.mxu0
      %v3961 = vadd.f32 %v3829, %v3960
      %3962 = vmatmul.bf16.gmra.mxu0 %v3886
      %v3963 = vpop.f32.mrf.mxu0
      %v3964 = vadd.f32 %v3829, %v3963
      %v3965 = vpop.f32.mrf.mxu0
      %v3966 = vadd.f32 %v3829, %v3965
      %3967 = vmatmul.bf16.gmra.mxu0 %v3889
      %v3968 = vpop.f32.mrf.mxu0
      %v3969 = vadd.f32 %v3829, %v3968
      %v3970 = vpop.f32.mrf.mxu0
      %v3971 = vadd.f32 %v3829, %v3970
      %3972 = vmatmul.bf16.gmra.mxu0 %v3892
      %v3973 = vpop.f32.mrf.mxu0
      %v3974 = vadd.f32 %v3829, %v3973
      %v3975 = vpop.f32.mrf.mxu0
      %v3976 = vadd.f32 %v3829, %v3975
      %3977 = vmatmul.bf16.gmra.mxu0 %v3895
      %v3978 = vpop.f32.mrf.mxu0
      %v3979 = vadd.f32 %v3829, %v3978
      %v3980 = vpop.f32.mrf.mxu0
      %v3981 = vadd.f32 %v3829, %v3980
      %3982 = vmatmul.bf16.gmra.mxu0 %v3898
      %v3983 = vpop.f32.mrf.mxu0
      %v3984 = vadd.f32 %v3829, %v3983
      %v3985 = vpop.f32.mrf.mxu0
      %v3986 = vadd.f32 %v3829, %v3985
      %3987 = vmatmul.bf16.gmra.mxu0 %v3901
      %v3988 = vpop.f32.mrf.mxu0
      %v3989 = vadd.f32 %v3829, %v3988
      %v3990 = vpop.f32.mrf.mxu0
      %v3991 = vadd.f32 %v3829, %v3990
      %3992 = vmatmul.bf16.gmra.mxu0 %v3904
      %v3993 = vpop.f32.mrf.mxu0
      %v3994 = vadd.f32 %v3829, %v3993
      %v3995 = vpop.f32.mrf.mxu0
      %v3996 = vadd.f32 %v3829, %v3995
      %3997 = vdwg.mxu0
      %v3998 = vmul.f32 %v3919, 0.1
      %v3999 = vmul.f32 %v3921, 0.1
      %v4000 = vmul.f32 %v3924, 0.1
      %v4001 = vmul.f32 %v3926, 0.1
      %v4002 = vmul.f32 %v3929, 0.1
      %v4003 = vmul.f32 %v3931, 0.1
      %v4004 = vmul.f32 %v3934, 0.1
      %v4005 = vmul.f32 %v3936, 0.1
      %v4006 = vmul.f32 %v3939, 0.1
      %v4007 = vmul.f32 %v3941, 0.1
      %v4008 = vmul.f32 %v3944, 0.1
      %v4009 = vmul.f32 %v3946, 0.1
      %v4010 = vmul.f32 %v3949, 0.1
      %v4011 = vmul.f32 %v3951, 0.1
      %v4012 = vmul.f32 %v3954, 0.1
      %v4013 = vmul.f32 %v3956, 0.1
      %v4014 = vmul.f32 %v3959, 0.1
      %v4015 = vmul.f32 %v3961, 0.1
      %v4016 = vmul.f32 %v3964, 0.1
      %v4017 = vmul.f32 %v3966, 0.1
      %v4018 = vmul.f32 %v3969, 0.1
      %v4019 = vmul.f32 %v3971, 0.1
      %v4020 = vmul.f32 %v3974, 0.1
      %v4021 = vmul.f32 %v3976, 0.1
      %v4022 = vmul.f32 %v3979, 0.1
      %v4023 = vmul.f32 %v3981, 0.1
      %v4024 = vmul.f32 %v3984, 0.1
      %v4025 = vmul.f32 %v3986, 0.1
      %v4026 = vmul.f32 %v3989, 0.1
      %v4027 = vmul.f32 %v3991, 0.1
      %v4028 = vmul.f32 %v3994, 0.1
      %v4029 = vmul.f32 %v3996, 0.1
      %4062 = vrot.lane.b32.xlu0 %v3998, 8
      %v4063 = vpop.permute.xlu0 %4062
      %4064 = vrot.lane.b32.xlu0 %v3999, 8
      %v4065 = vpop.permute.xlu0 %4064
      %4066 = vrot.lane.b32.xlu0 %v4000, 8
      %v4067 = vpop.permute.xlu0 %4066
      %4068 = vrot.lane.b32.xlu0 %v4001, 8
      %v4069 = vpop.permute.xlu0 %4068
      %4070 = vrot.lane.b32.xlu0 %v4002, 8
      %v4071 = vpop.permute.xlu0 %4070
      %4072 = vrot.lane.b32.xlu0 %v4003, 8
      %v4073 = vpop.permute.xlu0 %4072
      %4074 = vrot.lane.b32.xlu0 %v4004, 8
      %v4075 = vpop.permute.xlu0 %4074
      %4076 = vrot.lane.b32.xlu0 %v4005, 8
      %v4077 = vpop.permute.xlu0 %4076
      %4078 = vrot.lane.b32.xlu0 %v4006, 8
      %v4079 = vpop.permute.xlu0 %4078
      %4080 = vrot.lane.b32.xlu0 %v4007, 8
      %v4081 = vpop.permute.xlu0 %4080
      %4082 = vrot.lane.b32.xlu0 %v4008, 8
      %v4083 = vpop.permute.xlu0 %4082
      %4084 = vrot.lane.b32.xlu0 %v4009, 8
      %v4085 = vpop.permute.xlu0 %4084
      %4086 = vrot.lane.b32.xlu0 %v4010, 8
      %v4087 = vpop.permute.xlu0 %4086
      %4088 = vrot.lane.b32.xlu0 %v4011, 8
      %v4089 = vpop.permute.xlu0 %4088
      %4090 = vrot.lane.b32.xlu0 %v4012, 8
      %v4091 = vpop.permute.xlu0 %4090
      %4092 = vrot.lane.b32.xlu0 %v4013, 8
      %v4093 = vpop.permute.xlu0 %4092
      %4094 = vrot.lane.b32.xlu0 %v4014, 8
      %v4095 = vpop.permute.xlu0 %4094
      %4096 = vrot.lane.b32.xlu0 %v4015, 8
      %v4097 = vpop.permute.xlu0 %4096
      %4098 = vrot.lane.b32.xlu0 %v4016, 8
      %v4099 = vpop.permute.xlu0 %4098
      %4100 = vrot.lane.b32.xlu0 %v4017, 8
      %v4101 = vpop.permute.xlu0 %4100
      %4102 = vrot.lane.b32.xlu0 %v4018, 8
      %v4103 = vpop.permute.xlu0 %4102
      %4104 = vrot.lane.b32.xlu0 %v4019, 8
      %v4105 = vpop.permute.xlu0 %4104
      %4106 = vrot.lane.b32.xlu0 %v4020, 8
      %v4107 = vpop.permute.xlu0 %4106
      %4108 = vrot.lane.b32.xlu0 %v4021, 8
      %v4109 = vpop.permute.xlu0 %4108
      %4110 = vrot.lane.b32.xlu0 %v4022, 8
      %v4111 = vpop.permute.xlu0 %4110
      %4112 = vrot.lane.b32.xlu0 %v4023, 8
      %v4113 = vpop.permute.xlu0 %4112
      %4114 = vrot.lane.b32.xlu0 %v4024, 8
      %v4115 = vpop.permute.xlu0 %4114
      %4116 = vrot.lane.b32.xlu0 %v4025, 8
      %v4117 = vpop.permute.xlu0 %4116
      %4118 = vrot.lane.b32.xlu0 %v4026, 8
      %v4119 = vpop.permute.xlu0 %4118
      %4120 = vrot.lane.b32.xlu0 %v4027, 8
      %v4121 = vpop.permute.xlu0 %4120
      %4122 = vrot.lane.b32.xlu0 %v4028, 8
      %v4123 = vpop.permute.xlu0 %4122
      %4124 = vrot.lane.b32.xlu0 %v4029, 8
      %v4125 = vpop.permute.xlu0 %4124
      %v4158 = vadd.f32 %v634, %v4063
      %v4159 = vadd.f32 %v636, %v4065
      %v4160 = vadd.f32 %v639, %v4067
      %v4161 = vadd.f32 %v641, %v4069
      %v4162 = vadd.f32 %v644, %v4071
      %v4163 = vadd.f32 %v646, %v4073
      %v4164 = vadd.f32 %v649, %v4075
      %v4165 = vadd.f32 %v651, %v4077
      %v4166 = vadd.f32 %v654, %v4079
      %v4167 = vadd.f32 %v656, %v4081
      %v4168 = vadd.f32 %v659, %v4083
      %v4169 = vadd.f32 %v661, %v4085
      %v4170 = vadd.f32 %v664, %v4087
      %v4171 = vadd.f32 %v666, %v4089
      %v4172 = vadd.f32 %v669, %v4091
      %v4173 = vadd.f32 %v671, %v4093
      %v4174 = vadd.f32 %v674, %v4095
      %v4175 = vadd.f32 %v676, %v4097
      %v4176 = vadd.f32 %v679, %v4099
      %v4177 = vadd.f32 %v681, %v4101
      %v4178 = vadd.f32 %v684, %v4103
      %v4179 = vadd.f32 %v686, %v4105
      %v4180 = vadd.f32 %v689, %v4107
      %v4181 = vadd.f32 %v691, %v4109
      %v4182 = vadd.f32 %v694, %v4111
      %v4183 = vadd.f32 %v696, %v4113
      %v4184 = vadd.f32 %v699, %v4115
      %v4185 = vadd.f32 %v701, %v4117
      %v4186 = vadd.f32 %v704, %v4119
      %v4187 = vadd.f32 %v706, %v4121
      %v4188 = vadd.f32 %v709, %v4123
      %v4189 = vadd.f32 %v711, %v4125
      %vm4190 = vcmp.gt.f32.partialorder %v4158, 0.0
      %vm4191 = vcmp.gt.f32.partialorder %v4159, 0.0
      %vm4192 = vcmp.gt.f32.partialorder %v4160, 0.0
      %vm4193 = vcmp.gt.f32.partialorder %v4161, 0.0
      %vm4194 = vcmp.gt.f32.partialorder %v4162, 0.0
      %vm4195 = vcmp.gt.f32.partialorder %v4163, 0.0
      %vm4196 = vcmp.gt.f32.partialorder %v4164, 0.0
      %vm4197 = vcmp.gt.f32.partialorder %v4165, 0.0
      %vm4198 = vcmp.gt.f32.partialorder %v4166, 0.0
      %vm4199 = vcmp.gt.f32.partialorder %v4167, 0.0
      %vm4200 = vcmp.gt.f32.partialorder %v4168, 0.0
      %vm4201 = vcmp.gt.f32.partialorder %v4169, 0.0
      %vm4202 = vcmp.gt.f32.partialorder %v4170, 0.0
      %vm4203 = vcmp.gt.f32.partialorder %v4171, 0.0
      %vm4204 = vcmp.gt.f32.partialorder %v4172, 0.0
      %vm4205 = vcmp.gt.f32.partialorder %v4173, 0.0
      %vm4206 = vcmp.gt.f32.partialorder %v4174, 0.0
      %vm4207 = vcmp.gt.f32.partialorder %v4175, 0.0
      %vm4208 = vcmp.gt.f32.partialorder %v4176, 0.0
      %vm4209 = vcmp.gt.f32.partialorder %v4177, 0.0
      %vm4210 = vcmp.gt.f32.partialorder %v4178, 0.0
      %vm4211 = vcmp.gt.f32.partialorder %v4179, 0.0
      %vm4212 = vcmp.gt.f32.partialorder %v4180, 0.0
      %vm4213 = vcmp.gt.f32.partialorder %v4181, 0.0
      %vm4214 = vcmp.gt.f32.partialorder %v4182, 0.0
      %vm4215 = vcmp.gt.f32.partialorder %v4183, 0.0
      %vm4216 = vcmp.gt.f32.partialorder %v4184, 0.0
      %vm4217 = vcmp.gt.f32.partialorder %v4185, 0.0
      %vm4218 = vcmp.gt.f32.partialorder %v4186, 0.0
      %vm4219 = vcmp.gt.f32.partialorder %v4187, 0.0
      %vm4220 = vcmp.gt.f32.partialorder %v4188, 0.0
      %vm4221 = vcmp.gt.f32.partialorder %v4189, 0.0
      %v4222 = vmul.f32 %v4158, 0.2
      %v4223 = vmul.f32 %v4159, 0.2
      %v4224 = vmul.f32 %v4160, 0.2
      %v4225 = vmul.f32 %v4161, 0.2
      %v4226 = vmul.f32 %v4162, 0.2
      %v4227 = vmul.f32 %v4163, 0.2
      %v4228 = vmul.f32 %v4164, 0.2
      %v4229 = vmul.f32 %v4165, 0.2
      %v4230 = vmul.f32 %v4166, 0.2
      %v4231 = vmul.f32 %v4167, 0.2
      %v4232 = vmul.f32 %v4168, 0.2
      %v4233 = vmul.f32 %v4169, 0.2
      %v4234 = vmul.f32 %v4170, 0.2
      %v4235 = vmul.f32 %v4171, 0.2
      %v4236 = vmul.f32 %v4172, 0.2
      %v4237 = vmul.f32 %v4173, 0.2
      %v4238 = vmul.f32 %v4174, 0.2
      %v4239 = vmul.f32 %v4175, 0.2
      %v4240 = vmul.f32 %v4176, 0.2
      %v4241 = vmul.f32 %v4177, 0.2
      %v4242 = vmul.f32 %v4178, 0.2
      %v4243 = vmul.f32 %v4179, 0.2
      %v4244 = vmul.f32 %v4180, 0.2
      %v4245 = vmul.f32 %v4181, 0.2
      %v4246 = vmul.f32 %v4182, 0.2
      %v4247 = vmul.f32 %v4183, 0.2
      %v4248 = vmul.f32 %v4184, 0.2
      %v4249 = vmul.f32 %v4185, 0.2
      %v4250 = vmul.f32 %v4186, 0.2
      %v4251 = vmul.f32 %v4187, 0.2
      %v4252 = vmul.f32 %v4188, 0.2
      %v4253 = vmul.f32 %v4189, 0.2
      %v4254 = vsel %vm4190, %v4158, %v4222
      %v4255 = vsel %vm4191, %v4159, %v4223
      %v4256 = vsel %vm4192, %v4160, %v4224
      %v4257 = vsel %vm4193, %v4161, %v4225
      %v4258 = vsel %vm4194, %v4162, %v4226
      %v4259 = vsel %vm4195, %v4163, %v4227
      %v4260 = vsel %vm4196, %v4164, %v4228
      %v4261 = vsel %vm4197, %v4165, %v4229
      %v4262 = vsel %vm4198, %v4166, %v4230
      %v4263 = vsel %vm4199, %v4167, %v4231
      %v4264 = vsel %vm4200, %v4168, %v4232
      %v4265 = vsel %vm4201, %v4169, %v4233
      %v4266 = vsel %vm4202, %v4170, %v4234
      %v4267 = vsel %vm4203, %v4171, %v4235
      %v4268 = vsel %vm4204, %v4172, %v4236
      %v4269 = vsel %vm4205, %v4173, %v4237
      %v4270 = vsel %vm4206, %v4174, %v4238
      %v4271 = vsel %vm4207, %v4175, %v4239
      %v4272 = vsel %vm4208, %v4176, %v4240
      %v4273 = vsel %vm4209, %v4177, %v4241
      %v4274 = vsel %vm4210, %v4178, %v4242
      %v4275 = vsel %vm4211, %v4179, %v4243
      %v4276 = vsel %vm4212, %v4180, %v4244
      %v4277 = vsel %vm4213, %v4181, %v4245
      %v4278 = vsel %vm4214, %v4182, %v4246
      %v4279 = vsel %vm4215, %v4183, %v4247
      %v4280 = vsel %vm4216, %v4184, %v4248
      %v4281 = vsel %vm4217, %v4185, %v4249
      %v4282 = vsel %vm4218, %v4186, %v4250
      %v4283 = vsel %vm4219, %v4187, %v4251
      %v4284 = vsel %vm4220, %v4188, %v4252
      %v4285 = vsel %vm4221, %v4189, %v4253
      %v4286 = vpack.c.bf16 %v4255, %v4254
      %v4287 = vpack.c.bf16 %v4257, %v4256
      %v4288 = vpack.c.bf16 %v4259, %v4258
      %v4289 = vpack.c.bf16 %v4261, %v4260
      %v4290 = vpack.c.bf16 %v4263, %v4262
      %v4291 = vpack.c.bf16 %v4265, %v4264
      %v4292 = vpack.c.bf16 %v4267, %v4266
      %v4293 = vpack.c.bf16 %v4269, %v4268
      %v4294 = vpack.c.bf16 %v4271, %v4270
      %v4295 = vpack.c.bf16 %v4273, %v4272
      %v4296 = vpack.c.bf16 %v4275, %v4274
      %v4297 = vpack.c.bf16 %v4277, %v4276
      %v4298 = vpack.c.bf16 %v4279, %v4278
      %v4299 = vpack.c.bf16 %v4281, %v4280
      %v4300 = vpack.c.bf16 %v4283, %v4282
      %v4301 = vpack.c.bf16 %v4285, %v4284
      %v4302 = vld [vmem:[%s7] sm:$0xff]
      %v4303 = vld [vmem:[%s7 + $0x8] sm:$0xff]
      %v4304 = vld [vmem:[%s8] sm:$0x3]
      %v4306 = vperm.slane %v4304, 0
      %v4307 = vperm.slane %v4304, 1
      %4326 = vrot.lane.b32.xlu0 %v4286, 120
      %v4327 = vpop.permute.xlu0 %4326
      %4328 = vrot.lane.b32.xlu0 %v4287, 120
      %v4329 = vpop.permute.xlu0 %4328
      %4330 = vrot.lane.b32.xlu0 %v4288, 120
      %v4331 = vpop.permute.xlu0 %4330
      %4332 = vrot.lane.b32.xlu0 %v4289, 120
      %v4333 = vpop.permute.xlu0 %4332
      %4334 = vrot.lane.b32.xlu0 %v4290, 120
      %v4335 = vpop.permute.xlu0 %4334
      %4336 = vrot.lane.b32.xlu0 %v4291, 120
      %v4337 = vpop.permute.xlu0 %4336
      %4338 = vrot.lane.b32.xlu0 %v4292, 120
      %v4339 = vpop.permute.xlu0 %4338
      %4340 = vrot.lane.b32.xlu0 %v4293, 120
      %v4341 = vpop.permute.xlu0 %4340
      %4342 = vrot.lane.b32.xlu0 %v4294, 120
      %v4343 = vpop.permute.xlu0 %4342
      %4344 = vrot.lane.b32.xlu0 %v4295, 120
      %v4345 = vpop.permute.xlu0 %4344
      %4346 = vrot.lane.b32.xlu0 %v4296, 120
      %v4347 = vpop.permute.xlu0 %4346
      %4348 = vrot.lane.b32.xlu0 %v4297, 120
      %v4349 = vpop.permute.xlu0 %4348
      %4350 = vrot.lane.b32.xlu0 %v4298, 120
      %v4351 = vpop.permute.xlu0 %4350
      %4352 = vrot.lane.b32.xlu0 %v4299, 120
      %v4353 = vpop.permute.xlu0 %4352
      %4354 = vrot.lane.b32.xlu0 %v4300, 120
      %v4355 = vpop.permute.xlu0 %4354
      %4356 = vrot.lane.b32.xlu0 %v4301, 120
      %v4357 = vpop.permute.xlu0 %4356
      %v4360 = vunpack.c.l.b16 %v4302
      %v4361 = vunpack.c.h.b16 %v4302
      %v4362 = vunpack.c.l.b16 %v4303
      %v4363 = vunpack.c.h.b16 %v4303
      %v4364 = vpack.c.b16 %v4362, %v4360
      %v4365 = vpack.c.b16 %v4363, %v4361
      %v4369 = vsel %vm1932, %v4327, 0
      %v4372 = vsel %vm1932, %v4329, 0
      %v4375 = vsel %vm1932, %v4331, 0
      %v4378 = vsel %vm1932, %v4333, 0
      %v4381 = vsel %vm1932, %v4335, 0
      %v4384 = vsel %vm1932, %v4337, 0
      %v4387 = vsel %vm1932, %v4339, 0
      %v4390 = vsel %vm1932, %v4341, 0
      %v4393 = vsel %vm1932, %v4343, 0
      %v4396 = vsel %vm1932, %v4345, 0
      %v4399 = vsel %vm1932, %v4347, 0
      %v4402 = vsel %vm1932, %v4349, 0
      %v4405 = vsel %vm1932, %v4351, 0
      %v4408 = vsel %vm1932, %v4353, 0
      %v4411 = vsel %vm1932, %v4355, 0
      %v4414 = vsel %vm1932, %v4357, 0
      %4416 = vmatpush.bf16.msra.mxu0 0
      %4417 = vmatpush.bf16.msra.mxu0 0
      %4418 = vmatpush.bf16.msra.mxu0 0
      %4419 = vmatpush.bf16.msra.mxu0 0
      %4420 = vmatpush.bf16.msra.mxu0 0
      %4421 = vmatpush.bf16.msra.mxu0 0
      %4422 = vmatpush.bf16.msra.mxu0 0
      %4423 = vmatpush.bf16.msra.mxu0 %v4364
      %4424 = vmatmul.bf16.gmra.mxu0 %v4369
      %v4425 = vpop.f32.mrf.mxu0
      %v4426 = vadd.f32 %v4306, %v4425
      %v4427 = vpop.f32.mrf.mxu0
      %v4428 = vadd.f32 %v4306, %v4427
      %4429 = vmatmul.bf16.gmra.mxu0 %v4372
      %v4430 = vpop.f32.mrf.mxu0
      %v4431 = vadd.f32 %v4306, %v4430
      %v4432 = vpop.f32.mrf.mxu0
      %v4433 = vadd.f32 %v4306, %v4432
      %4434 = vmatmul.bf16.gmra.mxu0 %v4375
      %v4435 = vpop.f32.mrf.mxu0
      %v4436 = vadd.f32 %v4306, %v4435
      %v4437 = vpop.f32.mrf.mxu0
      %v4438 = vadd.f32 %v4306, %v4437
      %4439 = vmatmul.bf16.gmra.mxu0 %v4378
      %v4440 = vpop.f32.mrf.mxu0
      %v4441 = vadd.f32 %v4306, %v4440
      %v4442 = vpop.f32.mrf.mxu0
      %v4443 = vadd.f32 %v4306, %v4442
      %4444 = vmatmul.bf16.gmra.mxu0 %v4381
      %v4445 = vpop.f32.mrf.mxu0
      %v4446 = vadd.f32 %v4306, %v4445
      %v4447 = vpop.f32.mrf.mxu0
      %v4448 = vadd.f32 %v4306, %v4447
      %4449 = vmatmul.bf16.gmra.mxu0 %v4384
      %v4450 = vpop.f32.mrf.mxu0
      %v4451 = vadd.f32 %v4306, %v4450
      %v4452 = vpop.f32.mrf.mxu0
      %v4453 = vadd.f32 %v4306, %v4452
      %4454 = vmatmul.bf16.gmra.mxu0 %v4387
      %v4455 = vpop.f32.mrf.mxu0
      %v4456 = vadd.f32 %v4306, %v4455
      %v4457 = vpop.f32.mrf.mxu0
      %v4458 = vadd.f32 %v4306, %v4457
      %4459 = vmatmul.bf16.gmra.mxu0 %v4390
      %v4460 = vpop.f32.mrf.mxu0
      %v4461 = vadd.f32 %v4306, %v4460
      %v4462 = vpop.f32.mrf.mxu0
      %v4463 = vadd.f32 %v4306, %v4462
      %4464 = vmatmul.bf16.gmra.mxu0 %v4393
      %v4465 = vpop.f32.mrf.mxu0
      %v4466 = vadd.f32 %v4306, %v4465
      %v4467 = vpop.f32.mrf.mxu0
      %v4468 = vadd.f32 %v4306, %v4467
      %4469 = vmatmul.bf16.gmra.mxu0 %v4396
      %v4470 = vpop.f32.mrf.mxu0
      %v4471 = vadd.f32 %v4306, %v4470
      %v4472 = vpop.f32.mrf.mxu0
      %v4473 = vadd.f32 %v4306, %v4472
      %4474 = vmatmul.bf16.gmra.mxu0 %v4399
      %v4475 = vpop.f32.mrf.mxu0
      %v4476 = vadd.f32 %v4306, %v4475
      %v4477 = vpop.f32.mrf.mxu0
      %v4478 = vadd.f32 %v4306, %v4477
      %4479 = vmatmul.bf16.gmra.mxu0 %v4402
      %v4480 = vpop.f32.mrf.mxu0
      %v4481 = vadd.f32 %v4306, %v4480
      %v4482 = vpop.f32.mrf.mxu0
      %v4483 = vadd.f32 %v4306, %v4482
      %4484 = vmatmul.bf16.gmra.mxu0 %v4405
      %v4485 = vpop.f32.mrf.mxu0
      %v4486 = vadd.f32 %v4306, %v4485
      %v4487 = vpop.f32.mrf.mxu0
      %v4488 = vadd.f32 %v4306, %v4487
      %4489 = vmatmul.bf16.gmra.mxu0 %v4408
      %v4490 = vpop.f32.mrf.mxu0
      %v4491 = vadd.f32 %v4306, %v4490
      %v4492 = vpop.f32.mrf.mxu0
      %v4493 = vadd.f32 %v4306, %v4492
      %4494 = vmatmul.bf16.gmra.mxu0 %v4411
      %v4495 = vpop.f32.mrf.mxu0
      %v4496 = vadd.f32 %v4306, %v4495
      %v4497 = vpop.f32.mrf.mxu0
      %v4498 = vadd.f32 %v4306, %v4497
      %4499 = vmatmul.bf16.gmra.mxu0 %v4414
      %v4500 = vpop.f32.mrf.mxu0
      %v4501 = vadd.f32 %v4306, %v4500
      %v4502 = vpop.f32.mrf.mxu0
      %v4503 = vadd.f32 %v4306, %v4502
      %4504 = vdwg.mxu0
      %4505 = vmatpush.bf16.msra.mxu0 0
      %4506 = vmatpush.bf16.msra.mxu0 0
      %4507 = vmatpush.bf16.msra.mxu0 0
      %4508 = vmatpush.bf16.msra.mxu0 0
      %4509 = vmatpush.bf16.msra.mxu0 0
      %4510 = vmatpush.bf16.msra.mxu0 0
      %4511 = vmatpush.bf16.msra.mxu0 0
      %4512 = vmatpush.bf16.msra.mxu0 %v4365
      %4513 = vmatmul.bf16.gmra.mxu0 %v4369
      %v4514 = vpop.f32.mrf.mxu0
      %v4515 = vadd.f32 %v4307, %v4514
      %v4516 = vpop.f32.mrf.mxu0
      %v4517 = vadd.f32 %v4307, %v4516
      %4518 = vmatmul.bf16.gmra.mxu0 %v4372
      %v4519 = vpop.f32.mrf.mxu0
      %v4520 = vadd.f32 %v4307, %v4519
      %v4521 = vpop.f32.mrf.mxu0
      %v4522 = vadd.f32 %v4307, %v4521
      %4523 = vmatmul.bf16.gmra.mxu0 %v4375
      %v4524 = vpop.f32.mrf.mxu0
      %v4525 = vadd.f32 %v4307, %v4524
      %v4526 = vpop.f32.mrf.mxu0
      %v4527 = vadd.f32 %v4307, %v4526
      %4528 = vmatmul.bf16.gmra.mxu0 %v4378
      %v4529 = vpop.f32.mrf.mxu0
      %v4530 = vadd.f32 %v4307, %v4529
      %v4531 = vpop.f32.mrf.mxu0
      %v4532 = vadd.f32 %v4307, %v4531
      %4533 = vmatmul.bf16.gmra.mxu0 %v4381
      %v4534 = vpop.f32.mrf.mxu0
      %v4535 = vadd.f32 %v4307, %v4534
      %v4536 = vpop.f32.mrf.mxu0
      %v4537 = vadd.f32 %v4307, %v4536
      %4538 = vmatmul.bf16.gmra.mxu0 %v4384
      %v4539 = vpop.f32.mrf.mxu0
      %v4540 = vadd.f32 %v4307, %v4539
      %v4541 = vpop.f32.mrf.mxu0
      %v4542 = vadd.f32 %v4307, %v4541
      %4543 = vmatmul.bf16.gmra.mxu0 %v4387
      %v4544 = vpop.f32.mrf.mxu0
      %v4545 = vadd.f32 %v4307, %v4544
      %v4546 = vpop.f32.mrf.mxu0
      %v4547 = vadd.f32 %v4307, %v4546
      %4548 = vmatmul.bf16.gmra.mxu0 %v4390
      %v4549 = vpop.f32.mrf.mxu0
      %v4550 = vadd.f32 %v4307, %v4549
      %v4551 = vpop.f32.mrf.mxu0
      %v4552 = vadd.f32 %v4307, %v4551
      %4553 = vmatmul.bf16.gmra.mxu0 %v4393
      %v4554 = vpop.f32.mrf.mxu0
      %v4555 = vadd.f32 %v4307, %v4554
      %v4556 = vpop.f32.mrf.mxu0
      %v4557 = vadd.f32 %v4307, %v4556
      %4558 = vmatmul.bf16.gmra.mxu0 %v4396
      %v4559 = vpop.f32.mrf.mxu0
      %v4560 = vadd.f32 %v4307, %v4559
      %v4561 = vpop.f32.mrf.mxu0
      %v4562 = vadd.f32 %v4307, %v4561
      %4563 = vmatmul.bf16.gmra.mxu0 %v4399
      %v4564 = vpop.f32.mrf.mxu0
      %v4565 = vadd.f32 %v4307, %v4564
      %v4566 = vpop.f32.mrf.mxu0
      %v4567 = vadd.f32 %v4307, %v4566
      %4568 = vmatmul.bf16.gmra.mxu0 %v4402
      %v4569 = vpop.f32.mrf.mxu0
      %v4570 = vadd.f32 %v4307, %v4569
      %v4571 = vpop.f32.mrf.mxu0
      %v4572 = vadd.f32 %v4307, %v4571
      %4573 = vmatmul.bf16.gmra.mxu0 %v4405
      %v4574 = vpop.f32.mrf.mxu0
      %v4575 = vadd.f32 %v4307, %v4574
      %v4576 = vpop.f32.mrf.mxu0
      %v4577 = vadd.f32 %v4307, %v4576
      %4578 = vmatmul.bf16.gmra.mxu0 %v4408
      %v4579 = vpop.f32.mrf.mxu0
      %v4580 = vadd.f32 %v4307, %v4579
      %v4581 = vpop.f32.mrf.mxu0
      %v4582 = vadd.f32 %v4307, %v4581
      %4583 = vmatmul.bf16.gmra.mxu0 %v4411
      %v4584 = vpop.f32.mrf.mxu0
      %v4585 = vadd.f32 %v4307, %v4584
      %v4586 = vpop.f32.mrf.mxu0
      %v4587 = vadd.f32 %v4307, %v4586
      %4588 = vmatmul.bf16.gmra.mxu0 %v4414
      %v4589 = vpop.f32.mrf.mxu0
      %v4590 = vadd.f32 %v4307, %v4589
      %v4591 = vpop.f32.mrf.mxu0
      %v4592 = vadd.f32 %v4307, %v4591
      %4593 = vdwg.mxu0
      %4594 = vxpose.xlu0.b32.start [1/16] %v4426, 128
      %4595 = vxpose.xlu0.b32.cont [2/16] %v4428, 128
      %4596 = vxpose.xlu0.b32.cont [3/16] %v4431, 128
      %4597 = vxpose.xlu0.b32.cont [4/16] %v4433, 128
      %4598 = vxpose.xlu0.b32.cont [5/16] %v4436, 128
      %4599 = vxpose.xlu0.b32.cont [6/16] %v4438, 128
      %4600 = vxpose.xlu0.b32.cont [7/16] %v4441, 128
      %4601 = vxpose.xlu0.b32.cont [8/16] %v4443, 128
      %4602 = vxpose.xlu0.b32.cont [9/16] %v4446, 128
      %4603 = vxpose.xlu0.b32.cont [10/16] %v4448, 128
      %4604 = vxpose.xlu0.b32.cont [11/16] %v4451, 128
      %4605 = vxpose.xlu0.b32.cont [12/16] %v4453, 128
      %4606 = vxpose.xlu0.b32.cont [13/16] %v4456, 128
      %4607 = vxpose.xlu0.b32.cont [14/16] %v4458, 128
      %4608 = vxpose.xlu0.b32.cont [15/16] %v4461, 128
      %4609 = vxpose.xlu0.b32.end [16/16] %v4463, 128
      %v4610 = vpop.trf.xlu0
      %v4611 = vpop.trf.xlu0
      %v4612 = vpop.trf.xlu0
      %v4613 = vpop.trf.xlu0
      %v4614 = vpop.trf.xlu0
      %v4615 = vpop.trf.xlu0
      %v4616 = vpop.trf.xlu0
      %v4617 = vpop.trf.xlu0
      %v4618 = vpop.trf.xlu0
      %v4619 = vpop.trf.xlu0
      %v4620 = vpop.trf.xlu0
      %v4621 = vpop.trf.xlu0
      %v4622 = vpop.trf.xlu0
      %v4623 = vpop.trf.xlu0
      %v4624 = vpop.trf.xlu0
      %v4625 = vpop.trf.xlu0
      %4626 = vxpose.xlu0.b32.start [1/16] %v4515, 128
      %4627 = vxpose.xlu0.b32.cont [2/16] %v4517, 128
      %4628 = vxpose.xlu0.b32.cont [3/16] %v4520, 128
      %4629 = vxpose.xlu0.b32.cont [4/16] %v4522, 128
      %4630 = vxpose.xlu0.b32.cont [5/16] %v4525, 128
      %4631 = vxpose.xlu0.b32.cont [6/16] %v4527, 128
      %4632 = vxpose.xlu0.b32.cont [7/16] %v4530, 128
      %4633 = vxpose.xlu0.b32.cont [8/16] %v4532, 128
      %4634 = vxpose.xlu0.b32.cont [9/16] %v4535, 128
      %4635 = vxpose.xlu0.b32.cont [10/16] %v4537, 128
      %4636 = vxpose.xlu0.b32.cont [11/16] %v4540, 128
      %4637 = vxpose.xlu0.b32.cont [12/16] %v4542, 128
      %4638 = vxpose.xlu0.b32.cont [13/16] %v4545, 128
      %4639 = vxpose.xlu0.b32.cont [14/16] %v4547, 128
      %4640 = vxpose.xlu0.b32.cont [15/16] %v4550, 128
      %4641 = vxpose.xlu0.b32.end [16/16] %v4552, 128
      %v4642 = vpop.trf.xlu0
      %v4643 = vpop.trf.xlu0
      %v4644 = vpop.trf.xlu0
      %v4645 = vpop.trf.xlu0
      %v4646 = vpop.trf.xlu0
      %v4647 = vpop.trf.xlu0
      %v4648 = vpop.trf.xlu0
      %v4649 = vpop.trf.xlu0
      %v4650 = vpop.trf.xlu0
      %v4651 = vpop.trf.xlu0
      %v4652 = vpop.trf.xlu0
      %v4653 = vpop.trf.xlu0
      %v4654 = vpop.trf.xlu0
      %v4655 = vpop.trf.xlu0
      %v4656 = vpop.trf.xlu0
      %v4657 = vpop.trf.xlu0
      %4658 = vxpose.xlu0.b32.start [1/16] %v4466, 128
      %4659 = vxpose.xlu0.b32.cont [2/16] %v4468, 128
      %4660 = vxpose.xlu0.b32.cont [3/16] %v4471, 128
      %4661 = vxpose.xlu0.b32.cont [4/16] %v4473, 128
      %4662 = vxpose.xlu0.b32.cont [5/16] %v4476, 128
      %4663 = vxpose.xlu0.b32.cont [6/16] %v4478, 128
      %4664 = vxpose.xlu0.b32.cont [7/16] %v4481, 128
      %4665 = vxpose.xlu0.b32.cont [8/16] %v4483, 128
      %4666 = vxpose.xlu0.b32.cont [9/16] %v4486, 128
      %4667 = vxpose.xlu0.b32.cont [10/16] %v4488, 128
      %4668 = vxpose.xlu0.b32.cont [11/16] %v4491, 128
      %4669 = vxpose.xlu0.b32.cont [12/16] %v4493, 128
      %4670 = vxpose.xlu0.b32.cont [13/16] %v4496, 128
      %4671 = vxpose.xlu0.b32.cont [14/16] %v4498, 128
      %4672 = vxpose.xlu0.b32.cont [15/16] %v4501, 128
      %4673 = vxpose.xlu0.b32.end [16/16] %v4503, 128
      %v4674 = vpop.trf.xlu0
      %v4675 = vpop.trf.xlu0
      %v4676 = vpop.trf.xlu0
      %v4677 = vpop.trf.xlu0
      %v4678 = vpop.trf.xlu0
      %v4679 = vpop.trf.xlu0
      %v4680 = vpop.trf.xlu0
      %v4681 = vpop.trf.xlu0
      %v4682 = vpop.trf.xlu0
      %v4683 = vpop.trf.xlu0
      %v4684 = vpop.trf.xlu0
      %v4685 = vpop.trf.xlu0
      %v4686 = vpop.trf.xlu0
      %v4687 = vpop.trf.xlu0
      %v4688 = vpop.trf.xlu0
      %v4689 = vpop.trf.xlu0
      %4690 = vxpose.xlu0.b32.start [1/16] %v4555, 128
      %4691 = vxpose.xlu0.b32.cont [2/16] %v4557, 128
      %4692 = vxpose.xlu0.b32.cont [3/16] %v4560, 128
      %4693 = vxpose.xlu0.b32.cont [4/16] %v4562, 128
      %4694 = vxpose.xlu0.b32.cont [5/16] %v4565, 128
      %4695 = vxpose.xlu0.b32.cont [6/16] %v4567, 128
      %4696 = vxpose.xlu0.b32.cont [7/16] %v4570, 128
      %4697 = vxpose.xlu0.b32.cont [8/16] %v4572, 128
      %4698 = vxpose.xlu0.b32.cont [9/16] %v4575, 128
      %4699 = vxpose.xlu0.b32.cont [10/16] %v4577, 128
      %4700 = vxpose.xlu0.b32.cont [11/16] %v4580, 128
      %4701 = vxpose.xlu0.b32.cont [12/16] %v4582, 128
      %4702 = vxpose.xlu0.b32.cont [13/16] %v4585, 128
      %4703 = vxpose.xlu0.b32.cont [14/16] %v4587, 128
      %4704 = vxpose.xlu0.b32.cont [15/16] %v4590, 128
      %4705 = vxpose.xlu0.b32.end [16/16] %v4592, 128
      %v4706 = vpop.trf.xlu0
      %v4707 = vpop.trf.xlu0
      %v4708 = vpop.trf.xlu0
      %v4709 = vpop.trf.xlu0
      %v4710 = vpop.trf.xlu0
      %v4711 = vpop.trf.xlu0
      %v4712 = vpop.trf.xlu0
      %v4713 = vpop.trf.xlu0
      %v4714 = vpop.trf.xlu0
      %v4715 = vpop.trf.xlu0
      %v4716 = vpop.trf.xlu0
      %v4717 = vpop.trf.xlu0
      %v4718 = vpop.trf.xlu0
      %v4719 = vpop.trf.xlu0
      %v4720 = vpop.trf.xlu0
      %v4721 = vpop.trf.xlu0
      %4722 = vst [vmem:[%s332] sm:$0xff] %v4610
      %4723 = vst [vmem:[%s332 + $0x8] sm:$0xff] %v4674
      %4724 = vst [vmem:[%s332 + $0x10] sm:$0xff] %v4611
      %4725 = vst [vmem:[%s332 + $0x18] sm:$0xff] %v4675
      %4726 = vst [vmem:[%s332 + $0x20] sm:$0xff] %v4612
      %4727 = vst [vmem:[%s332 + $0x28] sm:$0xff] %v4676
      %4728 = vst [vmem:[%s332 + $0x30] sm:$0xff] %v4613
      %4729 = vst [vmem:[%s332 + $0x38] sm:$0xff] %v4677
      %4730 = vst [vmem:[%s332 + $0x40] sm:$0xff] %v4614
      %4731 = vst [vmem:[%s332 + $0x48] sm:$0xff] %v4678
      %4732 = vst [vmem:[%s332 + $0x50] sm:$0xff] %v4615
      %4733 = vst [vmem:[%s332 + $0x58] sm:$0xff] %v4679
      %4734 = vst [vmem:[%s332 + $0x60] sm:$0xff] %v4616
      %4735 = vst [vmem:[%s332 + $0x68] sm:$0xff] %v4680
      %4736 = vst [vmem:[%s332 + $0x70] sm:$0xff] %v4617
      %4737 = vst [vmem:[%s332 + $0x78] sm:$0xff] %v4681
      %4738 = vst [vmem:[%s332 + $0x80] sm:$0xff] %v4618
      %4739 = vst [vmem:[%s332 + $0x88] sm:$0xff] %v4682
      %4740 = vst [vmem:[%s332 + $0x90] sm:$0xff] %v4619
      %4741 = vst [vmem:[%s332 + $0x98] sm:$0xff] %v4683
      %4742 = vst [vmem:[%s332 + $0xa0] sm:$0xff] %v4620
      %4743 = vst [vmem:[%s332 + $0xa8] sm:$0xff] %v4684
      %4744 = vst [vmem:[%s332 + $0xb0] sm:$0xff] %v4621
      %4745 = vst [vmem:[%s332 + $0xb8] sm:$0xff] %v4685
      %4746 = vst [vmem:[%s332 + $0xc0] sm:$0xff] %v4622
      %4747 = vst [vmem:[%s332 + $0xc8] sm:$0xff] %v4686
      %4748 = vst [vmem:[%s332 + $0xd0] sm:$0xff] %v4623
      %4749 = vst [vmem:[%s332 + $0xd8] sm:$0xff] %v4687
      %4750 = vst [vmem:[%s332 + $0xe0] sm:$0xff] %v4624
      %4751 = vst [vmem:[%s332 + $0xe8] sm:$0xff] %v4688
      %4752 = vst [vmem:[%s332 + $0xf0] sm:$0xff] %v4625
      %4753 = vst [vmem:[%s332 + $0xf8] sm:$0xff] %v4689
      %4754 = vst [vmem:[%s332 + $0x100] sm:$0xff] %v4642
      %4755 = vst [vmem:[%s332 + $0x108] sm:$0xff] %v4706
      %4756 = vst [vmem:[%s332 + $0x110] sm:$0xff] %v4643
      %4757 = vst [vmem:[%s332 + $0x118] sm:$0xff] %v4707
      %4758 = vst [vmem:[%s332 + $0x120] sm:$0xff] %v4644
      %4759 = vst [vmem:[%s332 + $0x128] sm:$0xff] %v4708
      %4760 = vst [vmem:[%s332 + $0x130] sm:$0xff] %v4645
      %4761 = vst [vmem:[%s332 + $0x138] sm:$0xff] %v4709
      %4762 = vst [vmem:[%s332 + $0x140] sm:$0xff] %v4646
      %4763 = vst [vmem:[%s332 + $0x148] sm:$0xff] %v4710
      %4764 = vst [vmem:[%s332 + $0x150] sm:$0xff] %v4647
      %4765 = vst [vmem:[%s332 + $0x158] sm:$0xff] %v4711
      %4766 = vst [vmem:[%s332 + $0x160] sm:$0xff] %v4648
      %4767 = vst [vmem:[%s332 + $0x168] sm:$0xff] %v4712
      %4768 = vst [vmem:[%s332 + $0x170] sm:$0xff] %v4649
      %4769 = vst [vmem:[%s332 + $0x178] sm:$0xff] %v4713
      %4770 = vst [vmem:[%s332 + $0x180] sm:$0xff] %v4650
      %4771 = vst [vmem:[%s332 + $0x188] sm:$0xff] %v4714
      %4772 = vst [vmem:[%s332 + $0x190] sm:$0xff] %v4651
      %4773 = vst [vmem:[%s332 + $0x198] sm:$0xff] %v4715
      %4774 = vst [vmem:[%s332 + $0x1a0] sm:$0xff] %v4652
      %4775 = vst [vmem:[%s332 + $0x1a8] sm:$0xff] %v4716
      %4776 = vst [vmem:[%s332 + $0x1b0] sm:$0xff] %v4653
      %4777 = vst [vmem:[%s332 + $0x1b8] sm:$0xff] %v4717
      %4778 = vst [vmem:[%s332 + $0x1c0] sm:$0xff] %v4654
      %4779 = vst [vmem:[%s332 + $0x1c8] sm:$0xff] %v4718
      %4780 = vst [vmem:[%s332 + $0x1d0] sm:$0xff] %v4655
      %4781 = vst [vmem:[%s332 + $0x1d8] sm:$0xff] %v4719
      %4782 = vst [vmem:[%s332 + $0x1e0] sm:$0xff] %v4656
      %4783 = vst [vmem:[%s332 + $0x1e8] sm:$0xff] %v4720
      %4784 = vst [vmem:[%s332 + $0x1f0] sm:$0xff] %v4657
      %4785 = vst [vmem:[%s332 + $0x1f8] sm:$0xff] %v4721
      %p4786 = scmp.lt.s32.totalorder %s20, 1
      %s4787 = scalar_select %p4786, %s20, 1
      %s4788 = smul.addr %s4787, 64
      %s4789 = smul.addr %s4788, 8
      %s4790 = scalar_lea.vmem %s9, %s4789
      // Predicated region
      $region57: #{_lambda_.1} parent=55 // pred_check
        %p4791 = pneg %p232
      $region58: #{_lambda_.1} parent=55 // pred_check_branch
        %4793 = sbr.rel (%p4791) target = $region60
      $region59: #{_lambda_.1} parent=55 // pred_region
        _
      $region60: #{_lambda_.1} parent=55 // pred_fallthru
        _
    $region56: #{_lambda_.1} parent=5 // pred_fallthru
      _
    %p4794 = scmp.le.s32.totalorder 2, %s15
    // Predicated region
    $region61: #{_lambda_.1} parent=5 // pred_check
      %p4795 = pneg %p4794
    $region62: #{_lambda_.1} parent=5 // pred_check_branch
      %4797 = sbr.rel (%p4795) target = $region64
    $region63: #{_lambda_.1} parent=5 // pred_region
      %s4798 = ssub.s32 %s15, 2
      // Predicated region
      $region65: #{_lambda_.1} parent=63 // pred_check
        %p4799 = pneg %p238
      $region66: #{_lambda_.1} parent=63 // pred_check_branch
        %4801 = sbr.rel (%p4799) target = $region68
      $region67: #{_lambda_.1} parent=63 // pred_region
        %p4802 = scmp.lt.s32.totalorder %s21, 1
        %s4803 = scalar_select %p4802, %s21, 1
        %s4804 = smul.addr %s4803, 64
        %s4805 = smul.addr %s4804, 8
        %s4806 = scalar_lea.vmem %s9, %s4805
      $region68: #{_lambda_.1} parent=63 // pred_fallthru
        _
    $region64: #{_lambda_.1} parent=5 // pred_fallthru
      _
  $region6: #{_lambda_.1} parent=0 // loop_footer
    %s19 = sadd.s32 1, %s15
  $region7: #{_lambda_.1} parent=0 // loop_footer_branch
    %14 = sbr.rel target = $region3
  $region8: #{_lambda_.1} parent=0 // loop_exit
    _

</llo_original>
